<compile_context>
chip_gen: v5e
topology: v5e:2x2
jax: 0.10.0
libtpu: 0.0.40
codegen_flags: <defaults>
</compile_context>

<pallas_src>
import functools
import math

import jax
import jax.numpy as jnp
from jax.experimental import pallas as pl
from jax.experimental.pallas import tpu as pltpu


# ----------------------------- config ------------------------------------- #
class Config:
    max_position_embeddings = 16
    hidden_size = 32
    num_attention_heads = 4
    intermediate_size = 64
    num_hidden_layers = 2
    hidden_dropout_prob = 0.0          # eval mode -> dropout is identity
    attention_probs_dropout_prob = 0.0
    mask_prob = 0.15
    mask_soft2hard = False
    shift_flag = False
    weight_dict = {"encoder.layer.0.attention": (4, 16)}  # [_, in_dim]


# --------------------------- small helpers --------------------------------- #
def _layer_norm(x, gamma, beta, eps=1e-5):
    mu = jnp.mean(x, axis=-1, keepdims=True)
    var = jnp.mean((x - mu) ** 2, axis=-1, keepdims=True)
    return (x - mu) * jax.lax.rsqrt(var + eps) * gamma + beta


# ------------------------------ fused kernel -------------------------------- #
def fused_maskformer_kernel(
        x_ref, lmw_ref,
        fc_in_w_ref, fc_in_b_ref, pos_ref, eln_g_ref, eln_b_ref,
        wq_ref, bq_ref, wk_ref, bk_ref, wv_ref, bv_ref, wo_ref, bo_ref,
        ln1g_ref, ln1b_ref, w1_ref, b1_ref, w2_ref, b2_ref, ln2g_ref, ln2b_ref,
        fc_out_w_ref, fc_out_b_ref,
        o_ref,
        *, num_layers, num_heads, d_k, seq_len, mask_soft2hard):
    """Entire Maskformer forward for one batch element, fully VMEM-resident."""
    S = seq_len
    H = num_heads

    # ---- embed: fc -> relu -> +pos_emb -> layer_norm (dropout = identity) ----
    x = x_ref[0]                                              # (S, Din)
    y = jnp.dot(x, fc_in_w_ref[...],
                preferred_element_type=jnp.float32) + fc_in_b_ref[...]
    y = jnp.maximum(y, 0.0)                                   # ReLU
    y = y + pos_ref[...][:S, :]                               # positional emb
    y = _layer_norm(y, eln_g_ref[...], eln_b_ref[...])
    D = y.shape[-1]

    # ---- learned soft attention mask (shared across batch & heads) ----------
    lm = jax.nn.sigmoid(lmw_ref[...])                         # (P, P)
    row = jax.lax.broadcasted_iota(jnp.int32, lm.shape, 0)
    col = jax.lax.broadcasted_iota(jnp.int32, lm.shape, 1)
    diag = (row == col).astype(jnp.float32)
    lm = diag + (1.0 - diag) * lm
    if mask_soft2hard:                                        # static branch
        lm = (lm >= 0.5).astype(jnp.float32)
    mask = lm[:S, :S]                                         # (S, S)

    scale = 1.0 / math.sqrt(d_k)

    # ---- encoder layers (static unroll) --------------------------------------
    for l in range(num_layers):
        y3 = jnp.broadcast_to(y, (H, S, D))                   # (H, S, D)

        # batched per-head projections (weights pre-split host-side)
        qh = jnp.einsum('hsd,hdc->hsc', y3, wq_ref[l],
                        preferred_element_type=jnp.float32)
        qh = (qh + bq_ref[l][:, None, :]) * scale             # fold 1/sqrt(dk)
        kh = jnp.einsum('hsd,hdc->hsc', y3, wk_ref[l],
                        preferred_element_type=jnp.float32) + bk_ref[l][:, None, :]
        vh = jnp.einsum('hsd,hdc->hsc', y3, wv_ref[l],
                        preferred_element_type=jnp.float32) + bv_ref[l][:, None, :]

        # attention scores, softmax (EUP reciprocal), soft mask gating
        scores = jnp.einsum('hqc,hkc->hqk', qh, kh,
                            preferred_element_type=jnp.float32)   # (H, S, S)
        m = jnp.max(scores, axis=-1, keepdims=True)
        e = jnp.exp(scores - m)
        p = e * pl.reciprocal(jnp.sum(e, axis=-1, keepdims=True), approx=True)
        p = p * mask[None, :, :]

        # context and output projection (batched, then head-sum)
        ctx = jnp.einsum('hqk,hkc->hqc', p, vh,
                         preferred_element_type=jnp.float32)      # (H, S, dk)
        att_h = jnp.einsum('hqc,hcd->hqd', ctx, wo_ref[l],
                           preferred_element_type=jnp.float32)    # (H, S, D)
        att = jnp.sum(att_h, axis=0) + bo_ref[l]

        y1 = _layer_norm(y + att, ln1g_ref[l], ln1b_ref[l])

        ff = jnp.dot(y1, w1_ref[l],
                     preferred_element_type=jnp.float32) + b1_ref[l]
        ff = jnp.maximum(ff, 0.0)
        ff = jnp.dot(ff, w2_ref[l],
                     preferred_element_type=jnp.float32) + b2_ref[l]

        y = _layer_norm(y1 + ff, ln2g_ref[l], ln2b_ref[l])

    # ---- truncate to first half of the sequence, inverse fc -------------------
    y_out = y[: S // 2, :]
    o_ref[0] = (jnp.dot(y_out, fc_out_w_ref[...],
                        preferred_element_type=jnp.float32) + fc_out_b_ref[...])


# ------------------------------ full forward -------------------------------- #
def maskformer_forward(input_weight, params, cfg):
    B, S, Din = input_weight.shape
    D = cfg.hidden_size
    H = cfg.num_attention_heads
    d_k = D // H
    L = cfg.num_hidden_layers

    # One-time host-side weight repacking into per-head layouts (plain JAX,
    # constant-folded under jit).  Head h uses columns [h*dk:(h+1)*dk].
    def head_w(w):                       # (D, D) -> (H, D, d_k)
        return w.reshape(D, H, d_k).transpose(1, 0, 2)

    def head_b(b):                       # (1, D) -> (H, d_k)
        return b.reshape(H, d_k)

    def stk(key, fn=lambda a: a):
        return jnp.stack([fn(lp[key]) for lp in params["layers"]])

    wq, bq = stk("wq", head_w), stk("bq", head_b)
    wk, bk = stk("wk", head_w), stk("bk", head_b)
    wv, bv = stk("wv", head_w), stk("bv", head_b)
    wo = stk("wo", lambda w: w.reshape(H, d_k, D))
    bo = stk("bo")
    ln1g, ln1b = stk("ln1_g"), stk("ln1_b")
    w1, b1 = stk("w1"), stk("b1")
    w2, b2 = stk("w2"), stk("b2")
    ln2g, ln2b = stk("ln2_g"), stk("ln2_b")

    kern = functools.partial(
        fused_maskformer_kernel,
        num_layers=L, num_heads=H, d_k=d_k, seq_len=S,
        mask_soft2hard=bool(cfg.mask_soft2hard))

    def rep(a):
        # Whole array resident in VMEM, same block for every grid step.
        shape = tuple(a.shape)
        return pl.BlockSpec(shape, lambda i, _n=len(shape): (0,) * _n)

    out_len = S // 2
    # TODO(synk): shift_flag branch (shift_attention_mask path) not exercised;
    #             cfg.shift_flag is False for this synthetic config.
    return pl.pallas_call(
        kern,
        out_shape=jax.ShapeDtypeStruct((B, out_len, Din), jnp.float32),
        grid=(B,),
        in_specs=[
            pl.BlockSpec((1, S, Din), lambda i: (i, 0, 0)),   # x: per-batch block
            rep(params["learn_mask_w"]),
            rep(params["fc_in_w"]), rep(params["fc_in_b"]),
            rep(params["pos_emb"]), rep(params["ln_g"]), rep(params["ln_b"]),
            rep(wq), rep(bq), rep(wk), rep(bk), rep(wv), rep(bv), rep(wo), rep(bo),
            rep(ln1g), rep(ln1b), rep(w1), rep(b1), rep(w2), rep(b2),
            rep(ln2g), rep(ln2b),
            rep(params["fc_out_w"]), rep(params["fc_out_b"]),
        ],
        out_specs=pl.BlockSpec((1, out_len, Din), lambda i: (i, 0, 0)),
        compiler_params=pltpu.CompilerParams(dimension_semantics=("parallel",)),
    )(input_weight, params["learn_mask_w"],
      params["fc_in_w"], params["fc_in_b"], params["pos_emb"],
      params["ln_g"], params["ln_b"],
      wq, bq, wk, bk, wv, bv, wo, bo,
      ln1g, ln1b, w1, b1, w2, b2, ln2g, ln2b,
      params["fc_out_w"], params["fc_out_b"])


# --------------------------- pure-JAX reference ------------------------------ #
def maskformer_reference(x, params, cfg):
    B, S, _ = x.shape
    D = cfg.hidden_size
    H = cfg.num_attention_heads
    d_k = D // H

    y = jnp.maximum(x @ params["fc_in_w"] + params["fc_in_b"], 0.0)
    y = y + params["pos_emb"][:S]
    y = _layer_norm(y, params["ln_g"], params["ln_b"])

    lm = jax.nn.sigmoid(params["learn_mask_w"])
    diag = jnp.eye(cfg.max_position_embeddings, dtype=jnp.float32)
    lm = diag + (1.0 - diag) * lm
    if cfg.mask_soft2hard:
        lm = (lm >= 0.5).astype(jnp.float32)
    mask = lm[:S, :S]

    for lp in params["layers"]:
        q = (y @ lp["wq"] + lp["bq"]).reshape(B, S, H, d_k).transpose(0, 2, 1, 3)
        k = (y @ lp["wk"] + lp["bk"]).reshape(B, S, H, d_k).transpose(0, 2, 1, 3)
        v = (y @ lp["wv"] + lp["bv"]).reshape(B, S, H, d_k).transpose(0, 2, 1, 3)
        scores = jnp.einsum("bhqd,bhkd->bhqk", q, k) / math.sqrt(d_k)
        p = jax.nn.softmax(scores, axis=-1) * mask
        ctx = jnp.einsum("bhqk,bhkd->bhqd", p, v).transpose(0, 2, 1, 3).reshape(B, S, D)
        att = ctx @ lp["wo"] + lp["bo"]
        y1 = _layer_norm(y + att, lp["ln1_g"], lp["ln1_b"])
        ff = jnp.maximum(y1 @ lp["w1"] + lp["b1"], 0.0) @ lp["w2"] + lp["b2"]
        y = _layer_norm(y1 + ff, lp["ln2_g"], lp["ln2_b"])

    y = y[:, : S // 2, :]
    return y @ params["fc_out_w"] + params["fc_out_b"]


# ------------------------------ param init ----------------------------------- #
def init_params(cfg, in_dim, key):
    D, F, P = cfg.hidden_size, cfg.intermediate_size, cfg.max_position_embeddings
    keys = iter(jax.random.split(key, 64))

    def nrm(shape, scale=0.05):
        return scale * jax.random.normal(next(keys), shape, dtype=jnp.float32)

    params = {
        "fc_in_w": nrm((in_dim, D)), "fc_in_b": nrm((1, D)),
        "fc_out_w": nrm((D, in_dim)), "fc_out_b": nrm((1, in_dim)),
        "pos_emb": nrm((P, D)),
        "ln_g": jnp.ones((1, D), jnp.float32), "ln_b": jnp.zeros((1, D), jnp.float32),
        "learn_mask_w": nrm((P, P), scale=1.0),   # nn.Embedding(P*P, 1) reshaped
        "layers": [],
    }
    for _ in range(cfg.num_hidden_layers):
        params["layers"].append({
            "wq": nrm((D, D)), "bq": nrm((1, D)),
            "wk": nrm((D, D)), "bk": nrm((1, D)),
            "wv": nrm((D, D)), "bv": nrm((1, D)),
            "wo": nrm((D, D)), "bo": nrm((1, D)),
            "ln1_g": jnp.ones((1, D), jnp.float32), "ln1_b": jnp.zeros((1, D), jnp.float32),
            "w1": nrm((D, F)), "b1": nrm((1, F)),
            "w2": nrm((F, D)), "b2": nrm((1, D)),
            "ln2_g": jnp.ones((1, D), jnp.float32), "ln2_b": jnp.zeros((1, D), jnp.float32),
        })
    return params


# --------------------------------- main --------------------------------------- #
if __name__ == "__main__":
    cfg = Config()
    named_layer = list(cfg.weight_dict.keys())[0]
    in_dim = cfg.weight_dict[named_layer][1]     # 16
    bsz, seq_len = 2, 8

    key = jax.random.PRNGKey(0)
    k_x, k_p = jax.random.split(key)
    input_weight = jax.random.normal(k_x, (bsz, seq_len, in_dim), dtype=jnp.float32)
    params = init_params(cfg, in_dim, k_p)

    fwd = jax.jit(functools.partial(maskformer_forward, cfg=cfg))
    out = jax.block_until_ready(fwd(input_weight, params))

    ref = jax.block_until_ready(maskformer_reference(input_weight, params, cfg))
    assert out.shape == (bsz, seq_len // 2, in_dim), out.shape
    assert jnp.allclose(out, ref, rtol=5e-2, atol=5e-2), float(jnp.max(jnp.abs(out - ref)))

    print("KERNEL_OK")
</pallas_src>

<mosaic_0001>
module attributes {stable_mosaic.version = 11 : i64} {
  func.func @fused_maskformer_kernel(%arg0: i32, %arg1: memref<1x8x16xf32, #tpu.memory_space<vmem>>, %arg2: memref<16x16xf32, #tpu.memory_space<vmem>>, %arg3: memref<16x32xf32, #tpu.memory_space<vmem>>, %arg4: memref<1x32xf32, #tpu.memory_space<vmem>>, %arg5: memref<16x32xf32, #tpu.memory_space<vmem>>, %arg6: memref<1x32xf32, #tpu.memory_space<vmem>>, %arg7: memref<1x32xf32, #tpu.memory_space<vmem>>, %arg8: memref<2x4x32x8xf32, #tpu.memory_space<vmem>>, %arg9: memref<2x4x8xf32, #tpu.memory_space<vmem>>, %arg10: memref<2x4x32x8xf32, #tpu.memory_space<vmem>>, %arg11: memref<2x4x8xf32, #tpu.memory_space<vmem>>, %arg12: memref<2x4x32x8xf32, #tpu.memory_space<vmem>>, %arg13: memref<2x4x8xf32, #tpu.memory_space<vmem>>, %arg14: memref<2x4x8x32xf32, #tpu.memory_space<vmem>>, %arg15: memref<2x1x32xf32, #tpu.memory_space<vmem>>, %arg16: memref<2x1x32xf32, #tpu.memory_space<vmem>>, %arg17: memref<2x1x32xf32, #tpu.memory_space<vmem>>, %arg18: memref<2x32x64xf32, #tpu.memory_space<vmem>>, %arg19: memref<2x1x64xf32, #tpu.memory_space<vmem>>, %arg20: memref<2x64x32xf32, #tpu.memory_space<vmem>>, %arg21: memref<2x1x32xf32, #tpu.memory_space<vmem>>, %arg22: memref<2x1x32xf32, #tpu.memory_space<vmem>>, %arg23: memref<2x1x32xf32, #tpu.memory_space<vmem>>, %arg24: memref<32x16xf32, #tpu.memory_space<vmem>>, %arg25: memref<1x16xf32, #tpu.memory_space<vmem>>, %arg26: memref<1x4x16xf32, #tpu.memory_space<vmem>>) attributes {dimension_semantics = [#tpu.dimension_semantics<parallel>], iteration_bounds = array<i64: 2>, scalar_prefetch = 0 : i64, scratch_operands = 0 : i64, tpu.core_type = #tpu.core_type<tc>, window_params = [{transform_indices = @transform_0, window_bounds = array<i64: 1, 8, 16>}, {pipeline_mode = #tpu.pipeline_mode<synchronous>, transform_indices = @transform_1, window_bounds = array<i64: 16, 16>}, {pipeline_mode = #tpu.pipeline_mode<synchronous>, transform_indices = @transform_2, window_bounds = array<i64: 16, 32>}, {pipeline_mode = #tpu.pipeline_mode<synchronous>, transform_indices = @transform_3, window_bounds = array<i64: 1, 32>}, {pipeline_mode = #tpu.pipeline_mode<synchronous>, transform_indices = @transform_4, window_bounds = array<i64: 16, 32>}, {pipeline_mode = #tpu.pipeline_mode<synchronous>, transform_indices = @transform_5, window_bounds = array<i64: 1, 32>}, {pipeline_mode = #tpu.pipeline_mode<synchronous>, transform_indices = @transform_6, window_bounds = array<i64: 1, 32>}, {pipeline_mode = #tpu.pipeline_mode<synchronous>, transform_indices = @transform_7, window_bounds = array<i64: 2, 4, 32, 8>}, {pipeline_mode = #tpu.pipeline_mode<synchronous>, transform_indices = @transform_8, window_bounds = array<i64: 2, 4, 8>}, {pipeline_mode = #tpu.pipeline_mode<synchronous>, transform_indices = @transform_9, window_bounds = array<i64: 2, 4, 32, 8>}, {pipeline_mode = #tpu.pipeline_mode<synchronous>, transform_indices = @transform_10, window_bounds = array<i64: 2, 4, 8>}, {pipeline_mode = #tpu.pipeline_mode<synchronous>, transform_indices = @transform_11, window_bounds = array<i64: 2, 4, 32, 8>}, {pipeline_mode = #tpu.pipeline_mode<synchronous>, transform_indices = @transform_12, window_bounds = array<i64: 2, 4, 8>}, {pipeline_mode = #tpu.pipeline_mode<synchronous>, transform_indices = @transform_13, window_bounds = array<i64: 2, 4, 8, 32>}, {pipeline_mode = #tpu.pipeline_mode<synchronous>, transform_indices = @transform_14, window_bounds = array<i64: 2, 1, 32>}, {pipeline_mode = #tpu.pipeline_mode<synchronous>, transform_indices = @transform_15, window_bounds = array<i64: 2, 1, 32>}, {pipeline_mode = #tpu.pipeline_mode<synchronous>, transform_indices = @transform_16, window_bounds = array<i64: 2, 1, 32>}, {pipeline_mode = #tpu.pipeline_mode<synchronous>, transform_indices = @transform_17, window_bounds = array<i64: 2, 32, 64>}, {pipeline_mode = #tpu.pipeline_mode<synchronous>, transform_indices = @transform_18, window_bounds = array<i64: 2, 1, 64>}, {pipeline_mode = #tpu.pipeline_mode<synchronous>, transform_indices = @transform_19, window_bounds = array<i64: 2, 64, 32>}, {pipeline_mode = #tpu.pipeline_mode<synchronous>, transform_indices = @transform_20, window_bounds = array<i64: 2, 1, 32>}, {pipeline_mode = #tpu.pipeline_mode<synchronous>, transform_indices = @transform_21, window_bounds = array<i64: 2, 1, 32>}, {pipeline_mode = #tpu.pipeline_mode<synchronous>, transform_indices = @transform_22, window_bounds = array<i64: 2, 1, 32>}, {pipeline_mode = #tpu.pipeline_mode<synchronous>, transform_indices = @transform_23, window_bounds = array<i64: 32, 16>}, {pipeline_mode = #tpu.pipeline_mode<synchronous>, transform_indices = @transform_24, window_bounds = array<i64: 1, 16>}, {transform_indices = @transform_25, window_bounds = array<i64: 1, 4, 16>}]} {
    %c0 = arith.constant 0 : index
    %c0_0 = arith.constant 0 : index
    %c0_1 = arith.constant 0 : index
    %0 = vector.load %arg1[%c0, %c0_0, %c0_1] : memref<1x8x16xf32, #tpu.memory_space<vmem>>, vector<1x8x16xf32>
    %1 = vector.shape_cast %0 : vector<1x8x16xf32> to vector<8x16xf32>
    %c0_2 = arith.constant 0 : index
    %c0_3 = arith.constant 0 : index
    %2 = vector.load %arg3[%c0_2, %c0_3] : memref<16x32xf32, #tpu.memory_space<vmem>>, vector<16x32xf32>
    %cst = arith.constant dense<0.000000e+00> : vector<8x32xf32>
    %3 = tpu.matmul %1, %2, %cst {dimension_numbers = #tpu.dot_dimension_numbers<[1], [0], [0], [1], [0, 0, 1, 1], [], []>} : vector<8x16xf32>, vector<16x32xf32>, vector<8x32xf32> -> vector<8x32xf32>
    %c0_4 = arith.constant 0 : index
    %c0_5 = arith.constant 0 : index
    %4 = vector.load %arg4[%c0_4, %c0_5] : memref<1x32xf32, #tpu.memory_space<vmem>>, vector<1x32xf32>
    %5 = vector.broadcast %4 : vector<1x32xf32> to vector<8x32xf32>
    %6 = arith.addf %3, %5 : vector<8x32xf32>
    %cst_6 = arith.constant 0.000000e+00 : f32
    %7 = vector.broadcast %cst_6 : f32 to vector<8x32xf32>
    %8 = arith.maximumf %6, %7 : vector<8x32xf32>
    %c0_7 = arith.constant 0 : index
    %c0_8 = arith.constant 0 : index
    %9 = vector.load %arg5[%c0_7, %c0_8] : memref<16x32xf32, #tpu.memory_space<vmem>>, vector<16x32xf32>
    %10 = vector.extract_strided_slice %9 {offsets = [0, 0], sizes = [8, 32], strides = [1, 1]} : vector<16x32xf32> to vector<8x32xf32>
    %11 = arith.addf %8, %10 : vector<8x32xf32>
    %c0_9 = arith.constant 0 : index
    %c0_10 = arith.constant 0 : index
    %12 = vector.load %arg6[%c0_9, %c0_10] : memref<1x32xf32, #tpu.memory_space<vmem>>, vector<1x32xf32>
    %c0_11 = arith.constant 0 : index
    %c0_12 = arith.constant 0 : index
    %13 = vector.load %arg7[%c0_11, %c0_12] : memref<1x32xf32, #tpu.memory_space<vmem>>, vector<1x32xf32>
    %cst_13 = arith.constant dense<0.000000e+00> : vector<8xf32>
    %14 = vector.multi_reduction <add>, %11, %cst_13 [1] : vector<8x32xf32> to vector<8xf32>
    %15 = vector.shape_cast %14 : vector<8xf32> to vector<8x1xf32>
    %cst_14 = arith.constant 3.200000e+01 : f32
    %16 = vector.broadcast %cst_14 : f32 to vector<8x1xf32>
    %17 = arith.divf %15, %16 : vector<8x1xf32>
    %18 = vector.broadcast %17 : vector<8x1xf32> to vector<8x32xf32>
    %19 = arith.subf %11, %18 : vector<8x32xf32>
    %20 = arith.mulf %19, %19 : vector<8x32xf32>
    %cst_15 = arith.constant dense<0.000000e+00> : vector<8xf32>
    %21 = vector.multi_reduction <add>, %20, %cst_15 [1] : vector<8x32xf32> to vector<8xf32>
    %22 = vector.shape_cast %21 : vector<8xf32> to vector<8x1xf32>
    %cst_16 = arith.constant 3.200000e+01 : f32
    %23 = vector.broadcast %cst_16 : f32 to vector<8x1xf32>
    %24 = arith.divf %22, %23 : vector<8x1xf32>
    %25 = vector.broadcast %17 : vector<8x1xf32> to vector<8x32xf32>
    %26 = arith.subf %11, %25 : vector<8x32xf32>
    %cst_17 = arith.constant 9.99999974E-6 : f32
    %27 = vector.broadcast %cst_17 : f32 to vector<8x1xf32>
    %28 = arith.addf %24, %27 : vector<8x1xf32>
    %29 = math.rsqrt %28 : vector<8x1xf32>
    %30 = vector.broadcast %29 : vector<8x1xf32> to vector<8x32xf32>
    %31 = arith.mulf %26, %30 : vector<8x32xf32>
    %32 = vector.broadcast %12 : vector<1x32xf32> to vector<8x32xf32>
    %33 = arith.mulf %31, %32 : vector<8x32xf32>
    %34 = vector.broadcast %13 : vector<1x32xf32> to vector<8x32xf32>
    %35 = arith.addf %33, %34 : vector<8x32xf32>
    %c0_18 = arith.constant 0 : index
    %c0_19 = arith.constant 0 : index
    %36 = vector.load %arg2[%c0_18, %c0_19] : memref<16x16xf32, #tpu.memory_space<vmem>>, vector<16x16xf32>
    %37 = arith.negf %36 : vector<16x16xf32>
    %38 = math.exp %37 : vector<16x16xf32>
    %cst_20 = arith.constant 1.000000e+00 : f32
    %39 = vector.broadcast %cst_20 : f32 to vector<16x16xf32>
    %40 = arith.addf %39, %38 : vector<16x16xf32>
    %41 = arith.divf %39, %40 : vector<16x16xf32>
    %42 = tpu.iota {dimensions = array<i32: 0>} : vector<16x16xi32>
    %43 = tpu.iota {dimensions = array<i32: 1>} : vector<16x16xi32>
    %44 = arith.cmpi eq, %42, %43 : vector<16x16xi32>
    %45 = arith.extui %44 : vector<16x16xi1> to vector<16x16xi32>
    %46 = arith.sitofp %45 : vector<16x16xi32> to vector<16x16xf32>
    %cst_21 = arith.constant 1.000000e+00 : f32
    %47 = vector.broadcast %cst_21 : f32 to vector<16x16xf32>
    %48 = arith.subf %47, %46 : vector<16x16xf32>
    %49 = arith.mulf %48, %41 : vector<16x16xf32>
    %50 = arith.addf %46, %49 : vector<16x16xf32>
    %51 = vector.extract_strided_slice %50 {offsets = [0, 0], sizes = [8, 8], strides = [1, 1]} : vector<16x16xf32> to vector<8x8xf32>
    %52 = vector.shape_cast %35 : vector<8x32xf32> to vector<1x8x32xf32>
    %53 = vector.broadcast %52 : vector<1x8x32xf32> to vector<4x8x32xf32>
    %c0_22 = arith.constant 0 : index
    %c0_23 = arith.constant 0 : index
    %c0_24 = arith.constant 0 : index
    %c0_25 = arith.constant 0 : index
    %54 = vector.load %arg8[%c0_22, %c0_23, %c0_24, %c0_25] : memref<2x4x32x8xf32, #tpu.memory_space<vmem>>, vector<1x4x32x8xf32>
    %55 = vector.shape_cast %54 : vector<1x4x32x8xf32> to vector<4x32x8xf32>
    "tpu.trace_start"() <{level = 10 : i32, message = "hsd,hdc->hsc"}> : () -> ()
    %cst_26 = arith.constant dense<0.000000e+00> : vector<4x8x8xf32>
    %56 = tpu.matmul %53, %55, %cst_26 {dimension_numbers = #tpu.dot_dimension_numbers<[2], [1], [1], [2], [0, 0, 0, 1, 1, 2], [0], [0]>} : vector<4x8x32xf32>, vector<4x32x8xf32>, vector<4x8x8xf32> -> vector<4x8x8xf32>
    "tpu.trace_stop"() : () -> ()
    %c0_27 = arith.constant 0 : index
    %c0_28 = arith.constant 0 : index
    %c0_29 = arith.constant 0 : index
    %57 = vector.load %arg9[%c0_27, %c0_28, %c0_29] : memref<2x4x8xf32, #tpu.memory_space<vmem>>, vector<1x4x8xf32>
    %58 = vector.shape_cast %57 : vector<1x4x8xf32> to vector<4x8xf32>
    %59 = vector.shape_cast %58 : vector<4x8xf32> to vector<4x1x8xf32>
    %60 = vector.broadcast %59 : vector<4x1x8xf32> to vector<4x8x8xf32>
    %61 = arith.addf %56, %60 : vector<4x8x8xf32>
    %cst_30 = arith.constant 0.353553385 : f32
    %62 = vector.broadcast %cst_30 : f32 to vector<4x8x8xf32>
    %63 = arith.mulf %61, %62 : vector<4x8x8xf32>
    %c0_31 = arith.constant 0 : index
    %c0_32 = arith.constant 0 : index
    %c0_33 = arith.constant 0 : index
    %c0_34 = arith.constant 0 : index
    %64 = vector.load %arg10[%c0_31, %c0_32, %c0_33, %c0_34] : memref<2x4x32x8xf32, #tpu.memory_space<vmem>>, vector<1x4x32x8xf32>
    %65 = vector.shape_cast %64 : vector<1x4x32x8xf32> to vector<4x32x8xf32>
    "tpu.trace_start"() <{level = 10 : i32, message = "hsd,hdc->hsc"}> : () -> ()
    %cst_35 = arith.constant dense<0.000000e+00> : vector<4x8x8xf32>
    %66 = tpu.matmul %53, %65, %cst_35 {dimension_numbers = #tpu.dot_dimension_numbers<[2], [1], [1], [2], [0, 0, 0, 1, 1, 2], [0], [0]>} : vector<4x8x32xf32>, vector<4x32x8xf32>, vector<4x8x8xf32> -> vector<4x8x8xf32>
    "tpu.trace_stop"() : () -> ()
    %c0_36 = arith.constant 0 : index
    %c0_37 = arith.constant 0 : index
    %c0_38 = arith.constant 0 : index
    %67 = vector.load %arg11[%c0_36, %c0_37, %c0_38] : memref<2x4x8xf32, #tpu.memory_space<vmem>>, vector<1x4x8xf32>
    %68 = vector.shape_cast %67 : vector<1x4x8xf32> to vector<4x8xf32>
    %69 = vector.shape_cast %68 : vector<4x8xf32> to vector<4x1x8xf32>
    %70 = vector.broadcast %69 : vector<4x1x8xf32> to vector<4x8x8xf32>
    %71 = arith.addf %66, %70 : vector<4x8x8xf32>
    %c0_39 = arith.constant 0 : index
    %c0_40 = arith.constant 0 : index
    %c0_41 = arith.constant 0 : index
    %c0_42 = arith.constant 0 : index
    %72 = vector.load %arg12[%c0_39, %c0_40, %c0_41, %c0_42] : memref<2x4x32x8xf32, #tpu.memory_space<vmem>>, vector<1x4x32x8xf32>
    %73 = vector.shape_cast %72 : vector<1x4x32x8xf32> to vector<4x32x8xf32>
    "tpu.trace_start"() <{level = 10 : i32, message = "hsd,hdc->hsc"}> : () -> ()
    %cst_43 = arith.constant dense<0.000000e+00> : vector<4x8x8xf32>
    %74 = tpu.matmul %53, %73, %cst_43 {dimension_numbers = #tpu.dot_dimension_numbers<[2], [1], [1], [2], [0, 0, 0, 1, 1, 2], [0], [0]>} : vector<4x8x32xf32>, vector<4x32x8xf32>, vector<4x8x8xf32> -> vector<4x8x8xf32>
    "tpu.trace_stop"() : () -> ()
    %c0_44 = arith.constant 0 : index
    %c0_45 = arith.constant 0 : index
    %c0_46 = arith.constant 0 : index
    %75 = vector.load %arg13[%c0_44, %c0_45, %c0_46] : memref<2x4x8xf32, #tpu.memory_space<vmem>>, vector<1x4x8xf32>
    %76 = vector.shape_cast %75 : vector<1x4x8xf32> to vector<4x8xf32>
    %77 = vector.shape_cast %76 : vector<4x8xf32> to vector<4x1x8xf32>
    %78 = vector.broadcast %77 : vector<4x1x8xf32> to vector<4x8x8xf32>
    %79 = arith.addf %74, %78 : vector<4x8x8xf32>
    "tpu.trace_start"() <{level = 10 : i32, message = "hqc,hkc->hqk"}> : () -> ()
    %cst_47 = arith.constant dense<0.000000e+00> : vector<4x8x8xf32>
    %80 = tpu.matmul %63, %71, %cst_47 {dimension_numbers = #tpu.dot_dimension_numbers<[2], [2], [1], [1], [0, 0, 0, 1, 1, 1], [0], [0]>} : vector<4x8x8xf32>, vector<4x8x8xf32>, vector<4x8x8xf32> -> vector<4x8x8xf32>
    "tpu.trace_stop"() : () -> ()
    %cst_48 = arith.constant dense<0xFF800000> : vector<4x8xf32>
    %81 = vector.multi_reduction <maximumf>, %80, %cst_48 [2] : vector<4x8x8xf32> to vector<4x8xf32>
    %82 = vector.shape_cast %81 : vector<4x8xf32> to vector<4x8x1xf32>
    %83 = vector.broadcast %82 : vector<4x8x1xf32> to vector<4x8x8xf32>
    %84 = arith.subf %80, %83 : vector<4x8x8xf32>
    %85 = math.exp %84 : vector<4x8x8xf32>
    %cst_49 = arith.constant dense<0.000000e+00> : vector<4x8xf32>
    %86 = vector.multi_reduction <add>, %85, %cst_49 [2] : vector<4x8x8xf32> to vector<4x8xf32>
    %87 = vector.shape_cast %86 : vector<4x8xf32> to vector<4x8x1xf32>
    %88 = tpu.reciprocal %87 {approx = true} : vector<4x8x1xf32> -> vector<4x8x1xf32>
    %89 = vector.broadcast %88 : vector<4x8x1xf32> to vector<4x8x8xf32>
    %90 = arith.mulf %85, %89 : vector<4x8x8xf32>
    %91 = vector.shape_cast %51 : vector<8x8xf32> to vector<1x8x8xf32>
    %92 = vector.broadcast %91 : vector<1x8x8xf32> to vector<4x8x8xf32>
    %93 = arith.mulf %90, %92 : vector<4x8x8xf32>
    "tpu.trace_start"() <{level = 10 : i32, message = "hqk,hkc->hqc"}> : () -> ()
    %cst_50 = arith.constant dense<0.000000e+00> : vector<4x8x8xf32>
    %94 = tpu.matmul %93, %79, %cst_50 {dimension_numbers = #tpu.dot_dimension_numbers<[2], [1], [1], [2], [0, 0, 0, 1, 1, 2], [0], [0]>} : vector<4x8x8xf32>, vector<4x8x8xf32>, vector<4x8x8xf32> -> vector<4x8x8xf32>
    "tpu.trace_stop"() : () -> ()
    %c0_51 = arith.constant 0 : index
    %c0_52 = arith.constant 0 : index
    %c0_53 = arith.constant 0 : index
    %c0_54 = arith.constant 0 : index
    %95 = vector.load %arg14[%c0_51, %c0_52, %c0_53, %c0_54] : memref<2x4x8x32xf32, #tpu.memory_space<vmem>>, vector<1x4x8x32xf32>
    %96 = vector.shape_cast %95 : vector<1x4x8x32xf32> to vector<4x8x32xf32>
    "tpu.trace_start"() <{level = 10 : i32, message = "hqc,hcd->hqd"}> : () -> ()
    %cst_55 = arith.constant dense<0.000000e+00> : vector<4x8x32xf32>
    %97 = tpu.matmul %94, %96, %cst_55 {dimension_numbers = #tpu.dot_dimension_numbers<[2], [1], [1], [2], [0, 0, 0, 1, 1, 2], [0], [0]>} : vector<4x8x8xf32>, vector<4x8x32xf32>, vector<4x8x32xf32> -> vector<4x8x32xf32>
    "tpu.trace_stop"() : () -> ()
    %cst_56 = arith.constant dense<0.000000e+00> : vector<8x32xf32>
    %98 = vector.multi_reduction <add>, %97, %cst_56 [0] : vector<4x8x32xf32> to vector<8x32xf32>
    %c0_57 = arith.constant 0 : index
    %c0_58 = arith.constant 0 : index
    %c0_59 = arith.constant 0 : index
    %99 = vector.load %arg15[%c0_57, %c0_58, %c0_59] : memref<2x1x32xf32, #tpu.memory_space<vmem>>, vector<1x1x32xf32>
    %100 = vector.shape_cast %99 : vector<1x1x32xf32> to vector<1x32xf32>
    %101 = vector.broadcast %100 : vector<1x32xf32> to vector<8x32xf32>
    %102 = arith.addf %98, %101 : vector<8x32xf32>
    %103 = arith.addf %35, %102 : vector<8x32xf32>
    %c0_60 = arith.constant 0 : index
    %c0_61 = arith.constant 0 : index
    %c0_62 = arith.constant 0 : index
    %104 = vector.load %arg16[%c0_60, %c0_61, %c0_62] : memref<2x1x32xf32, #tpu.memory_space<vmem>>, vector<1x1x32xf32>
    %105 = vector.shape_cast %104 : vector<1x1x32xf32> to vector<1x32xf32>
    %c0_63 = arith.constant 0 : index
    %c0_64 = arith.constant 0 : index
    %c0_65 = arith.constant 0 : index
    %106 = vector.load %arg17[%c0_63, %c0_64, %c0_65] : memref<2x1x32xf32, #tpu.memory_space<vmem>>, vector<1x1x32xf32>
    %107 = vector.shape_cast %106 : vector<1x1x32xf32> to vector<1x32xf32>
    %cst_66 = arith.constant dense<0.000000e+00> : vector<8xf32>
    %108 = vector.multi_reduction <add>, %103, %cst_66 [1] : vector<8x32xf32> to vector<8xf32>
    %109 = vector.shape_cast %108 : vector<8xf32> to vector<8x1xf32>
    %cst_67 = arith.constant 3.200000e+01 : f32
    %110 = vector.broadcast %cst_67 : f32 to vector<8x1xf32>
    %111 = arith.divf %109, %110 : vector<8x1xf32>
    %112 = vector.broadcast %111 : vector<8x1xf32> to vector<8x32xf32>
    %113 = arith.subf %103, %112 : vector<8x32xf32>
    %114 = arith.mulf %113, %113 : vector<8x32xf32>
    %cst_68 = arith.constant dense<0.000000e+00> : vector<8xf32>
    %115 = vector.multi_reduction <add>, %114, %cst_68 [1] : vector<8x32xf32> to vector<8xf32>
    %116 = vector.shape_cast %115 : vector<8xf32> to vector<8x1xf32>
    %cst_69 = arith.constant 3.200000e+01 : f32
    %117 = vector.broadcast %cst_69 : f32 to vector<8x1xf32>
    %118 = arith.divf %116, %117 : vector<8x1xf32>
    %119 = vector.broadcast %111 : vector<8x1xf32> to vector<8x32xf32>
    %120 = arith.subf %103, %119 : vector<8x32xf32>
    %cst_70 = arith.constant 9.99999974E-6 : f32
    %121 = vector.broadcast %cst_70 : f32 to vector<8x1xf32>
    %122 = arith.addf %118, %121 : vector<8x1xf32>
    %123 = math.rsqrt %122 : vector<8x1xf32>
    %124 = vector.broadcast %123 : vector<8x1xf32> to vector<8x32xf32>
    %125 = arith.mulf %120, %124 : vector<8x32xf32>
    %126 = vector.broadcast %105 : vector<1x32xf32> to vector<8x32xf32>
    %127 = arith.mulf %125, %126 : vector<8x32xf32>
    %128 = vector.broadcast %107 : vector<1x32xf32> to vector<8x32xf32>
    %129 = arith.addf %127, %128 : vector<8x32xf32>
    %c0_71 = arith.constant 0 : index
    %c0_72 = arith.constant 0 : index
    %c0_73 = arith.constant 0 : index
    %130 = vector.load %arg18[%c0_71, %c0_72, %c0_73] : memref<2x32x64xf32, #tpu.memory_space<vmem>>, vector<1x32x64xf32>
    %131 = vector.shape_cast %130 : vector<1x32x64xf32> to vector<32x64xf32>
    %cst_74 = arith.constant dense<0.000000e+00> : vector<8x64xf32>
    %132 = tpu.matmul %129, %131, %cst_74 {dimension_numbers = #tpu.dot_dimension_numbers<[1], [0], [0], [1], [0, 0, 1, 1], [], []>} : vector<8x32xf32>, vector<32x64xf32>, vector<8x64xf32> -> vector<8x64xf32>
    %c0_75 = arith.constant 0 : index
    %c0_76 = arith.constant 0 : index
    %c0_77 = arith.constant 0 : index
    %133 = vector.load %arg19[%c0_75, %c0_76, %c0_77] : memref<2x1x64xf32, #tpu.memory_space<vmem>>, vector<1x1x64xf32>
    %134 = vector.shape_cast %133 : vector<1x1x64xf32> to vector<1x64xf32>
    %135 = vector.broadcast %134 : vector<1x64xf32> to vector<8x64xf32>
    %136 = arith.addf %132, %135 : vector<8x64xf32>
    %cst_78 = arith.constant 0.000000e+00 : f32
    %137 = vector.broadcast %cst_78 : f32 to vector<8x64xf32>
    %138 = arith.maximumf %136, %137 : vector<8x64xf32>
    %c0_79 = arith.constant 0 : index
    %c0_80 = arith.constant 0 : index
    %c0_81 = arith.constant 0 : index
    %139 = vector.load %arg20[%c0_79, %c0_80, %c0_81] : memref<2x64x32xf32, #tpu.memory_space<vmem>>, vector<1x64x32xf32>
    %140 = vector.shape_cast %139 : vector<1x64x32xf32> to vector<64x32xf32>
    %cst_82 = arith.constant dense<0.000000e+00> : vector<8x32xf32>
    %141 = tpu.matmul %138, %140, %cst_82 {dimension_numbers = #tpu.dot_dimension_numbers<[1], [0], [0], [1], [0, 0, 1, 1], [], []>} : vector<8x64xf32>, vector<64x32xf32>, vector<8x32xf32> -> vector<8x32xf32>
    %c0_83 = arith.constant 0 : index
    %c0_84 = arith.constant 0 : index
    %c0_85 = arith.constant 0 : index
    %142 = vector.load %arg21[%c0_83, %c0_84, %c0_85] : memref<2x1x32xf32, #tpu.memory_space<vmem>>, vector<1x1x32xf32>
    %143 = vector.shape_cast %142 : vector<1x1x32xf32> to vector<1x32xf32>
    %144 = vector.broadcast %143 : vector<1x32xf32> to vector<8x32xf32>
    %145 = arith.addf %141, %144 : vector<8x32xf32>
    %146 = arith.addf %129, %145 : vector<8x32xf32>
    %c0_86 = arith.constant 0 : index
    %c0_87 = arith.constant 0 : index
    %c0_88 = arith.constant 0 : index
    %147 = vector.load %arg22[%c0_86, %c0_87, %c0_88] : memref<2x1x32xf32, #tpu.memory_space<vmem>>, vector<1x1x32xf32>
    %148 = vector.shape_cast %147 : vector<1x1x32xf32> to vector<1x32xf32>
    %c0_89 = arith.constant 0 : index
    %c0_90 = arith.constant 0 : index
    %c0_91 = arith.constant 0 : index
    %149 = vector.load %arg23[%c0_89, %c0_90, %c0_91] : memref<2x1x32xf32, #tpu.memory_space<vmem>>, vector<1x1x32xf32>
    %150 = vector.shape_cast %149 : vector<1x1x32xf32> to vector<1x32xf32>
    %cst_92 = arith.constant dense<0.000000e+00> : vector<8xf32>
    %151 = vector.multi_reduction <add>, %146, %cst_92 [1] : vector<8x32xf32> to vector<8xf32>
    %152 = vector.shape_cast %151 : vector<8xf32> to vector<8x1xf32>
    %cst_93 = arith.constant 3.200000e+01 : f32
    %153 = vector.broadcast %cst_93 : f32 to vector<8x1xf32>
    %154 = arith.divf %152, %153 : vector<8x1xf32>
    %155 = vector.broadcast %154 : vector<8x1xf32> to vector<8x32xf32>
    %156 = arith.subf %146, %155 : vector<8x32xf32>
    %157 = arith.mulf %156, %156 : vector<8x32xf32>
    %cst_94 = arith.constant dense<0.000000e+00> : vector<8xf32>
    %158 = vector.multi_reduction <add>, %157, %cst_94 [1] : vector<8x32xf32> to vector<8xf32>
    %159 = vector.shape_cast %158 : vector<8xf32> to vector<8x1xf32>
    %cst_95 = arith.constant 3.200000e+01 : f32
    %160 = vector.broadcast %cst_95 : f32 to vector<8x1xf32>
    %161 = arith.divf %159, %160 : vector<8x1xf32>
    %162 = vector.broadcast %154 : vector<8x1xf32> to vector<8x32xf32>
    %163 = arith.subf %146, %162 : vector<8x32xf32>
    %cst_96 = arith.constant 9.99999974E-6 : f32
    %164 = vector.broadcast %cst_96 : f32 to vector<8x1xf32>
    %165 = arith.addf %161, %164 : vector<8x1xf32>
    %166 = math.rsqrt %165 : vector<8x1xf32>
    %167 = vector.broadcast %166 : vector<8x1xf32> to vector<8x32xf32>
    %168 = arith.mulf %163, %167 : vector<8x32xf32>
    %169 = vector.broadcast %148 : vector<1x32xf32> to vector<8x32xf32>
    %170 = arith.mulf %168, %169 : vector<8x32xf32>
    %171 = vector.broadcast %150 : vector<1x32xf32> to vector<8x32xf32>
    %172 = arith.addf %170, %171 : vector<8x32xf32>
    %173 = vector.shape_cast %172 : vector<8x32xf32> to vector<1x8x32xf32>
    %174 = vector.broadcast %173 : vector<1x8x32xf32> to vector<4x8x32xf32>
    %c1 = arith.constant 1 : index
    %c0_97 = arith.constant 0 : index
    %c0_98 = arith.constant 0 : index
    %c0_99 = arith.constant 0 : index
    %175 = vector.load %arg8[%c1, %c0_97, %c0_98, %c0_99] : memref<2x4x32x8xf32, #tpu.memory_space<vmem>>, vector<1x4x32x8xf32>
    %176 = vector.shape_cast %175 : vector<1x4x32x8xf32> to vector<4x32x8xf32>
    "tpu.trace_start"() <{level = 10 : i32, message = "hsd,hdc->hsc"}> : () -> ()
    %cst_100 = arith.constant dense<0.000000e+00> : vector<4x8x8xf32>
    %177 = tpu.matmul %174, %176, %cst_100 {dimension_numbers = #tpu.dot_dimension_numbers<[2], [1], [1], [2], [0, 0, 0, 1, 1, 2], [0], [0]>} : vector<4x8x32xf32>, vector<4x32x8xf32>, vector<4x8x8xf32> -> vector<4x8x8xf32>
    "tpu.trace_stop"() : () -> ()
    %c1_101 = arith.constant 1 : index
    %c0_102 = arith.constant 0 : index
    %c0_103 = arith.constant 0 : index
    %178 = vector.load %arg9[%c1_101, %c0_102, %c0_103] : memref<2x4x8xf32, #tpu.memory_space<vmem>>, vector<1x4x8xf32>
    %179 = vector.shape_cast %178 : vector<1x4x8xf32> to vector<4x8xf32>
    %180 = vector.shape_cast %179 : vector<4x8xf32> to vector<4x1x8xf32>
    %181 = vector.broadcast %180 : vector<4x1x8xf32> to vector<4x8x8xf32>
    %182 = arith.addf %177, %181 : vector<4x8x8xf32>
    %cst_104 = arith.constant 0.353553385 : f32
    %183 = vector.broadcast %cst_104 : f32 to vector<4x8x8xf32>
    %184 = arith.mulf %182, %183 : vector<4x8x8xf32>
    %c1_105 = arith.constant 1 : index
    %c0_106 = arith.constant 0 : index
    %c0_107 = arith.constant 0 : index
    %c0_108 = arith.constant 0 : index
    %185 = vector.load %arg10[%c1_105, %c0_106, %c0_107, %c0_108] : memref<2x4x32x8xf32, #tpu.memory_space<vmem>>, vector<1x4x32x8xf32>
    %186 = vector.shape_cast %185 : vector<1x4x32x8xf32> to vector<4x32x8xf32>
    "tpu.trace_start"() <{level = 10 : i32, message = "hsd,hdc->hsc"}> : () -> ()
    %cst_109 = arith.constant dense<0.000000e+00> : vector<4x8x8xf32>
    %187 = tpu.matmul %174, %186, %cst_109 {dimension_numbers = #tpu.dot_dimension_numbers<[2], [1], [1], [2], [0, 0, 0, 1, 1, 2], [0], [0]>} : vector<4x8x32xf32>, vector<4x32x8xf32>, vector<4x8x8xf32> -> vector<4x8x8xf32>
    "tpu.trace_stop"() : () -> ()
    %c1_110 = arith.constant 1 : index
    %c0_111 = arith.constant 0 : index
    %c0_112 = arith.constant 0 : index
    %188 = vector.load %arg11[%c1_110, %c0_111, %c0_112] : memref<2x4x8xf32, #tpu.memory_space<vmem>>, vector<1x4x8xf32>
    %189 = vector.shape_cast %188 : vector<1x4x8xf32> to vector<4x8xf32>
    %190 = vector.shape_cast %189 : vector<4x8xf32> to vector<4x1x8xf32>
    %191 = vector.broadcast %190 : vector<4x1x8xf32> to vector<4x8x8xf32>
    %192 = arith.addf %187, %191 : vector<4x8x8xf32>
    %c1_113 = arith.constant 1 : index
    %c0_114 = arith.constant 0 : index
    %c0_115 = arith.constant 0 : index
    %c0_116 = arith.constant 0 : index
    %193 = vector.load %arg12[%c1_113, %c0_114, %c0_115, %c0_116] : memref<2x4x32x8xf32, #tpu.memory_space<vmem>>, vector<1x4x32x8xf32>
    %194 = vector.shape_cast %193 : vector<1x4x32x8xf32> to vector<4x32x8xf32>
    "tpu.trace_start"() <{level = 10 : i32, message = "hsd,hdc->hsc"}> : () -> ()
    %cst_117 = arith.constant dense<0.000000e+00> : vector<4x8x8xf32>
    %195 = tpu.matmul %174, %194, %cst_117 {dimension_numbers = #tpu.dot_dimension_numbers<[2], [1], [1], [2], [0, 0, 0, 1, 1, 2], [0], [0]>} : vector<4x8x32xf32>, vector<4x32x8xf32>, vector<4x8x8xf32> -> vector<4x8x8xf32>
    "tpu.trace_stop"() : () -> ()
    %c1_118 = arith.constant 1 : index
    %c0_119 = arith.constant 0 : index
    %c0_120 = arith.constant 0 : index
    %196 = vector.load %arg13[%c1_118, %c0_119, %c0_120] : memref<2x4x8xf32, #tpu.memory_space<vmem>>, vector<1x4x8xf32>
    %197 = vector.shape_cast %196 : vector<1x4x8xf32> to vector<4x8xf32>
    %198 = vector.shape_cast %197 : vector<4x8xf32> to vector<4x1x8xf32>
    %199 = vector.broadcast %198 : vector<4x1x8xf32> to vector<4x8x8xf32>
    %200 = arith.addf %195, %199 : vector<4x8x8xf32>
    "tpu.trace_start"() <{level = 10 : i32, message = "hqc,hkc->hqk"}> : () -> ()
    %cst_121 = arith.constant dense<0.000000e+00> : vector<4x8x8xf32>
    %201 = tpu.matmul %184, %192, %cst_121 {dimension_numbers = #tpu.dot_dimension_numbers<[2], [2], [1], [1], [0, 0, 0, 1, 1, 1], [0], [0]>} : vector<4x8x8xf32>, vector<4x8x8xf32>, vector<4x8x8xf32> -> vector<4x8x8xf32>
    "tpu.trace_stop"() : () -> ()
    %cst_122 = arith.constant dense<0xFF800000> : vector<4x8xf32>
    %202 = vector.multi_reduction <maximumf>, %201, %cst_122 [2] : vector<4x8x8xf32> to vector<4x8xf32>
    %203 = vector.shape_cast %202 : vector<4x8xf32> to vector<4x8x1xf32>
    %204 = vector.broadcast %203 : vector<4x8x1xf32> to vector<4x8x8xf32>
    %205 = arith.subf %201, %204 : vector<4x8x8xf32>
    %206 = math.exp %205 : vector<4x8x8xf32>
    %cst_123 = arith.constant dense<0.000000e+00> : vector<4x8xf32>
    %207 = vector.multi_reduction <add>, %206, %cst_123 [2] : vector<4x8x8xf32> to vector<4x8xf32>
    %208 = vector.shape_cast %207 : vector<4x8xf32> to vector<4x8x1xf32>
    %209 = tpu.reciprocal %208 {approx = true} : vector<4x8x1xf32> -> vector<4x8x1xf32>
    %210 = vector.broadcast %209 : vector<4x8x1xf32> to vector<4x8x8xf32>
    %211 = arith.mulf %206, %210 : vector<4x8x8xf32>
    %212 = vector.shape_cast %51 : vector<8x8xf32> to vector<1x8x8xf32>
    %213 = vector.broadcast %212 : vector<1x8x8xf32> to vector<4x8x8xf32>
    %214 = arith.mulf %211, %213 : vector<4x8x8xf32>
    "tpu.trace_start"() <{level = 10 : i32, message = "hqk,hkc->hqc"}> : () -> ()
    %cst_124 = arith.constant dense<0.000000e+00> : vector<4x8x8xf32>
    %215 = tpu.matmul %214, %200, %cst_124 {dimension_numbers = #tpu.dot_dimension_numbers<[2], [1], [1], [2], [0, 0, 0, 1, 1, 2], [0], [0]>} : vector<4x8x8xf32>, vector<4x8x8xf32>, vector<4x8x8xf32> -> vector<4x8x8xf32>
    "tpu.trace_stop"() : () -> ()
    %c1_125 = arith.constant 1 : index
    %c0_126 = arith.constant 0 : index
    %c0_127 = arith.constant 0 : index
    %c0_128 = arith.constant 0 : index
    %216 = vector.load %arg14[%c1_125, %c0_126, %c0_127, %c0_128] : memref<2x4x8x32xf32, #tpu.memory_space<vmem>>, vector<1x4x8x32xf32>
    %217 = vector.shape_cast %216 : vector<1x4x8x32xf32> to vector<4x8x32xf32>
    "tpu.trace_start"() <{level = 10 : i32, message = "hqc,hcd->hqd"}> : () -> ()
    %cst_129 = arith.constant dense<0.000000e+00> : vector<4x8x32xf32>
    %218 = tpu.matmul %215, %217, %cst_129 {dimension_numbers = #tpu.dot_dimension_numbers<[2], [1], [1], [2], [0, 0, 0, 1, 1, 2], [0], [0]>} : vector<4x8x8xf32>, vector<4x8x32xf32>, vector<4x8x32xf32> -> vector<4x8x32xf32>
    "tpu.trace_stop"() : () -> ()
    %cst_130 = arith.constant dense<0.000000e+00> : vector<8x32xf32>
    %219 = vector.multi_reduction <add>, %218, %cst_130 [0] : vector<4x8x32xf32> to vector<8x32xf32>
    %c1_131 = arith.constant 1 : index
    %c0_132 = arith.constant 0 : index
    %c0_133 = arith.constant 0 : index
    %220 = vector.load %arg15[%c1_131, %c0_132, %c0_133] : memref<2x1x32xf32, #tpu.memory_space<vmem>>, vector<1x1x32xf32>
    %221 = vector.shape_cast %220 : vector<1x1x32xf32> to vector<1x32xf32>
    %222 = vector.broadcast %221 : vector<1x32xf32> to vector<8x32xf32>
    %223 = arith.addf %219, %222 : vector<8x32xf32>
    %224 = arith.addf %172, %223 : vector<8x32xf32>
    %c1_134 = arith.constant 1 : index
    %c0_135 = arith.constant 0 : index
    %c0_136 = arith.constant 0 : index
    %225 = vector.load %arg16[%c1_134, %c0_135, %c0_136] : memref<2x1x32xf32, #tpu.memory_space<vmem>>, vector<1x1x32xf32>
    %226 = vector.shape_cast %225 : vector<1x1x32xf32> to vector<1x32xf32>
    %c1_137 = arith.constant 1 : index
    %c0_138 = arith.constant 0 : index
    %c0_139 = arith.constant 0 : index
    %227 = vector.load %arg17[%c1_137, %c0_138, %c0_139] : memref<2x1x32xf32, #tpu.memory_space<vmem>>, vector<1x1x32xf32>
    %228 = vector.shape_cast %227 : vector<1x1x32xf32> to vector<1x32xf32>
    %cst_140 = arith.constant dense<0.000000e+00> : vector<8xf32>
    %229 = vector.multi_reduction <add>, %224, %cst_140 [1] : vector<8x32xf32> to vector<8xf32>
    %230 = vector.shape_cast %229 : vector<8xf32> to vector<8x1xf32>
    %cst_141 = arith.constant 3.200000e+01 : f32
    %231 = vector.broadcast %cst_141 : f32 to vector<8x1xf32>
    %232 = arith.divf %230, %231 : vector<8x1xf32>
    %233 = vector.broadcast %232 : vector<8x1xf32> to vector<8x32xf32>
    %234 = arith.subf %224, %233 : vector<8x32xf32>
    %235 = arith.mulf %234, %234 : vector<8x32xf32>
    %cst_142 = arith.constant dense<0.000000e+00> : vector<8xf32>
    %236 = vector.multi_reduction <add>, %235, %cst_142 [1] : vector<8x32xf32> to vector<8xf32>
    %237 = vector.shape_cast %236 : vector<8xf32> to vector<8x1xf32>
    %cst_143 = arith.constant 3.200000e+01 : f32
    %238 = vector.broadcast %cst_143 : f32 to vector<8x1xf32>
    %239 = arith.divf %237, %238 : vector<8x1xf32>
    %240 = vector.broadcast %232 : vector<8x1xf32> to vector<8x32xf32>
    %241 = arith.subf %224, %240 : vector<8x32xf32>
    %cst_144 = arith.constant 9.99999974E-6 : f32
    %242 = vector.broadcast %cst_144 : f32 to vector<8x1xf32>
    %243 = arith.addf %239, %242 : vector<8x1xf32>
    %244 = math.rsqrt %243 : vector<8x1xf32>
    %245 = vector.broadcast %244 : vector<8x1xf32> to vector<8x32xf32>
    %246 = arith.mulf %241, %245 : vector<8x32xf32>
    %247 = vector.broadcast %226 : vector<1x32xf32> to vector<8x32xf32>
    %248 = arith.mulf %246, %247 : vector<8x32xf32>
    %249 = vector.broadcast %228 : vector<1x32xf32> to vector<8x32xf32>
    %250 = arith.addf %248, %249 : vector<8x32xf32>
    %c1_145 = arith.constant 1 : index
    %c0_146 = arith.constant 0 : index
    %c0_147 = arith.constant 0 : index
    %251 = vector.load %arg18[%c1_145, %c0_146, %c0_147] : memref<2x32x64xf32, #tpu.memory_space<vmem>>, vector<1x32x64xf32>
    %252 = vector.shape_cast %251 : vector<1x32x64xf32> to vector<32x64xf32>
    %cst_148 = arith.constant dense<0.000000e+00> : vector<8x64xf32>
    %253 = tpu.matmul %250, %252, %cst_148 {dimension_numbers = #tpu.dot_dimension_numbers<[1], [0], [0], [1], [0, 0, 1, 1], [], []>} : vector<8x32xf32>, vector<32x64xf32>, vector<8x64xf32> -> vector<8x64xf32>
    %c1_149 = arith.constant 1 : index
    %c0_150 = arith.constant 0 : index
    %c0_151 = arith.constant 0 : index
    %254 = vector.load %arg19[%c1_149, %c0_150, %c0_151] : memref<2x1x64xf32, #tpu.memory_space<vmem>>, vector<1x1x64xf32>
    %255 = vector.shape_cast %254 : vector<1x1x64xf32> to vector<1x64xf32>
    %256 = vector.broadcast %255 : vector<1x64xf32> to vector<8x64xf32>
    %257 = arith.addf %253, %256 : vector<8x64xf32>
    %cst_152 = arith.constant 0.000000e+00 : f32
    %258 = vector.broadcast %cst_152 : f32 to vector<8x64xf32>
    %259 = arith.maximumf %257, %258 : vector<8x64xf32>
    %c1_153 = arith.constant 1 : index
    %c0_154 = arith.constant 0 : index
    %c0_155 = arith.constant 0 : index
    %260 = vector.load %arg20[%c1_153, %c0_154, %c0_155] : memref<2x64x32xf32, #tpu.memory_space<vmem>>, vector<1x64x32xf32>
    %261 = vector.shape_cast %260 : vector<1x64x32xf32> to vector<64x32xf32>
    %cst_156 = arith.constant dense<0.000000e+00> : vector<8x32xf32>
    %262 = tpu.matmul %259, %261, %cst_156 {dimension_numbers = #tpu.dot_dimension_numbers<[1], [0], [0], [1], [0, 0, 1, 1], [], []>} : vector<8x64xf32>, vector<64x32xf32>, vector<8x32xf32> -> vector<8x32xf32>
    %c1_157 = arith.constant 1 : index
    %c0_158 = arith.constant 0 : index
    %c0_159 = arith.constant 0 : index
    %263 = vector.load %arg21[%c1_157, %c0_158, %c0_159] : memref<2x1x32xf32, #tpu.memory_space<vmem>>, vector<1x1x32xf32>
    %264 = vector.shape_cast %263 : vector<1x1x32xf32> to vector<1x32xf32>
    %265 = vector.broadcast %264 : vector<1x32xf32> to vector<8x32xf32>
    %266 = arith.addf %262, %265 : vector<8x32xf32>
    %267 = arith.addf %250, %266 : vector<8x32xf32>
    %c1_160 = arith.constant 1 : index
    %c0_161 = arith.constant 0 : index
    %c0_162 = arith.constant 0 : index
    %268 = vector.load %arg22[%c1_160, %c0_161, %c0_162] : memref<2x1x32xf32, #tpu.memory_space<vmem>>, vector<1x1x32xf32>
    %269 = vector.shape_cast %268 : vector<1x1x32xf32> to vector<1x32xf32>
    %c1_163 = arith.constant 1 : index
    %c0_164 = arith.constant 0 : index
    %c0_165 = arith.constant 0 : index
    %270 = vector.load %arg23[%c1_163, %c0_164, %c0_165] : memref<2x1x32xf32, #tpu.memory_space<vmem>>, vector<1x1x32xf32>
    %271 = vector.shape_cast %270 : vector<1x1x32xf32> to vector<1x32xf32>
    %cst_166 = arith.constant dense<0.000000e+00> : vector<8xf32>
    %272 = vector.multi_reduction <add>, %267, %cst_166 [1] : vector<8x32xf32> to vector<8xf32>
    %273 = vector.shape_cast %272 : vector<8xf32> to vector<8x1xf32>
    %cst_167 = arith.constant 3.200000e+01 : f32
    %274 = vector.broadcast %cst_167 : f32 to vector<8x1xf32>
    %275 = arith.divf %273, %274 : vector<8x1xf32>
    %276 = vector.broadcast %275 : vector<8x1xf32> to vector<8x32xf32>
    %277 = arith.subf %267, %276 : vector<8x32xf32>
    %278 = arith.mulf %277, %277 : vector<8x32xf32>
    %cst_168 = arith.constant dense<0.000000e+00> : vector<8xf32>
    %279 = vector.multi_reduction <add>, %278, %cst_168 [1] : vector<8x32xf32> to vector<8xf32>
    %280 = vector.shape_cast %279 : vector<8xf32> to vector<8x1xf32>
    %cst_169 = arith.constant 3.200000e+01 : f32
    %281 = vector.broadcast %cst_169 : f32 to vector<8x1xf32>
    %282 = arith.divf %280, %281 : vector<8x1xf32>
    %283 = vector.broadcast %275 : vector<8x1xf32> to vector<8x32xf32>
    %284 = arith.subf %267, %283 : vector<8x32xf32>
    %cst_170 = arith.constant 9.99999974E-6 : f32
    %285 = vector.broadcast %cst_170 : f32 to vector<8x1xf32>
    %286 = arith.addf %282, %285 : vector<8x1xf32>
    %287 = math.rsqrt %286 : vector<8x1xf32>
    %288 = vector.broadcast %287 : vector<8x1xf32> to vector<8x32xf32>
    %289 = arith.mulf %284, %288 : vector<8x32xf32>
    %290 = vector.broadcast %269 : vector<1x32xf32> to vector<8x32xf32>
    %291 = arith.mulf %289, %290 : vector<8x32xf32>
    %292 = vector.broadcast %271 : vector<1x32xf32> to vector<8x32xf32>
    %293 = arith.addf %291, %292 : vector<8x32xf32>
    %294 = vector.extract_strided_slice %293 {offsets = [0, 0], sizes = [4, 32], strides = [1, 1]} : vector<8x32xf32> to vector<4x32xf32>
    %c0_171 = arith.constant 0 : index
    %c0_172 = arith.constant 0 : index
    %295 = vector.load %arg24[%c0_171, %c0_172] : memref<32x16xf32, #tpu.memory_space<vmem>>, vector<32x16xf32>
    %cst_173 = arith.constant dense<0.000000e+00> : vector<4x16xf32>
    %296 = tpu.matmul %294, %295, %cst_173 {dimension_numbers = #tpu.dot_dimension_numbers<[1], [0], [0], [1], [0, 0, 1, 1], [], []>} : vector<4x32xf32>, vector<32x16xf32>, vector<4x16xf32> -> vector<4x16xf32>
    %c0_174 = arith.constant 0 : index
    %c0_175 = arith.constant 0 : index
    %297 = vector.load %arg25[%c0_174, %c0_175] : memref<1x16xf32, #tpu.memory_space<vmem>>, vector<1x16xf32>
    %298 = vector.broadcast %297 : vector<1x16xf32> to vector<4x16xf32>
    %299 = arith.addf %296, %298 : vector<4x16xf32>
    %c0_176 = arith.constant 0 : index
    %c0_177 = arith.constant 0 : index
    %c0_178 = arith.constant 0 : index
    %300 = vector.load %arg26[%c0_176, %c0_177, %c0_178] : memref<1x4x16xf32, #tpu.memory_space<vmem>>, vector<1x4x16xf32>
    %301 = vector.shape_cast %300 : vector<1x4x16xf32> to vector<4x16xf32>
    %302 = vector.shape_cast %299 : vector<4x16xf32> to vector<1x4x16xf32>
    tpu.vector_store %arg26[%c0_176, %c0_177, %c0_178], %302 {strides = array<i32>} : memref<1x4x16xf32, #tpu.memory_space<vmem>>, vector<1x4x16xf32>,
    return
  }
  func.func @transform_0(%arg0: i32) -> (i32, i32, i32) {
    %c0_i32 = arith.constant 0 : i32
    %c0_i32_0 = arith.constant 0 : i32
    %c0_i32_1 = arith.constant 0 : i32
    return %arg0, %c0_i32, %c0_i32_0 : i32, i32, i32
  }
  func.func @transform_1(%arg0: i32) -> (i32, i32) {
    %c0_i32 = arith.constant 0 : i32
    %c0_i32_0 = arith.constant 0 : i32
    %c0_i32_1 = arith.constant 0 : i32
    return %c0_i32, %c0_i32_0 : i32, i32
  }
  func.func @transform_2(%arg0: i32) -> (i32, i32) {
    %c0_i32 = arith.constant 0 : i32
    %c0_i32_0 = arith.constant 0 : i32
    %c0_i32_1 = arith.constant 0 : i32
    return %c0_i32, %c0_i32_0 : i32, i32
  }
  func.func @transform_3(%arg0: i32) -> (i32, i32) {
    %c0_i32 = arith.constant 0 : i32
    %c0_i32_0 = arith.constant 0 : i32
    %c0_i32_1 = arith.constant 0 : i32
    return %c0_i32, %c0_i32_0 : i32, i32
  }
  func.func @transform_4(%arg0: i32) -> (i32, i32) {
    %c0_i32 = arith.constant 0 : i32
    %c0_i32_0 = arith.constant 0 : i32
    %c0_i32_1 = arith.constant 0 : i32
    return %c0_i32, %c0_i32_0 : i32, i32
  }
  func.func @transform_5(%arg0: i32) -> (i32, i32) {
    %c0_i32 = arith.constant 0 : i32
    %c0_i32_0 = arith.constant 0 : i32
    %c0_i32_1 = arith.constant 0 : i32
    return %c0_i32, %c0_i32_0 : i32, i32
  }
  func.func @transform_6(%arg0: i32) -> (i32, i32) {
    %c0_i32 = arith.constant 0 : i32
    %c0_i32_0 = arith.constant 0 : i32
    %c0_i32_1 = arith.constant 0 : i32
    return %c0_i32, %c0_i32_0 : i32, i32
  }
  func.func @transform_7(%arg0: i32) -> (i32, i32, i32, i32) {
    %c0_i32 = arith.constant 0 : i32
    %c0_i32_0 = arith.constant 0 : i32
    %c0_i32_1 = arith.constant 0 : i32
    %c0_i32_2 = arith.constant 0 : i32
    %c0_i32_3 = arith.constant 0 : i32
    return %c0_i32, %c0_i32_0, %c0_i32_1, %c0_i32_2 : i32, i32, i32, i32
  }
  func.func @transform_8(%arg0: i32) -> (i32, i32, i32) {
    %c0_i32 = arith.constant 0 : i32
    %c0_i32_0 = arith.constant 0 : i32
    %c0_i32_1 = arith.constant 0 : i32
    %c0_i32_2 = arith.constant 0 : i32
    return %c0_i32, %c0_i32_0, %c0_i32_1 : i32, i32, i32
  }
  func.func @transform_9(%arg0: i32) -> (i32, i32, i32, i32) {
    %c0_i32 = arith.constant 0 : i32
    %c0_i32_0 = arith.constant 0 : i32
    %c0_i32_1 = arith.constant 0 : i32
    %c0_i32_2 = arith.constant 0 : i32
    %c0_i32_3 = arith.constant 0 : i32
    return %c0_i32, %c0_i32_0, %c0_i32_1, %c0_i32_2 : i32, i32, i32, i32
  }
  func.func @transform_10(%arg0: i32) -> (i32, i32, i32) {
    %c0_i32 = arith.constant 0 : i32
    %c0_i32_0 = arith.constant 0 : i32
    %c0_i32_1 = arith.constant 0 : i32
    %c0_i32_2 = arith.constant 0 : i32
    return %c0_i32, %c0_i32_0, %c0_i32_1 : i32, i32, i32
  }
  func.func @transform_11(%arg0: i32) -> (i32, i32, i32, i32) {
    %c0_i32 = arith.constant 0 : i32
    %c0_i32_0 = arith.constant 0 : i32
    %c0_i32_1 = arith.constant 0 : i32
    %c0_i32_2 = arith.constant 0 : i32
    %c0_i32_3 = arith.constant 0 : i32
    return %c0_i32, %c0_i32_0, %c0_i32_1, %c0_i32_2 : i32, i32, i32, i32
  }
  func.func @transform_12(%arg0: i32) -> (i32, i32, i32) {
    %c0_i32 = arith.constant 0 : i32
    %c0_i32_0 = arith.constant 0 : i32
    %c0_i32_1 = arith.constant 0 : i32
    %c0_i32_2 = arith.constant 0 : i32
    return %c0_i32, %c0_i32_0, %c0_i32_1 : i32, i32, i32
  }
  func.func @transform_13(%arg0: i32) -> (i32, i32, i32, i32) {
    %c0_i32 = arith.constant 0 : i32
    %c0_i32_0 = arith.constant 0 : i32
    %c0_i32_1 = arith.constant 0 : i32
    %c0_i32_2 = arith.constant 0 : i32
    %c0_i32_3 = arith.constant 0 : i32
    return %c0_i32, %c0_i32_0, %c0_i32_1, %c0_i32_2 : i32, i32, i32, i32
  }
  func.func @transform_14(%arg0: i32) -> (i32, i32, i32) {
    %c0_i32 = arith.constant 0 : i32
    %c0_i32_0 = arith.constant 0 : i32
    %c0_i32_1 = arith.constant 0 : i32
    %c0_i32_2 = arith.constant 0 : i32
    return %c0_i32, %c0_i32_0, %c0_i32_1 : i32, i32, i32
  }
  func.func @transform_15(%arg0: i32) -> (i32, i32, i32) {
    %c0_i32 = arith.constant 0 : i32
    %c0_i32_0 = arith.constant 0 : i32
    %c0_i32_1 = arith.constant 0 : i32
    %c0_i32_2 = arith.constant 0 : i32
    return %c0_i32, %c0_i32_0, %c0_i32_1 : i32, i32, i32
  }
  func.func @transform_16(%arg0: i32) -> (i32, i32, i32) {
    %c0_i32 = arith.constant 0 : i32
    %c0_i32_0 = arith.constant 0 : i32
    %c0_i32_1 = arith.constant 0 : i32
    %c0_i32_2 = arith.constant 0 : i32
    return %c0_i32, %c0_i32_0, %c0_i32_1 : i32, i32, i32
  }
  func.func @transform_17(%arg0: i32) -> (i32, i32, i32) {
    %c0_i32 = arith.constant 0 : i32
    %c0_i32_0 = arith.constant 0 : i32
    %c0_i32_1 = arith.constant 0 : i32
    %c0_i32_2 = arith.constant 0 : i32
    return %c0_i32, %c0_i32_0, %c0_i32_1 : i32, i32, i32
  }
  func.func @transform_18(%arg0: i32) -> (i32, i32, i32) {
    %c0_i32 = arith.constant 0 : i32
    %c0_i32_0 = arith.constant 0 : i32
    %c0_i32_1 = arith.constant 0 : i32
    %c0_i32_2 = arith.constant 0 : i32
    return %c0_i32, %c0_i32_0, %c0_i32_1 : i32, i32, i32
  }
  func.func @transform_19(%arg0: i32) -> (i32, i32, i32) {
    %c0_i32 = arith.constant 0 : i32
    %c0_i32_0 = arith.constant 0 : i32
    %c0_i32_1 = arith.constant 0 : i32
    %c0_i32_2 = arith.constant 0 : i32
    return %c0_i32, %c0_i32_0, %c0_i32_1 : i32, i32, i32
  }
  func.func @transform_20(%arg0: i32) -> (i32, i32, i32) {
    %c0_i32 = arith.constant 0 : i32
    %c0_i32_0 = arith.constant 0 : i32
    %c0_i32_1 = arith.constant 0 : i32
    %c0_i32_2 = arith.constant 0 : i32
    return %c0_i32, %c0_i32_0, %c0_i32_1 : i32, i32, i32
  }
  func.func @transform_21(%arg0: i32) -> (i32, i32, i32) {
    %c0_i32 = arith.constant 0 : i32
    %c0_i32_0 = arith.constant 0 : i32
    %c0_i32_1 = arith.constant 0 : i32
    %c0_i32_2 = arith.constant 0 : i32
    return %c0_i32, %c0_i32_0, %c0_i32_1 : i32, i32, i32
  }
  func.func @transform_22(%arg0: i32) -> (i32, i32, i32) {
    %c0_i32 = arith.constant 0 : i32
    %c0_i32_0 = arith.constant 0 : i32
    %c0_i32_1 = arith.constant 0 : i32
    %c0_i32_2 = arith.constant 0 : i32
    return %c0_i32, %c0_i32_0, %c0_i32_1 : i32, i32, i32
  }
  func.func @transform_23(%arg0: i32) -> (i32, i32) {
    %c0_i32 = arith.constant 0 : i32
    %c0_i32_0 = arith.constant 0 : i32
    %c0_i32_1 = arith.constant 0 : i32
    return %c0_i32, %c0_i32_0 : i32, i32
  }
  func.func @transform_24(%arg0: i32) -> (i32, i32) {
    %c0_i32 = arith.constant 0 : i32
    %c0_i32_0 = arith.constant 0 : i32
    %c0_i32_1 = arith.constant 0 : i32
    return %c0_i32, %c0_i32_0 : i32, i32
  }
  func.func @transform_25(%arg0: i32) -> (i32, i32, i32) {
    %c0_i32 = arith.constant 0 : i32
    %c0_i32_0 = arith.constant 0 : i32
    %c0_i32_1 = arith.constant 0 : i32
    return %arg0, %c0_i32, %c0_i32_0 : i32, i32, i32
  }
}

</mosaic_0001>

<llo_original>
// kernel: maskformer_forward.1
$region0: #{maskformer_forward.1}
  #allocation0 [shape = 'u32[]', space=smem, size = 0x4, offset = 0x4, fixed_abs, tag = 'smem constant byte address 0x4 - core index']
  #allocation1 [shape = 'u32[72,128]{1,0:T(1,128)}', space=vmem, size = 0x9000, scoped, tag = 'internal scratch']
  %s0 = inlined_call_operand.vmem [shape: f32[2,8,16], index: 0, kind: input, shape index: {}]
  %s1 = inlined_call_operand.vmem [shape: f32[16,16], index: 1, kind: input, shape index: {}]
  %s2 = inlined_call_operand.vmem [shape: f32[16,32], index: 2, kind: input, shape index: {}]
  %s3 = inlined_call_operand.vmem [shape: f32[1,32], index: 3, kind: input, shape index: {}]
  %s4 = inlined_call_operand.vmem [shape: f32[16,32], index: 4, kind: input, shape index: {}]
  %s5 = inlined_call_operand.vmem [shape: f32[1,32], index: 5, kind: input, shape index: {}]
  %s6 = inlined_call_operand.vmem [shape: f32[1,32], index: 6, kind: input, shape index: {}]
  %s7 = inlined_call_operand.vmem [shape: f32[2,4,32,8], index: 7, kind: input, shape index: {}]
  %s8 = inlined_call_operand.vmem [shape: f32[2,4,8], index: 8, kind: input, shape index: {}]
  %s9 = inlined_call_operand.vmem [shape: f32[2,4,32,8], index: 9, kind: input, shape index: {}]
  %s10 = inlined_call_operand.vmem [shape: f32[2,4,8], index: 10, kind: input, shape index: {}]
  %s11 = inlined_call_operand.vmem [shape: f32[2,4,32,8], index: 11, kind: input, shape index: {}]
  %s12 = inlined_call_operand.vmem [shape: f32[2,4,8], index: 12, kind: input, shape index: {}]
  %s13 = inlined_call_operand.vmem [shape: f32[2,4,8,32], index: 13, kind: input, shape index: {}]
  %s14 = inlined_call_operand.vmem [shape: f32[2,1,32], index: 14, kind: input, shape index: {}]
  %s15 = inlined_call_operand.vmem [shape: f32[2,1,32], index: 15, kind: input, shape index: {}]
  %s16 = inlined_call_operand.vmem [shape: f32[2,1,32], index: 16, kind: input, shape index: {}]
  %s17 = inlined_call_operand.vmem [shape: f32[2,32,64], index: 17, kind: input, shape index: {}]
  %s18 = inlined_call_operand.vmem [shape: f32[2,1,64], index: 18, kind: input, shape index: {}]
  %s19 = inlined_call_operand.vmem [shape: f32[2,64,32], index: 19, kind: input, shape index: {}]
  %s20 = inlined_call_operand.vmem [shape: f32[2,1,32], index: 20, kind: input, shape index: {}]
  %s21 = inlined_call_operand.vmem [shape: f32[2,1,32], index: 21, kind: input, shape index: {}]
  %s22 = inlined_call_operand.vmem [shape: f32[2,1,32], index: 22, kind: input, shape index: {}]
  %s23 = inlined_call_operand.vmem [shape: f32[32,16], index: 23, kind: input, shape index: {}]
  %s24 = inlined_call_operand.vmem [shape: f32[1,16], index: 24, kind: input, shape index: {}]
  %s25 = inlined_call_operand.hbm [shape: f32[2,4,16], index: 25, kind: output, shape index: {}]
  %s26 = sld [smem:[#allocation0]]
  $region133: #{maskformer_forward.1} parent=0
    _
  %s28 = ssub.s32 1, %s26
  %s29 = scalar_select 0, %s28, %s26
  $region1: #{maskformer_forward.1} parent=0
    #allocation2 [shape = 'u8[4096]{0}', space=vmem, size = 0x1000, scoped, tag = 'output window, operand 0']
    #allocation3 [shape = 's32[2]{0}', space=sflag, size = 0x8, scoped, tag = 'scoped memory for maskformer_forward.1']
    %30 = vsyncpa [#allocation3], 0
    %s31 = scalar_lea.sflag [#allocation3], 1
    %32 = vsyncpa %s31, 0
    loop: start=0, step=1, limit=4
    $region2: #{maskformer_forward.1} parent=1 // loop_pre_header
      _
    $region3: #{maskformer_forward.1} parent=1 // loop_header
      %s34 = sphi 0, %s38
      %p35 = scmp.ge.s32.totalorder %s34, 4
      %s44 = sphi 0, %s46
      %s47 = sphi 0, %s44
      %s48 = sphi 0, %s47
      %s64 = sphi 0, %s48
      %s68 = sphi 0, %s68
      %s70 = sphi 0, %s68
      %s71 = sphi 0, %s70
      %s85 = sphi 0, %s71
      %s89 = sphi 0, %s89
      %s91 = sphi 0, %s89
      %s92 = sphi 0, %s91
      %s106 = sphi 0, %s92
      %s110 = sphi 0, %s110
      %s112 = sphi 0, %s110
      %s113 = sphi 0, %s112
      %s127 = sphi 0, %s113
      %s131 = sphi 0, %s131
      %s133 = sphi 0, %s131
      %s134 = sphi 0, %s133
      %s148 = sphi 0, %s134
      %s152 = sphi 0, %s152
      %s154 = sphi 0, %s152
      %s155 = sphi 0, %s154
      %s169 = sphi 0, %s155
      %s173 = sphi 0, %s173
      %s175 = sphi 0, %s173
      %s176 = sphi 0, %s175
      %s190 = sphi 0, %s176
      %s194 = sphi 0, %s194
      %s196 = sphi 0, %s194
      %s197 = sphi 0, %s196
      %s211 = sphi 0, %s197
      %s215 = sphi 0, %s215
      %s217 = sphi 0, %s215
      %s218 = sphi 0, %s217
      %s232 = sphi 0, %s218
      %s236 = sphi 0, %s236
      %s238 = sphi 0, %s236
      %s239 = sphi 0, %s238
      %s253 = sphi 0, %s239
      %s257 = sphi 0, %s257
      %s259 = sphi 0, %s257
      %s260 = sphi 0, %s259
      %s274 = sphi 0, %s260
      %s278 = sphi 0, %s278
      %s280 = sphi 0, %s278
      %s281 = sphi 0, %s280
      %s295 = sphi 0, %s281
      %s299 = sphi 0, %s299
      %s301 = sphi 0, %s299
      %s302 = sphi 0, %s301
      %s316 = sphi 0, %s302
      %s320 = sphi 0, %s320
      %s322 = sphi 0, %s320
      %s323 = sphi 0, %s322
      %s337 = sphi 0, %s323
      %s341 = sphi 0, %s341
      %s343 = sphi 0, %s341
      %s344 = sphi 0, %s343
      %s358 = sphi 0, %s344
      %s362 = sphi 0, %s362
      %s364 = sphi 0, %s362
      %s365 = sphi 0, %s364
      %s379 = sphi 0, %s365
      %s383 = sphi 0, %s383
      %s385 = sphi 0, %s383
      %s386 = sphi 0, %s385
      %s400 = sphi 0, %s386
      %s404 = sphi 0, %s404
      %s406 = sphi 0, %s404
      %s407 = sphi 0, %s406
      %s421 = sphi 0, %s407
      %s425 = sphi 0, %s425
      %s427 = sphi 0, %s425
      %s428 = sphi 0, %s427
      %s442 = sphi 0, %s428
      %s446 = sphi 0, %s446
      %s448 = sphi 0, %s446
      %s449 = sphi 0, %s448
      %s463 = sphi 0, %s449
      %s467 = sphi 0, %s467
      %s469 = sphi 0, %s467
      %s470 = sphi 0, %s469
      %s484 = sphi 0, %s470
      %s488 = sphi 0, %s488
      %s490 = sphi 0, %s488
      %s491 = sphi 0, %s490
      %s505 = sphi 0, %s491
      %s509 = sphi 0, %s509
      %s511 = sphi 0, %s509
      %s512 = sphi 0, %s511
      %s526 = sphi 0, %s512
      %s530 = sphi 0, %s530
      %s532 = sphi 0, %s530
      %s533 = sphi 0, %s532
      %s547 = sphi 0, %s533
      %s551 = sphi 0, %s551
      %s553 = sphi 0, %s551
      %s554 = sphi 0, %s553
      %s568 = sphi 0, %s554
      %s574 = sphi 0, %s576
      %s577 = sphi 0, %s574
      %s578 = sphi 0, %s577
      %s594 = sphi 0, %s578
    $region4: #{maskformer_forward.1} parent=1 // loop_header_branch
      %37 = sbr.rel (%p35) target = $region8
    $region5: #{maskformer_forward.1} parent=1 // loop_body
      %s39 = ssub.s32 %s34, 1
      %s40 = ssub.s32 %s34, 2
      %s41 = sadd.s32 %s34, 1
      %s42 = ssub.s32 %s34, %s41
      %p43 = scmp.eq.s32.totalorder %s42, 0
      %s45 = sadd.s32 %s44, 1
      %s46 = scalar_select %p43, %s44, %s45
      %p49 = pneg %p43
      %p50 = scmp.eq.s32.totalorder %s34, 1
      %p51 = por %p49, %p50
      %p52 = scmp.ne.s32.totalorder %s44, %s47
      %p53 = scmp.eq.s32.totalorder %s34, 0
      %p54 = por %p52, %p53
      %p55 = scmp.ne.s32.totalorder %s44, %s47
      %p56 = scmp.eq.s32.totalorder %s39, 1
      %p57 = por %p55, %p56
      %p58 = scmp.ne.s32.totalorder %s47, %s48
      %p59 = scmp.eq.s32.totalorder %s39, 0
      %p60 = por %p58, %p59
      %p61 = scmp.ne.s32.totalorder %s47, %s48
      %p62 = scmp.eq.s32.totalorder %s40, 1
      %p63 = por %p61, %p62
      %p65 = scmp.ne.s32.totalorder %s48, %s64
      %p66 = scmp.eq.s32.totalorder %s40, 0
      %p67 = por %p65, %p66
      %s69 = sadd.s32 %s68, 1
      %p72 = scmp.eq.s32.totalorder %s34, 1
      %p73 = scmp.ne.s32.totalorder %s68, %s70
      %p74 = scmp.eq.s32.totalorder %s34, 0
      %p75 = por %p73, %p74
      %p76 = scmp.ne.s32.totalorder %s68, %s70
      %p77 = scmp.eq.s32.totalorder %s39, 1
      %p78 = por %p76, %p77
      %p79 = scmp.ne.s32.totalorder %s70, %s71
      %p80 = scmp.eq.s32.totalorder %s39, 0
      %p81 = por %p79, %p80
      %p82 = scmp.ne.s32.totalorder %s70, %s71
      %p83 = scmp.eq.s32.totalorder %s40, 1
      %p84 = por %p82, %p83
      %p86 = scmp.ne.s32.totalorder %s71, %s85
      %p87 = scmp.eq.s32.totalorder %s40, 0
      %p88 = por %p86, %p87
      %s90 = sadd.s32 %s89, 1
      %p93 = scmp.eq.s32.totalorder %s34, 1
      %p94 = scmp.ne.s32.totalorder %s89, %s91
      %p95 = scmp.eq.s32.totalorder %s34, 0
      %p96 = por %p94, %p95
      %p97 = scmp.ne.s32.totalorder %s89, %s91
      %p98 = scmp.eq.s32.totalorder %s39, 1
      %p99 = por %p97, %p98
      %p100 = scmp.ne.s32.totalorder %s91, %s92
      %p101 = scmp.eq.s32.totalorder %s39, 0
      %p102 = por %p100, %p101
      %p103 = scmp.ne.s32.totalorder %s91, %s92
      %p104 = scmp.eq.s32.totalorder %s40, 1
      %p105 = por %p103, %p104
      %p107 = scmp.ne.s32.totalorder %s92, %s106
      %p108 = scmp.eq.s32.totalorder %s40, 0
      %p109 = por %p107, %p108
      %s111 = sadd.s32 %s110, 1
      %p114 = scmp.eq.s32.totalorder %s34, 1
      %p115 = scmp.ne.s32.totalorder %s110, %s112
      %p116 = scmp.eq.s32.totalorder %s34, 0
      %p117 = por %p115, %p116
      %p118 = scmp.ne.s32.totalorder %s110, %s112
      %p119 = scmp.eq.s32.totalorder %s39, 1
      %p120 = por %p118, %p119
      %p121 = scmp.ne.s32.totalorder %s112, %s113
      %p122 = scmp.eq.s32.totalorder %s39, 0
      %p123 = por %p121, %p122
      %p124 = scmp.ne.s32.totalorder %s112, %s113
      %p125 = scmp.eq.s32.totalorder %s40, 1
      %p126 = por %p124, %p125
      %p128 = scmp.ne.s32.totalorder %s113, %s127
      %p129 = scmp.eq.s32.totalorder %s40, 0
      %p130 = por %p128, %p129
      %s132 = sadd.s32 %s131, 1
      %p135 = scmp.eq.s32.totalorder %s34, 1
      %p136 = scmp.ne.s32.totalorder %s131, %s133
      %p137 = scmp.eq.s32.totalorder %s34, 0
      %p138 = por %p136, %p137
      %p139 = scmp.ne.s32.totalorder %s131, %s133
      %p140 = scmp.eq.s32.totalorder %s39, 1
      %p141 = por %p139, %p140
      %p142 = scmp.ne.s32.totalorder %s133, %s134
      %p143 = scmp.eq.s32.totalorder %s39, 0
      %p144 = por %p142, %p143
      %p145 = scmp.ne.s32.totalorder %s133, %s134
      %p146 = scmp.eq.s32.totalorder %s40, 1
      %p147 = por %p145, %p146
      %p149 = scmp.ne.s32.totalorder %s134, %s148
      %p150 = scmp.eq.s32.totalorder %s40, 0
      %p151 = por %p149, %p150
      %s153 = sadd.s32 %s152, 1
      %p156 = scmp.eq.s32.totalorder %s34, 1
      %p157 = scmp.ne.s32.totalorder %s152, %s154
      %p158 = scmp.eq.s32.totalorder %s34, 0
      %p159 = por %p157, %p158
      %p160 = scmp.ne.s32.totalorder %s152, %s154
      %p161 = scmp.eq.s32.totalorder %s39, 1
      %p162 = por %p160, %p161
      %p163 = scmp.ne.s32.totalorder %s154, %s155
      %p164 = scmp.eq.s32.totalorder %s39, 0
      %p165 = por %p163, %p164
      %p166 = scmp.ne.s32.totalorder %s154, %s155
      %p167 = scmp.eq.s32.totalorder %s40, 1
      %p168 = por %p166, %p167
      %p170 = scmp.ne.s32.totalorder %s155, %s169
      %p171 = scmp.eq.s32.totalorder %s40, 0
      %p172 = por %p170, %p171
      %s174 = sadd.s32 %s173, 1
      %p177 = scmp.eq.s32.totalorder %s34, 1
      %p178 = scmp.ne.s32.totalorder %s173, %s175
      %p179 = scmp.eq.s32.totalorder %s34, 0
      %p180 = por %p178, %p179
      %p181 = scmp.ne.s32.totalorder %s173, %s175
      %p182 = scmp.eq.s32.totalorder %s39, 1
      %p183 = por %p181, %p182
      %p184 = scmp.ne.s32.totalorder %s175, %s176
      %p185 = scmp.eq.s32.totalorder %s39, 0
      %p186 = por %p184, %p185
      %p187 = scmp.ne.s32.totalorder %s175, %s176
      %p188 = scmp.eq.s32.totalorder %s40, 1
      %p189 = por %p187, %p188
      %p191 = scmp.ne.s32.totalorder %s176, %s190
      %p192 = scmp.eq.s32.totalorder %s40, 0
      %p193 = por %p191, %p192
      %s195 = sadd.s32 %s194, 1
      %p198 = scmp.eq.s32.totalorder %s34, 1
      %p199 = scmp.ne.s32.totalorder %s194, %s196
      %p200 = scmp.eq.s32.totalorder %s34, 0
      %p201 = por %p199, %p200
      %p202 = scmp.ne.s32.totalorder %s194, %s196
      %p203 = scmp.eq.s32.totalorder %s39, 1
      %p204 = por %p202, %p203
      %p205 = scmp.ne.s32.totalorder %s196, %s197
      %p206 = scmp.eq.s32.totalorder %s39, 0
      %p207 = por %p205, %p206
      %p208 = scmp.ne.s32.totalorder %s196, %s197
      %p209 = scmp.eq.s32.totalorder %s40, 1
      %p210 = por %p208, %p209
      %p212 = scmp.ne.s32.totalorder %s197, %s211
      %p213 = scmp.eq.s32.totalorder %s40, 0
      %p214 = por %p212, %p213
      %s216 = sadd.s32 %s215, 1
      %p219 = scmp.eq.s32.totalorder %s34, 1
      %p220 = scmp.ne.s32.totalorder %s215, %s217
      %p221 = scmp.eq.s32.totalorder %s34, 0
      %p222 = por %p220, %p221
      %p223 = scmp.ne.s32.totalorder %s215, %s217
      %p224 = scmp.eq.s32.totalorder %s39, 1
      %p225 = por %p223, %p224
      %p226 = scmp.ne.s32.totalorder %s217, %s218
      %p227 = scmp.eq.s32.totalorder %s39, 0
      %p228 = por %p226, %p227
      %p229 = scmp.ne.s32.totalorder %s217, %s218
      %p230 = scmp.eq.s32.totalorder %s40, 1
      %p231 = por %p229, %p230
      %p233 = scmp.ne.s32.totalorder %s218, %s232
      %p234 = scmp.eq.s32.totalorder %s40, 0
      %p235 = por %p233, %p234
      %s237 = sadd.s32 %s236, 1
      %p240 = scmp.eq.s32.totalorder %s34, 1
      %p241 = scmp.ne.s32.totalorder %s236, %s238
      %p242 = scmp.eq.s32.totalorder %s34, 0
      %p243 = por %p241, %p242
      %p244 = scmp.ne.s32.totalorder %s236, %s238
      %p245 = scmp.eq.s32.totalorder %s39, 1
      %p246 = por %p244, %p245
      %p247 = scmp.ne.s32.totalorder %s238, %s239
      %p248 = scmp.eq.s32.totalorder %s39, 0
      %p249 = por %p247, %p248
      %p250 = scmp.ne.s32.totalorder %s238, %s239
      %p251 = scmp.eq.s32.totalorder %s40, 1
      %p252 = por %p250, %p251
      %p254 = scmp.ne.s32.totalorder %s239, %s253
      %p255 = scmp.eq.s32.totalorder %s40, 0
      %p256 = por %p254, %p255
      %s258 = sadd.s32 %s257, 1
      %p261 = scmp.eq.s32.totalorder %s34, 1
      %p262 = scmp.ne.s32.totalorder %s257, %s259
      %p263 = scmp.eq.s32.totalorder %s34, 0
      %p264 = por %p262, %p263
      %p265 = scmp.ne.s32.totalorder %s257, %s259
      %p266 = scmp.eq.s32.totalorder %s39, 1
      %p267 = por %p265, %p266
      %p268 = scmp.ne.s32.totalorder %s259, %s260
      %p269 = scmp.eq.s32.totalorder %s39, 0
      %p270 = por %p268, %p269
      %p271 = scmp.ne.s32.totalorder %s259, %s260
      %p272 = scmp.eq.s32.totalorder %s40, 1
      %p273 = por %p271, %p272
      %p275 = scmp.ne.s32.totalorder %s260, %s274
      %p276 = scmp.eq.s32.totalorder %s40, 0
      %p277 = por %p275, %p276
      %s279 = sadd.s32 %s278, 1
      %p282 = scmp.eq.s32.totalorder %s34, 1
      %p283 = scmp.ne.s32.totalorder %s278, %s280
      %p284 = scmp.eq.s32.totalorder %s34, 0
      %p285 = por %p283, %p284
      %p286 = scmp.ne.s32.totalorder %s278, %s280
      %p287 = scmp.eq.s32.totalorder %s39, 1
      %p288 = por %p286, %p287
      %p289 = scmp.ne.s32.totalorder %s280, %s281
      %p290 = scmp.eq.s32.totalorder %s39, 0
      %p291 = por %p289, %p290
      %p292 = scmp.ne.s32.totalorder %s280, %s281
      %p293 = scmp.eq.s32.totalorder %s40, 1
      %p294 = por %p292, %p293
      %p296 = scmp.ne.s32.totalorder %s281, %s295
      %p297 = scmp.eq.s32.totalorder %s40, 0
      %p298 = por %p296, %p297
      %s300 = sadd.s32 %s299, 1
      %p303 = scmp.eq.s32.totalorder %s34, 1
      %p304 = scmp.ne.s32.totalorder %s299, %s301
      %p305 = scmp.eq.s32.totalorder %s34, 0
      %p306 = por %p304, %p305
      %p307 = scmp.ne.s32.totalorder %s299, %s301
      %p308 = scmp.eq.s32.totalorder %s39, 1
      %p309 = por %p307, %p308
      %p310 = scmp.ne.s32.totalorder %s301, %s302
      %p311 = scmp.eq.s32.totalorder %s39, 0
      %p312 = por %p310, %p311
      %p313 = scmp.ne.s32.totalorder %s301, %s302
      %p314 = scmp.eq.s32.totalorder %s40, 1
      %p315 = por %p313, %p314
      %p317 = scmp.ne.s32.totalorder %s302, %s316
      %p318 = scmp.eq.s32.totalorder %s40, 0
      %p319 = por %p317, %p318
      %s321 = sadd.s32 %s320, 1
      %p324 = scmp.eq.s32.totalorder %s34, 1
      %p325 = scmp.ne.s32.totalorder %s320, %s322
      %p326 = scmp.eq.s32.totalorder %s34, 0
      %p327 = por %p325, %p326
      %p328 = scmp.ne.s32.totalorder %s320, %s322
      %p329 = scmp.eq.s32.totalorder %s39, 1
      %p330 = por %p328, %p329
      %p331 = scmp.ne.s32.totalorder %s322, %s323
      %p332 = scmp.eq.s32.totalorder %s39, 0
      %p333 = por %p331, %p332
      %p334 = scmp.ne.s32.totalorder %s322, %s323
      %p335 = scmp.eq.s32.totalorder %s40, 1
      %p336 = por %p334, %p335
      %p338 = scmp.ne.s32.totalorder %s323, %s337
      %p339 = scmp.eq.s32.totalorder %s40, 0
      %p340 = por %p338, %p339
      %s342 = sadd.s32 %s341, 1
      %p345 = scmp.eq.s32.totalorder %s34, 1
      %p346 = scmp.ne.s32.totalorder %s341, %s343
      %p347 = scmp.eq.s32.totalorder %s34, 0
      %p348 = por %p346, %p347
      %p349 = scmp.ne.s32.totalorder %s341, %s343
      %p350 = scmp.eq.s32.totalorder %s39, 1
      %p351 = por %p349, %p350
      %p352 = scmp.ne.s32.totalorder %s343, %s344
      %p353 = scmp.eq.s32.totalorder %s39, 0
      %p354 = por %p352, %p353
      %p355 = scmp.ne.s32.totalorder %s343, %s344
      %p356 = scmp.eq.s32.totalorder %s40, 1
      %p357 = por %p355, %p356
      %p359 = scmp.ne.s32.totalorder %s344, %s358
      %p360 = scmp.eq.s32.totalorder %s40, 0
      %p361 = por %p359, %p360
      %s363 = sadd.s32 %s362, 1
      %p366 = scmp.eq.s32.totalorder %s34, 1
      %p367 = scmp.ne.s32.totalorder %s362, %s364
      %p368 = scmp.eq.s32.totalorder %s34, 0
      %p369 = por %p367, %p368
      %p370 = scmp.ne.s32.totalorder %s362, %s364
      %p371 = scmp.eq.s32.totalorder %s39, 1
      %p372 = por %p370, %p371
      %p373 = scmp.ne.s32.totalorder %s364, %s365
      %p374 = scmp.eq.s32.totalorder %s39, 0
      %p375 = por %p373, %p374
      %p376 = scmp.ne.s32.totalorder %s364, %s365
      %p377 = scmp.eq.s32.totalorder %s40, 1
      %p378 = por %p376, %p377
      %p380 = scmp.ne.s32.totalorder %s365, %s379
      %p381 = scmp.eq.s32.totalorder %s40, 0
      %p382 = por %p380, %p381
      %s384 = sadd.s32 %s383, 1
      %p387 = scmp.eq.s32.totalorder %s34, 1
      %p388 = scmp.ne.s32.totalorder %s383, %s385
      %p389 = scmp.eq.s32.totalorder %s34, 0
      %p390 = por %p388, %p389
      %p391 = scmp.ne.s32.totalorder %s383, %s385
      %p392 = scmp.eq.s32.totalorder %s39, 1
      %p393 = por %p391, %p392
      %p394 = scmp.ne.s32.totalorder %s385, %s386
      %p395 = scmp.eq.s32.totalorder %s39, 0
      %p396 = por %p394, %p395
      %p397 = scmp.ne.s32.totalorder %s385, %s386
      %p398 = scmp.eq.s32.totalorder %s40, 1
      %p399 = por %p397, %p398
      %p401 = scmp.ne.s32.totalorder %s386, %s400
      %p402 = scmp.eq.s32.totalorder %s40, 0
      %p403 = por %p401, %p402
      %s405 = sadd.s32 %s404, 1
      %p408 = scmp.eq.s32.totalorder %s34, 1
      %p409 = scmp.ne.s32.totalorder %s404, %s406
      %p410 = scmp.eq.s32.totalorder %s34, 0
      %p411 = por %p409, %p410
      %p412 = scmp.ne.s32.totalorder %s404, %s406
      %p413 = scmp.eq.s32.totalorder %s39, 1
      %p414 = por %p412, %p413
      %p415 = scmp.ne.s32.totalorder %s406, %s407
      %p416 = scmp.eq.s32.totalorder %s39, 0
      %p417 = por %p415, %p416
      %p418 = scmp.ne.s32.totalorder %s406, %s407
      %p419 = scmp.eq.s32.totalorder %s40, 1
      %p420 = por %p418, %p419
      %p422 = scmp.ne.s32.totalorder %s407, %s421
      %p423 = scmp.eq.s32.totalorder %s40, 0
      %p424 = por %p422, %p423
      %s426 = sadd.s32 %s425, 1
      %p429 = scmp.eq.s32.totalorder %s34, 1
      %p430 = scmp.ne.s32.totalorder %s425, %s427
      %p431 = scmp.eq.s32.totalorder %s34, 0
      %p432 = por %p430, %p431
      %p433 = scmp.ne.s32.totalorder %s425, %s427
      %p434 = scmp.eq.s32.totalorder %s39, 1
      %p435 = por %p433, %p434
      %p436 = scmp.ne.s32.totalorder %s427, %s428
      %p437 = scmp.eq.s32.totalorder %s39, 0
      %p438 = por %p436, %p437
      %p439 = scmp.ne.s32.totalorder %s427, %s428
      %p440 = scmp.eq.s32.totalorder %s40, 1
      %p441 = por %p439, %p440
      %p443 = scmp.ne.s32.totalorder %s428, %s442
      %p444 = scmp.eq.s32.totalorder %s40, 0
      %p445 = por %p443, %p444
      %s447 = sadd.s32 %s446, 1
      %p450 = scmp.eq.s32.totalorder %s34, 1
      %p451 = scmp.ne.s32.totalorder %s446, %s448
      %p452 = scmp.eq.s32.totalorder %s34, 0
      %p453 = por %p451, %p452
      %p454 = scmp.ne.s32.totalorder %s446, %s448
      %p455 = scmp.eq.s32.totalorder %s39, 1
      %p456 = por %p454, %p455
      %p457 = scmp.ne.s32.totalorder %s448, %s449
      %p458 = scmp.eq.s32.totalorder %s39, 0
      %p459 = por %p457, %p458
      %p460 = scmp.ne.s32.totalorder %s448, %s449
      %p461 = scmp.eq.s32.totalorder %s40, 1
      %p462 = por %p460, %p461
      %p464 = scmp.ne.s32.totalorder %s449, %s463
      %p465 = scmp.eq.s32.totalorder %s40, 0
      %p466 = por %p464, %p465
      %s468 = sadd.s32 %s467, 1
      %p471 = scmp.eq.s32.totalorder %s34, 1
      %p472 = scmp.ne.s32.totalorder %s467, %s469
      %p473 = scmp.eq.s32.totalorder %s34, 0
      %p474 = por %p472, %p473
      %p475 = scmp.ne.s32.totalorder %s467, %s469
      %p476 = scmp.eq.s32.totalorder %s39, 1
      %p477 = por %p475, %p476
      %p478 = scmp.ne.s32.totalorder %s469, %s470
      %p479 = scmp.eq.s32.totalorder %s39, 0
      %p480 = por %p478, %p479
      %p481 = scmp.ne.s32.totalorder %s469, %s470
      %p482 = scmp.eq.s32.totalorder %s40, 1
      %p483 = por %p481, %p482
      %p485 = scmp.ne.s32.totalorder %s470, %s484
      %p486 = scmp.eq.s32.totalorder %s40, 0
      %p487 = por %p485, %p486
      %s489 = sadd.s32 %s488, 1
      %p492 = scmp.eq.s32.totalorder %s34, 1
      %p493 = scmp.ne.s32.totalorder %s488, %s490
      %p494 = scmp.eq.s32.totalorder %s34, 0
      %p495 = por %p493, %p494
      %p496 = scmp.ne.s32.totalorder %s488, %s490
      %p497 = scmp.eq.s32.totalorder %s39, 1
      %p498 = por %p496, %p497
      %p499 = scmp.ne.s32.totalorder %s490, %s491
      %p500 = scmp.eq.s32.totalorder %s39, 0
      %p501 = por %p499, %p500
      %p502 = scmp.ne.s32.totalorder %s490, %s491
      %p503 = scmp.eq.s32.totalorder %s40, 1
      %p504 = por %p502, %p503
      %p506 = scmp.ne.s32.totalorder %s491, %s505
      %p507 = scmp.eq.s32.totalorder %s40, 0
      %p508 = por %p506, %p507
      %s510 = sadd.s32 %s509, 1
      %p513 = scmp.eq.s32.totalorder %s34, 1
      %p514 = scmp.ne.s32.totalorder %s509, %s511
      %p515 = scmp.eq.s32.totalorder %s34, 0
      %p516 = por %p514, %p515
      %p517 = scmp.ne.s32.totalorder %s509, %s511
      %p518 = scmp.eq.s32.totalorder %s39, 1
      %p519 = por %p517, %p518
      %p520 = scmp.ne.s32.totalorder %s511, %s512
      %p521 = scmp.eq.s32.totalorder %s39, 0
      %p522 = por %p520, %p521
      %p523 = scmp.ne.s32.totalorder %s511, %s512
      %p524 = scmp.eq.s32.totalorder %s40, 1
      %p525 = por %p523, %p524
      %p527 = scmp.ne.s32.totalorder %s512, %s526
      %p528 = scmp.eq.s32.totalorder %s40, 0
      %p529 = por %p527, %p528
      %s531 = sadd.s32 %s530, 1
      %p534 = scmp.eq.s32.totalorder %s34, 1
      %p535 = scmp.ne.s32.totalorder %s530, %s532
      %p536 = scmp.eq.s32.totalorder %s34, 0
      %p537 = por %p535, %p536
      %p538 = scmp.ne.s32.totalorder %s530, %s532
      %p539 = scmp.eq.s32.totalorder %s39, 1
      %p540 = por %p538, %p539
      %p541 = scmp.ne.s32.totalorder %s532, %s533
      %p542 = scmp.eq.s32.totalorder %s39, 0
      %p543 = por %p541, %p542
      %p544 = scmp.ne.s32.totalorder %s532, %s533
      %p545 = scmp.eq.s32.totalorder %s40, 1
      %p546 = por %p544, %p545
      %p548 = scmp.ne.s32.totalorder %s533, %s547
      %p549 = scmp.eq.s32.totalorder %s40, 0
      %p550 = por %p548, %p549
      %s552 = sadd.s32 %s551, 1
      %p555 = scmp.eq.s32.totalorder %s34, 1
      %p556 = scmp.ne.s32.totalorder %s551, %s553
      %p557 = scmp.eq.s32.totalorder %s34, 0
      %p558 = por %p556, %p557
      %p559 = scmp.ne.s32.totalorder %s551, %s553
      %p560 = scmp.eq.s32.totalorder %s39, 1
      %p561 = por %p559, %p560
      %p562 = scmp.ne.s32.totalorder %s553, %s554
      %p563 = scmp.eq.s32.totalorder %s39, 0
      %p564 = por %p562, %p563
      %p565 = scmp.ne.s32.totalorder %s553, %s554
      %p566 = scmp.eq.s32.totalorder %s40, 1
      %p567 = por %p565, %p566
      %p569 = scmp.ne.s32.totalorder %s554, %s568
      %p570 = scmp.eq.s32.totalorder %s40, 0
      %p571 = por %p569, %p570
      %s572 = ssub.s32 %s34, %s41
      %p573 = scmp.eq.s32.totalorder %s572, 0
      %s575 = sadd.s32 %s574, 1
      %s576 = scalar_select %p573, %s574, %s575
      %p579 = pneg %p573
      %p580 = scmp.eq.s32.totalorder %s34, 1
      %p581 = por %p579, %p580
      %p582 = scmp.ne.s32.totalorder %s574, %s577
      %p583 = scmp.eq.s32.totalorder %s34, 0
      %p584 = por %p582, %p583
      %p585 = scmp.ne.s32.totalorder %s574, %s577
      %p586 = scmp.eq.s32.totalorder %s39, 1
      %p587 = por %p585, %p586
      %p588 = scmp.ne.s32.totalorder %s577, %s578
      %p589 = scmp.eq.s32.totalorder %s39, 0
      %p590 = por %p588, %p589
      %p591 = scmp.ne.s32.totalorder %s577, %s578
      %p592 = scmp.eq.s32.totalorder %s40, 1
      %p593 = por %p591, %p592
      %p595 = scmp.ne.s32.totalorder %s578, %s594
      %p596 = scmp.eq.s32.totalorder %s40, 0
      %p597 = por %p595, %p596
      %p598 = scmp.le.s32.totalorder 1, %s34
      %p599 = scmp.lt.s32.totalorder %s34, 3
      %p600 = pnand %p598, %p599
      %p601 = pneg %p600
      // Predicated region
      $region9: #{maskformer_forward.1} parent=5 // pred_check
        _
      $region10: #{maskformer_forward.1} parent=5 // pred_check_branch
        %603 = sbr.rel (%p600) target = $region12
      $region11: #{maskformer_forward.1} parent=5 // pred_region
        %s604 = ssub.s32 %s34, 1
        // Predicated region
        $region13: #{maskformer_forward.1} parent=11 // pred_check
          %p605 = pneg %p81
        $region14: #{maskformer_forward.1} parent=11 // pred_check_branch
          %607 = sbr.rel (%p605) target = $region16
        $region15: #{maskformer_forward.1} parent=11 // pred_region
          _
        $region16: #{maskformer_forward.1} parent=11 // pred_fallthru
          _
        // Predicated region
        $region17: #{maskformer_forward.1} parent=11 // pred_check
          %p608 = pneg %p102
        $region18: #{maskformer_forward.1} parent=11 // pred_check_branch
          %610 = sbr.rel (%p608) target = $region20
        $region19: #{maskformer_forward.1} parent=11 // pred_region
          _
        $region20: #{maskformer_forward.1} parent=11 // pred_fallthru
          _
        // Predicated region
        $region21: #{maskformer_forward.1} parent=11 // pred_check
          %p611 = pneg %p123
        $region22: #{maskformer_forward.1} parent=11 // pred_check_branch
          %613 = sbr.rel (%p611) target = $region24
        $region23: #{maskformer_forward.1} parent=11 // pred_region
          _
        $region24: #{maskformer_forward.1} parent=11 // pred_fallthru
          _
        // Predicated region
        $region25: #{maskformer_forward.1} parent=11 // pred_check
          %p614 = pneg %p144
        $region26: #{maskformer_forward.1} parent=11 // pred_check_branch
          %616 = sbr.rel (%p614) target = $region28
        $region27: #{maskformer_forward.1} parent=11 // pred_region
          _
        $region28: #{maskformer_forward.1} parent=11 // pred_fallthru
          _
        // Predicated region
        $region29: #{maskformer_forward.1} parent=11 // pred_check
          %p617 = pneg %p165
        $region30: #{maskformer_forward.1} parent=11 // pred_check_branch
          %619 = sbr.rel (%p617) target = $region32
        $region31: #{maskformer_forward.1} parent=11 // pred_region
          _
        $region32: #{maskformer_forward.1} parent=11 // pred_fallthru
          _
        // Predicated region
        $region33: #{maskformer_forward.1} parent=11 // pred_check
          %p620 = pneg %p186
        $region34: #{maskformer_forward.1} parent=11 // pred_check_branch
          %622 = sbr.rel (%p620) target = $region36
        $region35: #{maskformer_forward.1} parent=11 // pred_region
          _
        $region36: #{maskformer_forward.1} parent=11 // pred_fallthru
          _
        // Predicated region
        $region37: #{maskformer_forward.1} parent=11 // pred_check
          %p623 = pneg %p207
        $region38: #{maskformer_forward.1} parent=11 // pred_check_branch
          %625 = sbr.rel (%p623) target = $region40
        $region39: #{maskformer_forward.1} parent=11 // pred_region
          _
        $region40: #{maskformer_forward.1} parent=11 // pred_fallthru
          _
        // Predicated region
        $region41: #{maskformer_forward.1} parent=11 // pred_check
          %p626 = pneg %p228
        $region42: #{maskformer_forward.1} parent=11 // pred_check_branch
          %628 = sbr.rel (%p626) target = $region44
        $region43: #{maskformer_forward.1} parent=11 // pred_region
          _
        $region44: #{maskformer_forward.1} parent=11 // pred_fallthru
          _
        // Predicated region
        $region45: #{maskformer_forward.1} parent=11 // pred_check
          %p629 = pneg %p249
        $region46: #{maskformer_forward.1} parent=11 // pred_check_branch
          %631 = sbr.rel (%p629) target = $region48
        $region47: #{maskformer_forward.1} parent=11 // pred_region
          _
        $region48: #{maskformer_forward.1} parent=11 // pred_fallthru
          _
        // Predicated region
        $region49: #{maskformer_forward.1} parent=11 // pred_check
          %p632 = pneg %p270
        $region50: #{maskformer_forward.1} parent=11 // pred_check_branch
          %634 = sbr.rel (%p632) target = $region52
        $region51: #{maskformer_forward.1} parent=11 // pred_region
          _
        $region52: #{maskformer_forward.1} parent=11 // pred_fallthru
          _
        // Predicated region
        $region53: #{maskformer_forward.1} parent=11 // pred_check
          %p635 = pneg %p291
        $region54: #{maskformer_forward.1} parent=11 // pred_check_branch
          %637 = sbr.rel (%p635) target = $region56
        $region55: #{maskformer_forward.1} parent=11 // pred_region
          _
        $region56: #{maskformer_forward.1} parent=11 // pred_fallthru
          _
        // Predicated region
        $region57: #{maskformer_forward.1} parent=11 // pred_check
          %p638 = pneg %p312
        $region58: #{maskformer_forward.1} parent=11 // pred_check_branch
          %640 = sbr.rel (%p638) target = $region60
        $region59: #{maskformer_forward.1} parent=11 // pred_region
          _
        $region60: #{maskformer_forward.1} parent=11 // pred_fallthru
          _
        // Predicated region
        $region61: #{maskformer_forward.1} parent=11 // pred_check
          %p641 = pneg %p333
        $region62: #{maskformer_forward.1} parent=11 // pred_check_branch
          %643 = sbr.rel (%p641) target = $region64
        $region63: #{maskformer_forward.1} parent=11 // pred_region
          _
        $region64: #{maskformer_forward.1} parent=11 // pred_fallthru
          _
        // Predicated region
        $region65: #{maskformer_forward.1} parent=11 // pred_check
          %p644 = pneg %p354
        $region66: #{maskformer_forward.1} parent=11 // pred_check_branch
          %646 = sbr.rel (%p644) target = $region68
        $region67: #{maskformer_forward.1} parent=11 // pred_region
          _
        $region68: #{maskformer_forward.1} parent=11 // pred_fallthru
          _
        // Predicated region
        $region69: #{maskformer_forward.1} parent=11 // pred_check
          %p647 = pneg %p375
        $region70: #{maskformer_forward.1} parent=11 // pred_check_branch
          %649 = sbr.rel (%p647) target = $region72
        $region71: #{maskformer_forward.1} parent=11 // pred_region
          _
        $region72: #{maskformer_forward.1} parent=11 // pred_fallthru
          _
        // Predicated region
        $region73: #{maskformer_forward.1} parent=11 // pred_check
          %p650 = pneg %p396
        $region74: #{maskformer_forward.1} parent=11 // pred_check_branch
          %652 = sbr.rel (%p650) target = $region76
        $region75: #{maskformer_forward.1} parent=11 // pred_region
          _
        $region76: #{maskformer_forward.1} parent=11 // pred_fallthru
          _
        // Predicated region
        $region77: #{maskformer_forward.1} parent=11 // pred_check
          %p653 = pneg %p417
        $region78: #{maskformer_forward.1} parent=11 // pred_check_branch
          %655 = sbr.rel (%p653) target = $region80
        $region79: #{maskformer_forward.1} parent=11 // pred_region
          _
        $region80: #{maskformer_forward.1} parent=11 // pred_fallthru
          _
        // Predicated region
        $region81: #{maskformer_forward.1} parent=11 // pred_check
          %p656 = pneg %p438
        $region82: #{maskformer_forward.1} parent=11 // pred_check_branch
          %658 = sbr.rel (%p656) target = $region84
        $region83: #{maskformer_forward.1} parent=11 // pred_region
          _
        $region84: #{maskformer_forward.1} parent=11 // pred_fallthru
          _
        // Predicated region
        $region85: #{maskformer_forward.1} parent=11 // pred_check
          %p659 = pneg %p459
        $region86: #{maskformer_forward.1} parent=11 // pred_check_branch
          %661 = sbr.rel (%p659) target = $region88
        $region87: #{maskformer_forward.1} parent=11 // pred_region
          _
        $region88: #{maskformer_forward.1} parent=11 // pred_fallthru
          _
        // Predicated region
        $region89: #{maskformer_forward.1} parent=11 // pred_check
          %p662 = pneg %p480
        $region90: #{maskformer_forward.1} parent=11 // pred_check_branch
          %664 = sbr.rel (%p662) target = $region92
        $region91: #{maskformer_forward.1} parent=11 // pred_region
          _
        $region92: #{maskformer_forward.1} parent=11 // pred_fallthru
          _
        // Predicated region
        $region93: #{maskformer_forward.1} parent=11 // pred_check
          %p665 = pneg %p501
        $region94: #{maskformer_forward.1} parent=11 // pred_check_branch
          %667 = sbr.rel (%p665) target = $region96
        $region95: #{maskformer_forward.1} parent=11 // pred_region
          _
        $region96: #{maskformer_forward.1} parent=11 // pred_fallthru
          _
        // Predicated region
        $region97: #{maskformer_forward.1} parent=11 // pred_check
          %p668 = pneg %p522
        $region98: #{maskformer_forward.1} parent=11 // pred_check_branch
          %670 = sbr.rel (%p668) target = $region100
        $region99: #{maskformer_forward.1} parent=11 // pred_region
          _
        $region100: #{maskformer_forward.1} parent=11 // pred_fallthru
          _
        // Predicated region
        $region101: #{maskformer_forward.1} parent=11 // pred_check
          %p671 = pneg %p543
        $region102: #{maskformer_forward.1} parent=11 // pred_check_branch
          %673 = sbr.rel (%p671) target = $region104
        $region103: #{maskformer_forward.1} parent=11 // pred_region
          _
        $region104: #{maskformer_forward.1} parent=11 // pred_fallthru
          _
        // Predicated region
        $region105: #{maskformer_forward.1} parent=11 // pred_check
          %p674 = pneg %p564
        $region106: #{maskformer_forward.1} parent=11 // pred_check_branch
          %676 = sbr.rel (%p674) target = $region108
        $region107: #{maskformer_forward.1} parent=11 // pred_region
          _
        $region108: #{maskformer_forward.1} parent=11 // pred_fallthru
          _
      $region12: #{maskformer_forward.1} parent=5 // pred_fallthru
        _
      %p677 = scmp.lt.s32.totalorder %s34, 2
      // Predicated region
      $region109: #{maskformer_forward.1} parent=5 // pred_check
        %p678 = pneg %p677
      $region110: #{maskformer_forward.1} parent=5 // pred_check_branch
        %680 = sbr.rel (%p678) target = $region112
      $region111: #{maskformer_forward.1} parent=5 // pred_region
        // Predicated region
        $region113: #{maskformer_forward.1} parent=111 // pred_check
          %p681 = pneg %p54
        $region114: #{maskformer_forward.1} parent=111 // pred_check_branch
          %683 = sbr.rel (%p681) target = $region116
        $region115: #{maskformer_forward.1} parent=111 // pred_region
          %p684 = scmp.lt.s32.totalorder %s34, 1
          %s685 = scalar_select %p684, %s34, 1
          %s686 = smul.addr %s685, 8
          %s687 = scalar_lea.vmem %s0, %s686
        $region116: #{maskformer_forward.1} parent=111 // pred_fallthru
          _
      $region112: #{maskformer_forward.1} parent=5 // pred_fallthru
        _
      %p688 = scmp.le.s32.totalorder 1, %s34
      %p689 = scmp.lt.s32.totalorder %s34, 3
      %p690 = pnand %p688, %p689
      %p691 = pneg %p690
      // Predicated region
      $region117: #{maskformer_forward.1} parent=5 // pred_check
        _
      $region118: #{maskformer_forward.1} parent=5 // pred_check_branch
        %693 = sbr.rel (%p690) target = $region120
      $region119: #{maskformer_forward.1} parent=5 // pred_region
        %s694 = ssub.s32 %s34, 1
        %p695 = scmp.lt.s32.totalorder %s39, 1
        %s696 = scalar_select %p695, %s39, 1
        %s697 = smul.addr %s696, 8
        %s698 = scalar_lea.vmem %s0, %s697
        %p699 = pneg %p60
        %p700 = pneg %p57
        %p701 = pneg %p81
        %p702 = pneg %p78
        %p703 = pneg %p102
        %p704 = pneg %p99
        %p705 = pneg %p123
        %p706 = pneg %p120
        %p707 = pneg %p144
        %p708 = pneg %p141
        %p709 = pneg %p165
        %p710 = pneg %p162
        %p711 = pneg %p186
        %p712 = pneg %p183
        %p713 = pneg %p207
        %p714 = pneg %p204
        %p715 = pneg %p228
        %p716 = pneg %p225
        %p717 = pneg %p249
        %p718 = pneg %p246
        %p719 = pneg %p270
        %p720 = pneg %p267
        %p721 = pneg %p291
        %p722 = pneg %p288
        %p723 = pneg %p312
        %p724 = pneg %p309
        %p725 = pneg %p333
        %p726 = pneg %p330
        %p727 = pneg %p354
        %p728 = pneg %p351
        %p729 = pneg %p375
        %p730 = pneg %p372
        %p731 = pneg %p396
        %p732 = pneg %p393
        %p733 = pneg %p417
        %p734 = pneg %p414
        %p735 = pneg %p438
        %p736 = pneg %p435
        %p737 = pneg %p459
        %p738 = pneg %p456
        %p739 = pneg %p480
        %p740 = pneg %p477
        %p741 = pneg %p501
        %p742 = pneg %p498
        %p743 = pneg %p522
        %p744 = pneg %p519
        %p745 = pneg %p543
        %p746 = pneg %p540
        %p747 = pneg %p564
        %p748 = pneg %p561
        %p749 = pneg %p590
        %p750 = pneg %p587
        %s751 = sand.u32 %s577, 1
        %s752 = scalar_lea.sflag [#allocation3], %s751
        %s753 = sand.u32 %s577, 1
        %s754 = smul.addr %s753, 4
        %s755 = scalar_lea.vmem [#allocation2], %s754
        %p756 = scmp.lt.s32.totalorder %s39, 1
        %s757 = scalar_select %p756, %s39, 1
        %s758 = smul.addr %s757, 8
        %s759 = scalar_lea.vmem %s0, %s758
        %v760 = vld [vmem:[%s759] sm:$0xff]
        %v761 = vld [vmem:[%s2] sm:$0xff]
        %v762 = vld [vmem:[%s2 + $0x8] sm:$0xff]
        %v763 = vld [vmem:[%s3] sm:$0x1]
        %v765 = vperm.slane %v763, 0
        %vm767 = vcmask 130048
        %v769 = vsel %vm767, %v760, 0
        %771 = vmatpush.msra.mxu0 0.0
        %772 = vmatpush.msra.mxu0 0.0
        %773 = vmatpush.msra.mxu0 0.0
        %774 = vmatpush.msra.mxu0 0.0
        %775 = vmatpush.msra.mxu0 0.0
        %776 = vmatpush.msra.mxu0 0.0
        %777 = vmatpush.msra.mxu0 0.0
        %778 = vmatpush.msra.mxu0 0.0
        %779 = vmatpush.msra.mxu0 0.0
        %780 = vmatpush.msra.mxu0 0.0
        %781 = vmatpush.msra.mxu0 0.0
        %782 = vmatpush.msra.mxu0 0.0
        %783 = vmatpush.msra.mxu0 0.0
        %784 = vmatpush.msra.mxu0 0.0
        %785 = vmatpush.msra.mxu0 %v762
        %786 = vmatpush.msra.mxu0 %v761
        %787 = vmatmul.f32.gmra.mxu0 %v769
        %v788 = vpop.f32.mrf.mxu0
        %v789 = vadd.f32 %v765, %v788
        %790 = vdwg.mxu0
        %v791 = vmax.f32 %v789, 0.0
        %v792 = vld [vmem:[%s4] sm:$0xff]
        %v793 = vadd.f32 %v791, %v792
        %v794 = vld [vmem:[%s5] sm:$0x1]
        %v795 = vld [vmem:[%s6] sm:$0x1]
        %vm796 = vcmask 261120
        %v797 = vsel %vm796, %v793, 0.0
        %798 = vadd.xlane.f32.xlu0 %v797
        %v799 = vpop.xlane.xlu0 %798
        %v800 = vrcp.pop 32.0
        %v801 = vmul.f32 32.0, %v800
        %v802 = vsub.f32 1.0, %v801
        %v803 = vmul.f32 %v800, %v802
        %v804 = vadd.f32 %v800, %v803
        %vm805 = vweird.f32 %v800
        %v806 = vsel %vm805, %v800, %v804
        %v807 = vmul.f32 %v799, %v806
        %v808 = vsub.f32 %v793, %v807
        %v809 = vmul.f32 %v808, %v808
        %v810 = vsel %vm796, %v809, 0.0
        %811 = vadd.xlane.f32.xlu0 %v810
        %v812 = vpop.xlane.xlu0 %811
        %v813 = vmul.f32 %v812, %v806
        %v814 = vadd.f32 %v813, 1e-05
        %v815 = vrsqrt.pop %v814
        %v816 = vmul.f32 %v815, %v814
        %v817 = vmul.f32 %v816, %v815
        %v818 = vmul.f32 0.5, %v817
        %v819 = vsub.f32 1.5, %v818
        %v820 = vmul.f32 %v815, %v819
        %vm821 = vweird.f32 %v814
        %vm822 = vweird.f32 %v815
        %vm823 = vmor %vm821, %vm822
        %v824 = vsel %vm823, %v815, %v820
        %v825 = vmul.f32 %v808, %v824
        %v827 = vperm.slane %v794, 0
        %v829 = vmul.f32 %v825, %v827
        %v831 = vperm.slane %v795, 0
        %v833 = vadd.f32 %v829, %v831
        %v834 = vld [vmem:[%s1] sm:$0xff]
        %v835 = vxor.u32 %v834, 2147483648
        %v836 = vmul.f32 %v835, 1.442695
        %v837 = vpow.pop %v836
        %v838 = vadd.f32 %v837, 1.0
        %v839 = vrcp.pop %v838
        %v840 = vmul.f32 %v838, %v839
        %v841 = vsub.f32 1.0, %v840
        %v842 = vmul.f32 %v839, %v841
        %v843 = vadd.f32 %v839, %v842
        %vm844 = vweird.f32 %v838
        %vm845 = vweird.f32 %v839
        %vm846 = vmor %vm844, %vm845
        %v847 = vsel %vm846, %v839, %v843
        %v848 = vand.u32 2147483647, %v838
        %vm849 = vcmp.eq.f32.partialorder %v848, 8.507059e+37
        %v850 = vand.u32 %v838, 2147483648
        %v851 = vor.u32 1.1754944e-38, %v850
        %v852 = vsel %vm849, %v851, %v847
        %v853 = vmul.f32 1.0, %v852
        %v854 = vlaneseq
        %v855 = vshrl.u32 %v854, 7
        %v856 = vlaneseq
        %v857 = vand.u32 %v856, 127
        %vm858 = vcmp.eq.s32.totalorder %v855, %v857
        %v859 = vsel %vm858, 1, 0
        %v860 = vcvt.s32.f32 %v859
        %v861 = vsub.f32 1.0, %v860
        %v862 = vmul.f32 %v861, %v853
        %v863 = vadd.f32 %v860, %v862
        %v864 = vld [vmem:[%s7] sm:$0xff]
        %v865 = vld [vmem:[%s7 + $0x8] sm:$0xff]
        %v866 = vld [vmem:[%s7 + $0x10] sm:$0xff]
        %v867 = vld [vmem:[%s7 + $0x18] sm:$0xff]
        %v868 = vld [vmem:[%s7 + $0x20] sm:$0xff]
        %v869 = vld [vmem:[%s7 + $0x28] sm:$0xff]
        %v870 = vld [vmem:[%s7 + $0x30] sm:$0xff]
        %v871 = vld [vmem:[%s7 + $0x38] sm:$0xff]
        %v872 = vld [vmem:[%s7 + $0x40] sm:$0xff]
        %v873 = vld [vmem:[%s7 + $0x48] sm:$0xff]
        %v874 = vld [vmem:[%s7 + $0x50] sm:$0xff]
        %v875 = vld [vmem:[%s7 + $0x58] sm:$0xff]
        %v876 = vld [vmem:[%s7 + $0x60] sm:$0xff]
        %v877 = vld [vmem:[%s7 + $0x68] sm:$0xff]
        %v878 = vld [vmem:[%s7 + $0x70] sm:$0xff]
        %v879 = vld [vmem:[%s7 + $0x78] sm:$0xff]
        %v880 = vld [vmem:[%s8] sm:$0xf]
        %v882 = vrot.slane %v880, 1
        %v883 = vrot.slane %v880, 2
        %v884 = vrot.slane %v880, 3
        %v885 = vperm.slane %v880, 0
        %v886 = vperm.slane %v882, 0
        %v887 = vperm.slane %v883, 0
        %v888 = vperm.slane %v884, 0
        %v894 = vsel %vm796, %v833, 0
        %896 = vmatpush.msra.mxu0 0.0
        %897 = vmatpush.msra.mxu0 0.0
        %898 = vmatpush.msra.mxu0 0.0
        %899 = vmatpush.msra.mxu0 0.0
        %900 = vmatpush.msra.mxu0 0.0
        %901 = vmatpush.msra.mxu0 0.0
        %902 = vmatpush.msra.mxu0 0.0
        %903 = vmatpush.msra.mxu0 0.0
        %904 = vmatpush.msra.mxu0 0.0
        %905 = vmatpush.msra.mxu0 0.0
        %906 = vmatpush.msra.mxu0 0.0
        %907 = vmatpush.msra.mxu0 0.0
        %908 = vmatpush.msra.mxu0 %v867
        %909 = vmatpush.msra.mxu0 %v866
        %910 = vmatpush.msra.mxu0 %v865
        %911 = vmatpush.msra.mxu0 %v864
        %912 = vmatmul.f32.gmra.mxu0 %v894
        %v913 = vpop.f32.mrf.mxu0
        %v914 = vadd.f32 %v885, %v913
        %915 = vdwg.mxu0
        %916 = vmatpush.msra.mxu0 0.0
        %917 = vmatpush.msra.mxu0 0.0
        %918 = vmatpush.msra.mxu0 0.0
        %919 = vmatpush.msra.mxu0 0.0
        %920 = vmatpush.msra.mxu0 0.0
        %921 = vmatpush.msra.mxu0 0.0
        %922 = vmatpush.msra.mxu0 0.0
        %923 = vmatpush.msra.mxu0 0.0
        %924 = vmatpush.msra.mxu0 0.0
        %925 = vmatpush.msra.mxu0 0.0
        %926 = vmatpush.msra.mxu0 0.0
        %927 = vmatpush.msra.mxu0 0.0
        %928 = vmatpush.msra.mxu0 %v871
        %929 = vmatpush.msra.mxu0 %v870
        %930 = vmatpush.msra.mxu0 %v869
        %931 = vmatpush.msra.mxu0 %v868
        %932 = vmatmul.f32.gmra.mxu0 %v894
        %v933 = vpop.f32.mrf.mxu0
        %v934 = vadd.f32 %v886, %v933
        %935 = vdwg.mxu0
        %936 = vmatpush.msra.mxu0 0.0
        %937 = vmatpush.msra.mxu0 0.0
        %938 = vmatpush.msra.mxu0 0.0
        %939 = vmatpush.msra.mxu0 0.0
        %940 = vmatpush.msra.mxu0 0.0
        %941 = vmatpush.msra.mxu0 0.0
        %942 = vmatpush.msra.mxu0 0.0
        %943 = vmatpush.msra.mxu0 0.0
        %944 = vmatpush.msra.mxu0 0.0
        %945 = vmatpush.msra.mxu0 0.0
        %946 = vmatpush.msra.mxu0 0.0
        %947 = vmatpush.msra.mxu0 0.0
        %948 = vmatpush.msra.mxu0 %v875
        %949 = vmatpush.msra.mxu0 %v874
        %950 = vmatpush.msra.mxu0 %v873
        %951 = vmatpush.msra.mxu0 %v872
        %952 = vmatmul.f32.gmra.mxu0 %v894
        %v953 = vpop.f32.mrf.mxu0
        %v954 = vadd.f32 %v887, %v953
        %955 = vdwg.mxu0
        %956 = vmatpush.msra.mxu0 0.0
        %957 = vmatpush.msra.mxu0 0.0
        %958 = vmatpush.msra.mxu0 0.0
        %959 = vmatpush.msra.mxu0 0.0
        %960 = vmatpush.msra.mxu0 0.0
        %961 = vmatpush.msra.mxu0 0.0
        %962 = vmatpush.msra.mxu0 0.0
        %963 = vmatpush.msra.mxu0 0.0
        %964 = vmatpush.msra.mxu0 0.0
        %965 = vmatpush.msra.mxu0 0.0
        %966 = vmatpush.msra.mxu0 0.0
        %967 = vmatpush.msra.mxu0 0.0
        %968 = vmatpush.msra.mxu0 %v879
        %969 = vmatpush.msra.mxu0 %v878
        %970 = vmatpush.msra.mxu0 %v877
        %971 = vmatpush.msra.mxu0 %v876
        %972 = vmatmul.f32.gmra.mxu0 %v894
        %v973 = vpop.f32.mrf.mxu0
        %v974 = vadd.f32 %v888, %v973
        %975 = vdwg.mxu0
        %v976 = vmul.f32 %v914, 0.35355338
        %v977 = vmul.f32 %v934, 0.35355338
        %v978 = vmul.f32 %v954, 0.35355338
        %v979 = vmul.f32 %v974, 0.35355338
        %v980 = vld [vmem:[%s9] sm:$0xff]
        %v981 = vld [vmem:[%s9 + $0x8] sm:$0xff]
        %v982 = vld [vmem:[%s9 + $0x10] sm:$0xff]
        %v983 = vld [vmem:[%s9 + $0x18] sm:$0xff]
        %v984 = vld [vmem:[%s9 + $0x20] sm:$0xff]
        %v985 = vld [vmem:[%s9 + $0x28] sm:$0xff]
        %v986 = vld [vmem:[%s9 + $0x30] sm:$0xff]
        %v987 = vld [vmem:[%s9 + $0x38] sm:$0xff]
        %v988 = vld [vmem:[%s9 + $0x40] sm:$0xff]
        %v989 = vld [vmem:[%s9 + $0x48] sm:$0xff]
        %v990 = vld [vmem:[%s9 + $0x50] sm:$0xff]
        %v991 = vld [vmem:[%s9 + $0x58] sm:$0xff]
        %v992 = vld [vmem:[%s9 + $0x60] sm:$0xff]
        %v993 = vld [vmem:[%s9 + $0x68] sm:$0xff]
        %v994 = vld [vmem:[%s9 + $0x70] sm:$0xff]
        %v995 = vld [vmem:[%s9 + $0x78] sm:$0xff]
        %v996 = vld [vmem:[%s10] sm:$0xf]
        %v998 = vrot.slane %v996, 1
        %v999 = vrot.slane %v996, 2
        %v1000 = vrot.slane %v996, 3
        %v1001 = vperm.slane %v996, 0
        %v1002 = vperm.slane %v998, 0
        %v1003 = vperm.slane %v999, 0
        %v1004 = vperm.slane %v1000, 0
        %1009 = vmatpush.msra.mxu0 0.0
        %1010 = vmatpush.msra.mxu0 0.0
        %1011 = vmatpush.msra.mxu0 0.0
        %1012 = vmatpush.msra.mxu0 0.0
        %1013 = vmatpush.msra.mxu0 0.0
        %1014 = vmatpush.msra.mxu0 0.0
        %1015 = vmatpush.msra.mxu0 0.0
        %1016 = vmatpush.msra.mxu0 0.0
        %1017 = vmatpush.msra.mxu0 0.0
        %1018 = vmatpush.msra.mxu0 0.0
        %1019 = vmatpush.msra.mxu0 0.0
        %1020 = vmatpush.msra.mxu0 0.0
        %1021 = vmatpush.msra.mxu0 %v983
        %1022 = vmatpush.msra.mxu0 %v982
        %1023 = vmatpush.msra.mxu0 %v981
        %1024 = vmatpush.msra.mxu0 %v980
        %1025 = vmatmul.f32.gmra.mxu0 %v894
        %v1026 = vpop.f32.mrf.mxu0
        %v1027 = vadd.f32 %v1001, %v1026
        %1028 = vdwg.mxu0
        %1029 = vmatpush.msra.mxu0 0.0
        %1030 = vmatpush.msra.mxu0 0.0
        %1031 = vmatpush.msra.mxu0 0.0
        %1032 = vmatpush.msra.mxu0 0.0
        %1033 = vmatpush.msra.mxu0 0.0
        %1034 = vmatpush.msra.mxu0 0.0
        %1035 = vmatpush.msra.mxu0 0.0
        %1036 = vmatpush.msra.mxu0 0.0
        %1037 = vmatpush.msra.mxu0 0.0
        %1038 = vmatpush.msra.mxu0 0.0
        %1039 = vmatpush.msra.mxu0 0.0
        %1040 = vmatpush.msra.mxu0 0.0
        %1041 = vmatpush.msra.mxu0 %v987
        %1042 = vmatpush.msra.mxu0 %v986
        %1043 = vmatpush.msra.mxu0 %v985
        %1044 = vmatpush.msra.mxu0 %v984
        %1045 = vmatmul.f32.gmra.mxu0 %v894
        %v1046 = vpop.f32.mrf.mxu0
        %v1047 = vadd.f32 %v1002, %v1046
        %1048 = vdwg.mxu0
        %1049 = vmatpush.msra.mxu0 0.0
        %1050 = vmatpush.msra.mxu0 0.0
        %1051 = vmatpush.msra.mxu0 0.0
        %1052 = vmatpush.msra.mxu0 0.0
        %1053 = vmatpush.msra.mxu0 0.0
        %1054 = vmatpush.msra.mxu0 0.0
        %1055 = vmatpush.msra.mxu0 0.0
        %1056 = vmatpush.msra.mxu0 0.0
        %1057 = vmatpush.msra.mxu0 0.0
        %1058 = vmatpush.msra.mxu0 0.0
        %1059 = vmatpush.msra.mxu0 0.0
        %1060 = vmatpush.msra.mxu0 0.0
        %1061 = vmatpush.msra.mxu0 %v991
        %1062 = vmatpush.msra.mxu0 %v990
        %1063 = vmatpush.msra.mxu0 %v989
        %1064 = vmatpush.msra.mxu0 %v988
        %1065 = vmatmul.f32.gmra.mxu0 %v894
        %v1066 = vpop.f32.mrf.mxu0
        %v1067 = vadd.f32 %v1003, %v1066
        %1068 = vdwg.mxu0
        %1069 = vmatpush.msra.mxu0 0.0
        %1070 = vmatpush.msra.mxu0 0.0
        %1071 = vmatpush.msra.mxu0 0.0
        %1072 = vmatpush.msra.mxu0 0.0
        %1073 = vmatpush.msra.mxu0 0.0
        %1074 = vmatpush.msra.mxu0 0.0
        %1075 = vmatpush.msra.mxu0 0.0
        %1076 = vmatpush.msra.mxu0 0.0
        %1077 = vmatpush.msra.mxu0 0.0
        %1078 = vmatpush.msra.mxu0 0.0
        %1079 = vmatpush.msra.mxu0 0.0
        %1080 = vmatpush.msra.mxu0 0.0
        %1081 = vmatpush.msra.mxu0 %v995
        %1082 = vmatpush.msra.mxu0 %v994
        %1083 = vmatpush.msra.mxu0 %v993
        %1084 = vmatpush.msra.mxu0 %v992
        %1085 = vmatmul.f32.gmra.mxu0 %v894
        %v1086 = vpop.f32.mrf.mxu0
        %v1087 = vadd.f32 %v1004, %v1086
        %1088 = vdwg.mxu0
        %v1089 = vld [vmem:[%s11] sm:$0xff]
        %v1090 = vld [vmem:[%s11 + $0x8] sm:$0xff]
        %v1091 = vld [vmem:[%s11 + $0x10] sm:$0xff]
        %v1092 = vld [vmem:[%s11 + $0x18] sm:$0xff]
        %v1093 = vld [vmem:[%s11 + $0x20] sm:$0xff]
        %v1094 = vld [vmem:[%s11 + $0x28] sm:$0xff]
        %v1095 = vld [vmem:[%s11 + $0x30] sm:$0xff]
        %v1096 = vld [vmem:[%s11 + $0x38] sm:$0xff]
        %v1097 = vld [vmem:[%s11 + $0x40] sm:$0xff]
        %v1098 = vld [vmem:[%s11 + $0x48] sm:$0xff]
        %v1099 = vld [vmem:[%s11 + $0x50] sm:$0xff]
        %v1100 = vld [vmem:[%s11 + $0x58] sm:$0xff]
        %v1101 = vld [vmem:[%s11 + $0x60] sm:$0xff]
        %v1102 = vld [vmem:[%s11 + $0x68] sm:$0xff]
        %v1103 = vld [vmem:[%s11 + $0x70] sm:$0xff]
        %v1104 = vld [vmem:[%s11 + $0x78] sm:$0xff]
        %v1105 = vld [vmem:[%s12] sm:$0xf]
        %v1107 = vrot.slane %v1105, 1
        %v1108 = vrot.slane %v1105, 2
        %v1109 = vrot.slane %v1105, 3
        %v1110 = vperm.slane %v1105, 0
        %v1111 = vperm.slane %v1107, 0
        %v1112 = vperm.slane %v1108, 0
        %v1113 = vperm.slane %v1109, 0
        %1118 = vmatpush.msra.mxu0 0.0
        %1119 = vmatpush.msra.mxu0 0.0
        %1120 = vmatpush.msra.mxu0 0.0
        %1121 = vmatpush.msra.mxu0 0.0
        %1122 = vmatpush.msra.mxu0 0.0
        %1123 = vmatpush.msra.mxu0 0.0
        %1124 = vmatpush.msra.mxu0 0.0
        %1125 = vmatpush.msra.mxu0 0.0
        %1126 = vmatpush.msra.mxu0 0.0
        %1127 = vmatpush.msra.mxu0 0.0
        %1128 = vmatpush.msra.mxu0 0.0
        %1129 = vmatpush.msra.mxu0 0.0
        %1130 = vmatpush.msra.mxu0 %v1092
        %1131 = vmatpush.msra.mxu0 %v1091
        %1132 = vmatpush.msra.mxu0 %v1090
        %1133 = vmatpush.msra.mxu0 %v1089
        %1134 = vmatmul.f32.gmra.mxu0 %v894
        %v1135 = vpop.f32.mrf.mxu0
        %v1136 = vadd.f32 %v1110, %v1135
        %1137 = vdwg.mxu0
        %1138 = vmatpush.msra.mxu0 0.0
        %1139 = vmatpush.msra.mxu0 0.0
        %1140 = vmatpush.msra.mxu0 0.0
        %1141 = vmatpush.msra.mxu0 0.0
        %1142 = vmatpush.msra.mxu0 0.0
        %1143 = vmatpush.msra.mxu0 0.0
        %1144 = vmatpush.msra.mxu0 0.0
        %1145 = vmatpush.msra.mxu0 0.0
        %1146 = vmatpush.msra.mxu0 0.0
        %1147 = vmatpush.msra.mxu0 0.0
        %1148 = vmatpush.msra.mxu0 0.0
        %1149 = vmatpush.msra.mxu0 0.0
        %1150 = vmatpush.msra.mxu0 %v1096
        %1151 = vmatpush.msra.mxu0 %v1095
        %1152 = vmatpush.msra.mxu0 %v1094
        %1153 = vmatpush.msra.mxu0 %v1093
        %1154 = vmatmul.f32.gmra.mxu0 %v894
        %v1155 = vpop.f32.mrf.mxu0
        %v1156 = vadd.f32 %v1111, %v1155
        %1157 = vdwg.mxu0
        %1158 = vmatpush.msra.mxu0 0.0
        %1159 = vmatpush.msra.mxu0 0.0
        %1160 = vmatpush.msra.mxu0 0.0
        %1161 = vmatpush.msra.mxu0 0.0
        %1162 = vmatpush.msra.mxu0 0.0
        %1163 = vmatpush.msra.mxu0 0.0
        %1164 = vmatpush.msra.mxu0 0.0
        %1165 = vmatpush.msra.mxu0 0.0
        %1166 = vmatpush.msra.mxu0 0.0
        %1167 = vmatpush.msra.mxu0 0.0
        %1168 = vmatpush.msra.mxu0 0.0
        %1169 = vmatpush.msra.mxu0 0.0
        %1170 = vmatpush.msra.mxu0 %v1100
        %1171 = vmatpush.msra.mxu0 %v1099
        %1172 = vmatpush.msra.mxu0 %v1098
        %1173 = vmatpush.msra.mxu0 %v1097
        %1174 = vmatmul.f32.gmra.mxu0 %v894
        %v1175 = vpop.f32.mrf.mxu0
        %v1176 = vadd.f32 %v1112, %v1175
        %1177 = vdwg.mxu0
        %1178 = vmatpush.msra.mxu0 0.0
        %1179 = vmatpush.msra.mxu0 0.0
        %1180 = vmatpush.msra.mxu0 0.0
        %1181 = vmatpush.msra.mxu0 0.0
        %1182 = vmatpush.msra.mxu0 0.0
        %1183 = vmatpush.msra.mxu0 0.0
        %1184 = vmatpush.msra.mxu0 0.0
        %1185 = vmatpush.msra.mxu0 0.0
        %1186 = vmatpush.msra.mxu0 0.0
        %1187 = vmatpush.msra.mxu0 0.0
        %1188 = vmatpush.msra.mxu0 0.0
        %1189 = vmatpush.msra.mxu0 0.0
        %1190 = vmatpush.msra.mxu0 %v1104
        %1191 = vmatpush.msra.mxu0 %v1103
        %1192 = vmatpush.msra.mxu0 %v1102
        %1193 = vmatpush.msra.mxu0 %v1101
        %1194 = vmatmul.f32.gmra.mxu0 %v894
        %v1195 = vpop.f32.mrf.mxu0
        %v1196 = vadd.f32 %v1113, %v1195
        %1197 = vdwg.mxu0
        %vm1198 = vcmask 64512
        %v1200 = vsel %vm1198, %v976, 0
        %v1203 = vsel %vm1198, %v1027, 0
        %1205 = vmatpush.xpose.msra.mxu0 0.0
        %1206 = vmatpush.xpose.msra.mxu0 0.0
        %1207 = vmatpush.xpose.msra.mxu0 0.0
        %1208 = vmatpush.xpose.msra.mxu0 0.0
        %1209 = vmatpush.xpose.msra.mxu0 0.0
        %1210 = vmatpush.xpose.msra.mxu0 0.0
        %1211 = vmatpush.xpose.msra.mxu0 0.0
        %1212 = vmatpush.xpose.msra.mxu0 0.0
        %1213 = vmatpush.xpose.msra.mxu0 0.0
        %1214 = vmatpush.xpose.msra.mxu0 0.0
        %1215 = vmatpush.xpose.msra.mxu0 0.0
        %1216 = vmatpush.xpose.msra.mxu0 0.0
        %1217 = vmatpush.xpose.msra.mxu0 0.0
        %1218 = vmatpush.xpose.msra.mxu0 0.0
        %1219 = vmatpush.xpose.msra.mxu0 0.0
        %1220 = vmatpush.xpose.msra.mxu0 %v1203
        %1221 = vmatmul.f32.gmra.mxu0 %v1200
        %v1222 = vpop.f32.mrf.mxu0
        %v1223 = vadd.f32 0.0, %v1222
        %1224 = vdwg.mxu0
        %v1226 = vsel %vm1198, %v977, 0
        %v1229 = vsel %vm1198, %v1047, 0
        %1231 = vmatpush.xpose.msra.mxu0 0.0
        %1232 = vmatpush.xpose.msra.mxu0 0.0
        %1233 = vmatpush.xpose.msra.mxu0 0.0
        %1234 = vmatpush.xpose.msra.mxu0 0.0
        %1235 = vmatpush.xpose.msra.mxu0 0.0
        %1236 = vmatpush.xpose.msra.mxu0 0.0
        %1237 = vmatpush.xpose.msra.mxu0 0.0
        %1238 = vmatpush.xpose.msra.mxu0 0.0
        %1239 = vmatpush.xpose.msra.mxu0 0.0
        %1240 = vmatpush.xpose.msra.mxu0 0.0
        %1241 = vmatpush.xpose.msra.mxu0 0.0
        %1242 = vmatpush.xpose.msra.mxu0 0.0
        %1243 = vmatpush.xpose.msra.mxu0 0.0
        %1244 = vmatpush.xpose.msra.mxu0 0.0
        %1245 = vmatpush.xpose.msra.mxu0 0.0
        %1246 = vmatpush.xpose.msra.mxu0 %v1229
        %1247 = vmatmul.f32.gmra.mxu0 %v1226
        %v1248 = vpop.f32.mrf.mxu0
        %v1249 = vadd.f32 0.0, %v1248
        %1250 = vdwg.mxu0
        %v1252 = vsel %vm1198, %v978, 0
        %v1255 = vsel %vm1198, %v1067, 0
        %1257 = vmatpush.xpose.msra.mxu0 0.0
        %1258 = vmatpush.xpose.msra.mxu0 0.0
        %1259 = vmatpush.xpose.msra.mxu0 0.0
        %1260 = vmatpush.xpose.msra.mxu0 0.0
        %1261 = vmatpush.xpose.msra.mxu0 0.0
        %1262 = vmatpush.xpose.msra.mxu0 0.0
        %1263 = vmatpush.xpose.msra.mxu0 0.0
        %1264 = vmatpush.xpose.msra.mxu0 0.0
        %1265 = vmatpush.xpose.msra.mxu0 0.0
        %1266 = vmatpush.xpose.msra.mxu0 0.0
        %1267 = vmatpush.xpose.msra.mxu0 0.0
        %1268 = vmatpush.xpose.msra.mxu0 0.0
        %1269 = vmatpush.xpose.msra.mxu0 0.0
        %1270 = vmatpush.xpose.msra.mxu0 0.0
        %1271 = vmatpush.xpose.msra.mxu0 0.0
        %1272 = vmatpush.xpose.msra.mxu0 %v1255
        %1273 = vmatmul.f32.gmra.mxu0 %v1252
        %v1274 = vpop.f32.mrf.mxu0
        %v1275 = vadd.f32 0.0, %v1274
        %1276 = vdwg.mxu0
        %v1278 = vsel %vm1198, %v979, 0
        %v1281 = vsel %vm1198, %v1087, 0
        %1283 = vmatpush.xpose.msra.mxu0 0.0
        %1284 = vmatpush.xpose.msra.mxu0 0.0
        %1285 = vmatpush.xpose.msra.mxu0 0.0
        %1286 = vmatpush.xpose.msra.mxu0 0.0
        %1287 = vmatpush.xpose.msra.mxu0 0.0
        %1288 = vmatpush.xpose.msra.mxu0 0.0
        %1289 = vmatpush.xpose.msra.mxu0 0.0
        %1290 = vmatpush.xpose.msra.mxu0 0.0
        %1291 = vmatpush.xpose.msra.mxu0 0.0
        %1292 = vmatpush.xpose.msra.mxu0 0.0
        %1293 = vmatpush.xpose.msra.mxu0 0.0
        %1294 = vmatpush.xpose.msra.mxu0 0.0
        %1295 = vmatpush.xpose.msra.mxu0 0.0
        %1296 = vmatpush.xpose.msra.mxu0 0.0
        %1297 = vmatpush.xpose.msra.mxu0 0.0
        %1298 = vmatpush.xpose.msra.mxu0 %v1281
        %1299 = vmatmul.f32.gmra.mxu0 %v1278
        %v1300 = vpop.f32.mrf.mxu0
        %v1301 = vadd.f32 0.0, %v1300
        %1302 = vdwg.mxu0
        %v1303 = vsel %vm1198, %v1223, -inf
        %1304 = vmax.xlane.f32.xlu0 %v1303
        %v1305 = vpop.xlane.xlu0 %1304
        %v1306 = vsel %vm1198, %v1249, -inf
        %1307 = vmax.xlane.f32.xlu0 %v1306
        %v1308 = vpop.xlane.xlu0 %1307
        %v1309 = vsel %vm1198, %v1275, -inf
        %1310 = vmax.xlane.f32.xlu0 %v1309
        %v1311 = vpop.xlane.xlu0 %1310
        %v1312 = vsel %vm1198, %v1301, -inf
        %1313 = vmax.xlane.f32.xlu0 %v1312
        %v1314 = vpop.xlane.xlu0 %1313
        %v1315 = vsub.f32 %v1223, %v1305
        %v1316 = vsub.f32 %v1249, %v1308
        %v1317 = vsub.f32 %v1275, %v1311
        %v1318 = vsub.f32 %v1301, %v1314
        %v1319 = vmul.f32 %v1315, 1.442695
        %v1320 = vpow.pop %v1319
        %v1321 = vmul.f32 %v1316, 1.442695
        %v1322 = vpow.pop %v1321
        %v1323 = vmul.f32 %v1317, 1.442695
        %v1324 = vpow.pop %v1323
        %v1325 = vmul.f32 %v1318, 1.442695
        %v1326 = vpow.pop %v1325
        %v1327 = vsel %vm1198, %v1320, 0.0
        %1328 = vadd.xlane.f32.xlu0 %v1327
        %v1329 = vpop.xlane.xlu0 %1328
        %v1330 = vsel %vm1198, %v1322, 0.0
        %1331 = vadd.xlane.f32.xlu0 %v1330
        %v1332 = vpop.xlane.xlu0 %1331
        %v1333 = vsel %vm1198, %v1324, 0.0
        %1334 = vadd.xlane.f32.xlu0 %v1333
        %v1335 = vpop.xlane.xlu0 %1334
        %v1336 = vsel %vm1198, %v1326, 0.0
        %1337 = vadd.xlane.f32.xlu0 %v1336
        %v1338 = vpop.xlane.xlu0 %1337
        %v1339 = vrcp.pop %v1329
        %v1340 = vrcp.pop %v1332
        %v1341 = vrcp.pop %v1335
        %v1342 = vrcp.pop %v1338
        %v1343 = vmul.f32 %v1320, %v1339
        %v1344 = vmul.f32 %v1322, %v1340
        %v1345 = vmul.f32 %v1324, %v1341
        %v1346 = vmul.f32 %v1326, %v1342
        %v1347 = vmul.f32 %v1343, %v863
        %v1348 = vmul.f32 %v1344, %v863
        %v1349 = vmul.f32 %v1345, %v863
        %v1350 = vmul.f32 %v1346, %v863
        %v1352 = vsel %vm1198, %v1347, 0
        %1354 = vmatpush.msra.mxu0 0.0
        %1355 = vmatpush.msra.mxu0 0.0
        %1356 = vmatpush.msra.mxu0 0.0
        %1357 = vmatpush.msra.mxu0 0.0
        %1358 = vmatpush.msra.mxu0 0.0
        %1359 = vmatpush.msra.mxu0 0.0
        %1360 = vmatpush.msra.mxu0 0.0
        %1361 = vmatpush.msra.mxu0 0.0
        %1362 = vmatpush.msra.mxu0 0.0
        %1363 = vmatpush.msra.mxu0 0.0
        %1364 = vmatpush.msra.mxu0 0.0
        %1365 = vmatpush.msra.mxu0 0.0
        %1366 = vmatpush.msra.mxu0 0.0
        %1367 = vmatpush.msra.mxu0 0.0
        %1368 = vmatpush.msra.mxu0 0.0
        %1369 = vmatpush.msra.mxu0 %v1136
        %1370 = vmatmul.f32.gmra.mxu0 %v1352
        %v1371 = vpop.f32.mrf.mxu0
        %v1372 = vadd.f32 0.0, %v1371
        %1373 = vdwg.mxu0
        %v1375 = vsel %vm1198, %v1348, 0
        %1377 = vmatpush.msra.mxu0 0.0
        %1378 = vmatpush.msra.mxu0 0.0
        %1379 = vmatpush.msra.mxu0 0.0
        %1380 = vmatpush.msra.mxu0 0.0
        %1381 = vmatpush.msra.mxu0 0.0
        %1382 = vmatpush.msra.mxu0 0.0
        %1383 = vmatpush.msra.mxu0 0.0
        %1384 = vmatpush.msra.mxu0 0.0
        %1385 = vmatpush.msra.mxu0 0.0
        %1386 = vmatpush.msra.mxu0 0.0
        %1387 = vmatpush.msra.mxu0 0.0
        %1388 = vmatpush.msra.mxu0 0.0
        %1389 = vmatpush.msra.mxu0 0.0
        %1390 = vmatpush.msra.mxu0 0.0
        %1391 = vmatpush.msra.mxu0 0.0
        %1392 = vmatpush.msra.mxu0 %v1156
        %1393 = vmatmul.f32.gmra.mxu0 %v1375
        %v1394 = vpop.f32.mrf.mxu0
        %v1395 = vadd.f32 0.0, %v1394
        %1396 = vdwg.mxu0
        %v1398 = vsel %vm1198, %v1349, 0
        %1400 = vmatpush.msra.mxu0 0.0
        %1401 = vmatpush.msra.mxu0 0.0
        %1402 = vmatpush.msra.mxu0 0.0
        %1403 = vmatpush.msra.mxu0 0.0
        %1404 = vmatpush.msra.mxu0 0.0
        %1405 = vmatpush.msra.mxu0 0.0
        %1406 = vmatpush.msra.mxu0 0.0
        %1407 = vmatpush.msra.mxu0 0.0
        %1408 = vmatpush.msra.mxu0 0.0
        %1409 = vmatpush.msra.mxu0 0.0
        %1410 = vmatpush.msra.mxu0 0.0
        %1411 = vmatpush.msra.mxu0 0.0
        %1412 = vmatpush.msra.mxu0 0.0
        %1413 = vmatpush.msra.mxu0 0.0
        %1414 = vmatpush.msra.mxu0 0.0
        %1415 = vmatpush.msra.mxu0 %v1176
        %1416 = vmatmul.f32.gmra.mxu0 %v1398
        %v1417 = vpop.f32.mrf.mxu0
        %v1418 = vadd.f32 0.0, %v1417
        %1419 = vdwg.mxu0
        %v1421 = vsel %vm1198, %v1350, 0
        %1423 = vmatpush.msra.mxu0 0.0
        %1424 = vmatpush.msra.mxu0 0.0
        %1425 = vmatpush.msra.mxu0 0.0
        %1426 = vmatpush.msra.mxu0 0.0
        %1427 = vmatpush.msra.mxu0 0.0
        %1428 = vmatpush.msra.mxu0 0.0
        %1429 = vmatpush.msra.mxu0 0.0
        %1430 = vmatpush.msra.mxu0 0.0
        %1431 = vmatpush.msra.mxu0 0.0
        %1432 = vmatpush.msra.mxu0 0.0
        %1433 = vmatpush.msra.mxu0 0.0
        %1434 = vmatpush.msra.mxu0 0.0
        %1435 = vmatpush.msra.mxu0 0.0
        %1436 = vmatpush.msra.mxu0 0.0
        %1437 = vmatpush.msra.mxu0 0.0
        %1438 = vmatpush.msra.mxu0 %v1196
        %1439 = vmatmul.f32.gmra.mxu0 %v1421
        %v1440 = vpop.f32.mrf.mxu0
        %v1441 = vadd.f32 0.0, %v1440
        %1442 = vdwg.mxu0
        %v1443 = vld [vmem:[%s13] sm:$0xff]
        %v1444 = vld [vmem:[%s13 + $0x8] sm:$0xff]
        %v1445 = vld [vmem:[%s13 + $0x10] sm:$0xff]
        %v1446 = vld [vmem:[%s13 + $0x18] sm:$0xff]
        %v1448 = vsel %vm1198, %v1372, 0
        %1450 = vmatpush.msra.mxu0 0.0
        %1451 = vmatpush.msra.mxu0 0.0
        %1452 = vmatpush.msra.mxu0 0.0
        %1453 = vmatpush.msra.mxu0 0.0
        %1454 = vmatpush.msra.mxu0 0.0
        %1455 = vmatpush.msra.mxu0 0.0
        %1456 = vmatpush.msra.mxu0 0.0
        %1457 = vmatpush.msra.mxu0 0.0
        %1458 = vmatpush.msra.mxu0 0.0
        %1459 = vmatpush.msra.mxu0 0.0
        %1460 = vmatpush.msra.mxu0 0.0
        %1461 = vmatpush.msra.mxu0 0.0
        %1462 = vmatpush.msra.mxu0 0.0
        %1463 = vmatpush.msra.mxu0 0.0
        %1464 = vmatpush.msra.mxu0 0.0
        %1465 = vmatpush.msra.mxu0 %v1443
        %1466 = vmatmul.f32.gmra.mxu0 %v1448
        %v1467 = vpop.f32.mrf.mxu0
        %v1468 = vadd.f32 0.0, %v1467
        %1469 = vdwg.mxu0
        %v1471 = vsel %vm1198, %v1395, 0
        %1473 = vmatpush.msra.mxu0 0.0
        %1474 = vmatpush.msra.mxu0 0.0
        %1475 = vmatpush.msra.mxu0 0.0
        %1476 = vmatpush.msra.mxu0 0.0
        %1477 = vmatpush.msra.mxu0 0.0
        %1478 = vmatpush.msra.mxu0 0.0
        %1479 = vmatpush.msra.mxu0 0.0
        %1480 = vmatpush.msra.mxu0 0.0
        %1481 = vmatpush.msra.mxu0 0.0
        %1482 = vmatpush.msra.mxu0 0.0
        %1483 = vmatpush.msra.mxu0 0.0
        %1484 = vmatpush.msra.mxu0 0.0
        %1485 = vmatpush.msra.mxu0 0.0
        %1486 = vmatpush.msra.mxu0 0.0
        %1487 = vmatpush.msra.mxu0 0.0
        %1488 = vmatpush.msra.mxu0 %v1444
        %1489 = vmatmul.f32.gmra.mxu0 %v1471
        %v1490 = vpop.f32.mrf.mxu0
        %v1491 = vadd.f32 0.0, %v1490
        %1492 = vdwg.mxu0
        %v1494 = vsel %vm1198, %v1418, 0
        %1496 = vmatpush.msra.mxu0 0.0
        %1497 = vmatpush.msra.mxu0 0.0
        %1498 = vmatpush.msra.mxu0 0.0
        %1499 = vmatpush.msra.mxu0 0.0
        %1500 = vmatpush.msra.mxu0 0.0
        %1501 = vmatpush.msra.mxu0 0.0
        %1502 = vmatpush.msra.mxu0 0.0
        %1503 = vmatpush.msra.mxu0 0.0
        %1504 = vmatpush.msra.mxu0 0.0
        %1505 = vmatpush.msra.mxu0 0.0
        %1506 = vmatpush.msra.mxu0 0.0
        %1507 = vmatpush.msra.mxu0 0.0
        %1508 = vmatpush.msra.mxu0 0.0
        %1509 = vmatpush.msra.mxu0 0.0
        %1510 = vmatpush.msra.mxu0 0.0
        %1511 = vmatpush.msra.mxu0 %v1445
        %1512 = vmatmul.f32.gmra.mxu0 %v1494
        %v1513 = vpop.f32.mrf.mxu0
        %v1514 = vadd.f32 0.0, %v1513
        %1515 = vdwg.mxu0
        %v1517 = vsel %vm1198, %v1441, 0
        %1519 = vmatpush.msra.mxu0 0.0
        %1520 = vmatpush.msra.mxu0 0.0
        %1521 = vmatpush.msra.mxu0 0.0
        %1522 = vmatpush.msra.mxu0 0.0
        %1523 = vmatpush.msra.mxu0 0.0
        %1524 = vmatpush.msra.mxu0 0.0
        %1525 = vmatpush.msra.mxu0 0.0
        %1526 = vmatpush.msra.mxu0 0.0
        %1527 = vmatpush.msra.mxu0 0.0
        %1528 = vmatpush.msra.mxu0 0.0
        %1529 = vmatpush.msra.mxu0 0.0
        %1530 = vmatpush.msra.mxu0 0.0
        %1531 = vmatpush.msra.mxu0 0.0
        %1532 = vmatpush.msra.mxu0 0.0
        %1533 = vmatpush.msra.mxu0 0.0
        %1534 = vmatpush.msra.mxu0 %v1446
        %1535 = vmatmul.f32.gmra.mxu0 %v1517
        %v1536 = vpop.f32.mrf.mxu0
        %v1537 = vadd.f32 0.0, %v1536
        %1538 = vdwg.mxu0
        %v1539 = vsel %vm796, %v1468, 0.0
        %v1540 = vsel %vm796, %v1491, 0.0
        %v1541 = vadd.f32 %v1539, %v1540
        %v1542 = vsel %vm796, %v1514, 0.0
        %v1543 = vadd.f32 %v1541, %v1542
        %v1544 = vsel %vm796, %v1537, 0.0
        %v1545 = vadd.f32 %v1543, %v1544
        %v1546 = vld [vmem:[%s14] sm:$0x1]
        %v1548 = vperm.slane %v1546, 0
        %v1550 = vadd.f32 %v1545, %v1548
        %v1551 = vadd.f32 %v833, %v1550
        %v1552 = vld [vmem:[%s15] sm:$0x1]
        %v1553 = vld [vmem:[%s16] sm:$0x1]
        %v1554 = vsel %vm796, %v1551, 0.0
        %1555 = vadd.xlane.f32.xlu0 %v1554
        %v1556 = vpop.xlane.xlu0 %1555
        %v1557 = vmul.f32 %v1556, %v806
        %v1558 = vsub.f32 %v1551, %v1557
        %v1559 = vmul.f32 %v1558, %v1558
        %v1560 = vsel %vm796, %v1559, 0.0
        %1561 = vadd.xlane.f32.xlu0 %v1560
        %v1562 = vpop.xlane.xlu0 %1561
        %v1563 = vmul.f32 %v1562, %v806
        %v1564 = vadd.f32 %v1563, 1e-05
        %v1565 = vrsqrt.pop %v1564
        %v1566 = vmul.f32 %v1565, %v1564
        %v1567 = vmul.f32 %v1566, %v1565
        %v1568 = vmul.f32 0.5, %v1567
        %v1569 = vsub.f32 1.5, %v1568
        %v1570 = vmul.f32 %v1565, %v1569
        %vm1571 = vweird.f32 %v1564
        %vm1572 = vweird.f32 %v1565
        %vm1573 = vmor %vm1571, %vm1572
        %v1574 = vsel %vm1573, %v1565, %v1570
        %v1575 = vmul.f32 %v1558, %v1574
        %v1577 = vperm.slane %v1552, 0
        %v1579 = vmul.f32 %v1575, %v1577
        %v1581 = vperm.slane %v1553, 0
        %v1583 = vadd.f32 %v1579, %v1581
        %v1584 = vld [vmem:[%s17] sm:$0xff]
        %v1585 = vld [vmem:[%s17 + $0x8] sm:$0xff]
        %v1586 = vld [vmem:[%s17 + $0x10] sm:$0xff]
        %v1587 = vld [vmem:[%s17 + $0x18] sm:$0xff]
        %v1588 = vld [vmem:[%s18] sm:$0x1]
        %v1590 = vperm.slane %v1588, 0
        %v1593 = vsel %vm796, %v1583, 0
        %1595 = vmatpush.msra.mxu0 0.0
        %1596 = vmatpush.msra.mxu0 0.0
        %1597 = vmatpush.msra.mxu0 0.0
        %1598 = vmatpush.msra.mxu0 0.0
        %1599 = vmatpush.msra.mxu0 0.0
        %1600 = vmatpush.msra.mxu0 0.0
        %1601 = vmatpush.msra.mxu0 0.0
        %1602 = vmatpush.msra.mxu0 0.0
        %1603 = vmatpush.msra.mxu0 0.0
        %1604 = vmatpush.msra.mxu0 0.0
        %1605 = vmatpush.msra.mxu0 0.0
        %1606 = vmatpush.msra.mxu0 0.0
        %1607 = vmatpush.msra.mxu0 %v1587
        %1608 = vmatpush.msra.mxu0 %v1586
        %1609 = vmatpush.msra.mxu0 %v1585
        %1610 = vmatpush.msra.mxu0 %v1584
        %1611 = vmatmul.f32.gmra.mxu0 %v1593
        %v1612 = vpop.f32.mrf.mxu0
        %v1613 = vadd.f32 %v1590, %v1612
        %1614 = vdwg.mxu0
        %v1615 = vmax.f32 %v1613, 0.0
        %v1616 = vld [vmem:[%s19] sm:$0xff]
        %v1617 = vld [vmem:[%s19 + $0x8] sm:$0xff]
        %v1618 = vld [vmem:[%s19 + $0x10] sm:$0xff]
        %v1619 = vld [vmem:[%s19 + $0x18] sm:$0xff]
        %v1620 = vld [vmem:[%s19 + $0x20] sm:$0xff]
        %v1621 = vld [vmem:[%s19 + $0x28] sm:$0xff]
        %v1622 = vld [vmem:[%s19 + $0x30] sm:$0xff]
        %v1623 = vld [vmem:[%s19 + $0x38] sm:$0xff]
        %v1624 = vld [vmem:[%s20] sm:$0x1]
        %v1626 = vperm.slane %v1624, 0
        %vm1628 = vcmask 523264
        %v1630 = vsel %vm1628, %v1615, 0
        %1632 = vmatpush.msra.mxu0 0.0
        %1633 = vmatpush.msra.mxu0 0.0
        %1634 = vmatpush.msra.mxu0 0.0
        %1635 = vmatpush.msra.mxu0 0.0
        %1636 = vmatpush.msra.mxu0 0.0
        %1637 = vmatpush.msra.mxu0 0.0
        %1638 = vmatpush.msra.mxu0 0.0
        %1639 = vmatpush.msra.mxu0 0.0
        %1640 = vmatpush.msra.mxu0 %v1623
        %1641 = vmatpush.msra.mxu0 %v1622
        %1642 = vmatpush.msra.mxu0 %v1621
        %1643 = vmatpush.msra.mxu0 %v1620
        %1644 = vmatpush.msra.mxu0 %v1619
        %1645 = vmatpush.msra.mxu0 %v1618
        %1646 = vmatpush.msra.mxu0 %v1617
        %1647 = vmatpush.msra.mxu0 %v1616
        %1648 = vmatmul.f32.gmra.mxu0 %v1630
        %v1649 = vpop.f32.mrf.mxu0
        %v1650 = vadd.f32 %v1626, %v1649
        %1651 = vdwg.mxu0
        %v1652 = vadd.f32 %v1583, %v1650
        %v1653 = vld [vmem:[%s21] sm:$0x1]
        %v1654 = vld [vmem:[%s22] sm:$0x1]
        %v1655 = vsel %vm796, %v1652, 0.0
        %1656 = vadd.xlane.f32.xlu0 %v1655
        %v1657 = vpop.xlane.xlu0 %1656
        %v1658 = vmul.f32 %v1657, %v806
        %v1659 = vsub.f32 %v1652, %v1658
        %v1660 = vmul.f32 %v1659, %v1659
        %v1661 = vsel %vm796, %v1660, 0.0
        %1662 = vadd.xlane.f32.xlu0 %v1661
        %v1663 = vpop.xlane.xlu0 %1662
        %v1664 = vmul.f32 %v1663, %v806
        %v1665 = vadd.f32 %v1664, 1e-05
        %v1666 = vrsqrt.pop %v1665
        %v1667 = vmul.f32 %v1666, %v1665
        %v1668 = vmul.f32 %v1667, %v1666
        %v1669 = vmul.f32 0.5, %v1668
        %v1670 = vsub.f32 1.5, %v1669
        %v1671 = vmul.f32 %v1666, %v1670
        %vm1672 = vweird.f32 %v1665
        %vm1673 = vweird.f32 %v1666
        %vm1674 = vmor %vm1672, %vm1673
        %v1675 = vsel %vm1674, %v1666, %v1671
        %v1676 = vmul.f32 %v1659, %v1675
        %v1678 = vperm.slane %v1653, 0
        %v1680 = vmul.f32 %v1676, %v1678
        %v1682 = vperm.slane %v1654, 0
        %v1684 = vadd.f32 %v1680, %v1682
        %s1685 = scalar_lea.vmem %s7, 128
        %v1686 = vld [vmem:[%s1685] sm:$0xff]
        %v1687 = vld [vmem:[%s1685 + $0x8] sm:$0xff]
        %v1688 = vld [vmem:[%s1685 + $0x10] sm:$0xff]
        %v1689 = vld [vmem:[%s1685 + $0x18] sm:$0xff]
        %v1690 = vld [vmem:[%s1685 + $0x20] sm:$0xff]
        %v1691 = vld [vmem:[%s1685 + $0x28] sm:$0xff]
        %v1692 = vld [vmem:[%s1685 + $0x30] sm:$0xff]
        %v1693 = vld [vmem:[%s1685 + $0x38] sm:$0xff]
        %v1694 = vld [vmem:[%s1685 + $0x40] sm:$0xff]
        %v1695 = vld [vmem:[%s1685 + $0x48] sm:$0xff]
        %v1696 = vld [vmem:[%s1685 + $0x50] sm:$0xff]
        %v1697 = vld [vmem:[%s1685 + $0x58] sm:$0xff]
        %v1698 = vld [vmem:[%s1685 + $0x60] sm:$0xff]
        %v1699 = vld [vmem:[%s1685 + $0x68] sm:$0xff]
        %v1700 = vld [vmem:[%s1685 + $0x70] sm:$0xff]
        %v1701 = vld [vmem:[%s1685 + $0x78] sm:$0xff]
        %s1702 = scalar_lea.vmem %s8, 4
        %v1703 = vld [vmem:[%s1702] sm:$0xf]
        %v1705 = vrot.slane %v1703, 1
        %v1706 = vrot.slane %v1703, 2
        %v1707 = vrot.slane %v1703, 3
        %v1708 = vperm.slane %v1703, 0
        %v1709 = vperm.slane %v1705, 0
        %v1710 = vperm.slane %v1706, 0
        %v1711 = vperm.slane %v1707, 0
        %v1717 = vsel %vm796, %v1684, 0
        %1719 = vmatpush.msra.mxu0 0.0
        %1720 = vmatpush.msra.mxu0 0.0
        %1721 = vmatpush.msra.mxu0 0.0
        %1722 = vmatpush.msra.mxu0 0.0
        %1723 = vmatpush.msra.mxu0 0.0
        %1724 = vmatpush.msra.mxu0 0.0
        %1725 = vmatpush.msra.mxu0 0.0
        %1726 = vmatpush.msra.mxu0 0.0
        %1727 = vmatpush.msra.mxu0 0.0
        %1728 = vmatpush.msra.mxu0 0.0
        %1729 = vmatpush.msra.mxu0 0.0
        %1730 = vmatpush.msra.mxu0 0.0
        %1731 = vmatpush.msra.mxu0 %v1689
        %1732 = vmatpush.msra.mxu0 %v1688
        %1733 = vmatpush.msra.mxu0 %v1687
        %1734 = vmatpush.msra.mxu0 %v1686
        %1735 = vmatmul.f32.gmra.mxu0 %v1717
        %v1736 = vpop.f32.mrf.mxu0
        %v1737 = vadd.f32 %v1708, %v1736
        %1738 = vdwg.mxu0
        %1739 = vmatpush.msra.mxu0 0.0
        %1740 = vmatpush.msra.mxu0 0.0
        %1741 = vmatpush.msra.mxu0 0.0
        %1742 = vmatpush.msra.mxu0 0.0
        %1743 = vmatpush.msra.mxu0 0.0
        %1744 = vmatpush.msra.mxu0 0.0
        %1745 = vmatpush.msra.mxu0 0.0
        %1746 = vmatpush.msra.mxu0 0.0
        %1747 = vmatpush.msra.mxu0 0.0
        %1748 = vmatpush.msra.mxu0 0.0
        %1749 = vmatpush.msra.mxu0 0.0
        %1750 = vmatpush.msra.mxu0 0.0
        %1751 = vmatpush.msra.mxu0 %v1693
        %1752 = vmatpush.msra.mxu0 %v1692
        %1753 = vmatpush.msra.mxu0 %v1691
        %1754 = vmatpush.msra.mxu0 %v1690
        %1755 = vmatmul.f32.gmra.mxu0 %v1717
        %v1756 = vpop.f32.mrf.mxu0
        %v1757 = vadd.f32 %v1709, %v1756
        %1758 = vdwg.mxu0
        %1759 = vmatpush.msra.mxu0 0.0
        %1760 = vmatpush.msra.mxu0 0.0
        %1761 = vmatpush.msra.mxu0 0.0
        %1762 = vmatpush.msra.mxu0 0.0
        %1763 = vmatpush.msra.mxu0 0.0
        %1764 = vmatpush.msra.mxu0 0.0
        %1765 = vmatpush.msra.mxu0 0.0
        %1766 = vmatpush.msra.mxu0 0.0
        %1767 = vmatpush.msra.mxu0 0.0
        %1768 = vmatpush.msra.mxu0 0.0
        %1769 = vmatpush.msra.mxu0 0.0
        %1770 = vmatpush.msra.mxu0 0.0
        %1771 = vmatpush.msra.mxu0 %v1697
        %1772 = vmatpush.msra.mxu0 %v1696
        %1773 = vmatpush.msra.mxu0 %v1695
        %1774 = vmatpush.msra.mxu0 %v1694
        %1775 = vmatmul.f32.gmra.mxu0 %v1717
        %v1776 = vpop.f32.mrf.mxu0
        %v1777 = vadd.f32 %v1710, %v1776
        %1778 = vdwg.mxu0
        %1779 = vmatpush.msra.mxu0 0.0
        %1780 = vmatpush.msra.mxu0 0.0
        %1781 = vmatpush.msra.mxu0 0.0
        %1782 = vmatpush.msra.mxu0 0.0
        %1783 = vmatpush.msra.mxu0 0.0
        %1784 = vmatpush.msra.mxu0 0.0
        %1785 = vmatpush.msra.mxu0 0.0
        %1786 = vmatpush.msra.mxu0 0.0
        %1787 = vmatpush.msra.mxu0 0.0
        %1788 = vmatpush.msra.mxu0 0.0
        %1789 = vmatpush.msra.mxu0 0.0
        %1790 = vmatpush.msra.mxu0 0.0
        %1791 = vmatpush.msra.mxu0 %v1701
        %1792 = vmatpush.msra.mxu0 %v1700
        %1793 = vmatpush.msra.mxu0 %v1699
        %1794 = vmatpush.msra.mxu0 %v1698
        %1795 = vmatmul.f32.gmra.mxu0 %v1717
        %v1796 = vpop.f32.mrf.mxu0
        %v1797 = vadd.f32 %v1711, %v1796
        %1798 = vdwg.mxu0
        %v1799 = vmul.f32 %v1737, 0.35355338
        %v1800 = vmul.f32 %v1757, 0.35355338
        %v1801 = vmul.f32 %v1777, 0.35355338
        %v1802 = vmul.f32 %v1797, 0.35355338
        %s1803 = scalar_lea.vmem %s9, 128
        %v1804 = vld [vmem:[%s1803] sm:$0xff]
        %v1805 = vld [vmem:[%s1803 + $0x8] sm:$0xff]
        %v1806 = vld [vmem:[%s1803 + $0x10] sm:$0xff]
        %v1807 = vld [vmem:[%s1803 + $0x18] sm:$0xff]
        %v1808 = vld [vmem:[%s1803 + $0x20] sm:$0xff]
        %v1809 = vld [vmem:[%s1803 + $0x28] sm:$0xff]
        %v1810 = vld [vmem:[%s1803 + $0x30] sm:$0xff]
        %v1811 = vld [vmem:[%s1803 + $0x38] sm:$0xff]
        %v1812 = vld [vmem:[%s1803 + $0x40] sm:$0xff]
        %v1813 = vld [vmem:[%s1803 + $0x48] sm:$0xff]
        %v1814 = vld [vmem:[%s1803 + $0x50] sm:$0xff]
        %v1815 = vld [vmem:[%s1803 + $0x58] sm:$0xff]
        %v1816 = vld [vmem:[%s1803 + $0x60] sm:$0xff]
        %v1817 = vld [vmem:[%s1803 + $0x68] sm:$0xff]
        %v1818 = vld [vmem:[%s1803 + $0x70] sm:$0xff]
        %v1819 = vld [vmem:[%s1803 + $0x78] sm:$0xff]
        %s1820 = scalar_lea.vmem %s10, 4
        %v1821 = vld [vmem:[%s1820] sm:$0xf]
        %v1823 = vrot.slane %v1821, 1
        %v1824 = vrot.slane %v1821, 2
        %v1825 = vrot.slane %v1821, 3
        %v1826 = vperm.slane %v1821, 0
        %v1827 = vperm.slane %v1823, 0
        %v1828 = vperm.slane %v1824, 0
        %v1829 = vperm.slane %v1825, 0
        %1834 = vmatpush.msra.mxu0 0.0
        %1835 = vmatpush.msra.mxu0 0.0
        %1836 = vmatpush.msra.mxu0 0.0
        %1837 = vmatpush.msra.mxu0 0.0
        %1838 = vmatpush.msra.mxu0 0.0
        %1839 = vmatpush.msra.mxu0 0.0
        %1840 = vmatpush.msra.mxu0 0.0
        %1841 = vmatpush.msra.mxu0 0.0
        %1842 = vmatpush.msra.mxu0 0.0
        %1843 = vmatpush.msra.mxu0 0.0
        %1844 = vmatpush.msra.mxu0 0.0
        %1845 = vmatpush.msra.mxu0 0.0
        %1846 = vmatpush.msra.mxu0 %v1807
        %1847 = vmatpush.msra.mxu0 %v1806
        %1848 = vmatpush.msra.mxu0 %v1805
        %1849 = vmatpush.msra.mxu0 %v1804
        %1850 = vmatmul.f32.gmra.mxu0 %v1717
        %v1851 = vpop.f32.mrf.mxu0
        %v1852 = vadd.f32 %v1826, %v1851
        %1853 = vdwg.mxu0
        %1854 = vmatpush.msra.mxu0 0.0
        %1855 = vmatpush.msra.mxu0 0.0
        %1856 = vmatpush.msra.mxu0 0.0
        %1857 = vmatpush.msra.mxu0 0.0
        %1858 = vmatpush.msra.mxu0 0.0
        %1859 = vmatpush.msra.mxu0 0.0
        %1860 = vmatpush.msra.mxu0 0.0
        %1861 = vmatpush.msra.mxu0 0.0
        %1862 = vmatpush.msra.mxu0 0.0
        %1863 = vmatpush.msra.mxu0 0.0
        %1864 = vmatpush.msra.mxu0 0.0
        %1865 = vmatpush.msra.mxu0 0.0
        %1866 = vmatpush.msra.mxu0 %v1811
        %1867 = vmatpush.msra.mxu0 %v1810
        %1868 = vmatpush.msra.mxu0 %v1809
        %1869 = vmatpush.msra.mxu0 %v1808
        %1870 = vmatmul.f32.gmra.mxu0 %v1717
        %v1871 = vpop.f32.mrf.mxu0
        %v1872 = vadd.f32 %v1827, %v1871
        %1873 = vdwg.mxu0
        %1874 = vmatpush.msra.mxu0 0.0
        %1875 = vmatpush.msra.mxu0 0.0
        %1876 = vmatpush.msra.mxu0 0.0
        %1877 = vmatpush.msra.mxu0 0.0
        %1878 = vmatpush.msra.mxu0 0.0
        %1879 = vmatpush.msra.mxu0 0.0
        %1880 = vmatpush.msra.mxu0 0.0
        %1881 = vmatpush.msra.mxu0 0.0
        %1882 = vmatpush.msra.mxu0 0.0
        %1883 = vmatpush.msra.mxu0 0.0
        %1884 = vmatpush.msra.mxu0 0.0
        %1885 = vmatpush.msra.mxu0 0.0
        %1886 = vmatpush.msra.mxu0 %v1815
        %1887 = vmatpush.msra.mxu0 %v1814
        %1888 = vmatpush.msra.mxu0 %v1813
        %1889 = vmatpush.msra.mxu0 %v1812
        %1890 = vmatmul.f32.gmra.mxu0 %v1717
        %v1891 = vpop.f32.mrf.mxu0
        %v1892 = vadd.f32 %v1828, %v1891
        %1893 = vdwg.mxu0
        %1894 = vmatpush.msra.mxu0 0.0
        %1895 = vmatpush.msra.mxu0 0.0
        %1896 = vmatpush.msra.mxu0 0.0
        %1897 = vmatpush.msra.mxu0 0.0
        %1898 = vmatpush.msra.mxu0 0.0
        %1899 = vmatpush.msra.mxu0 0.0
        %1900 = vmatpush.msra.mxu0 0.0
        %1901 = vmatpush.msra.mxu0 0.0
        %1902 = vmatpush.msra.mxu0 0.0
        %1903 = vmatpush.msra.mxu0 0.0
        %1904 = vmatpush.msra.mxu0 0.0
        %1905 = vmatpush.msra.mxu0 0.0
        %1906 = vmatpush.msra.mxu0 %v1819
        %1907 = vmatpush.msra.mxu0 %v1818
        %1908 = vmatpush.msra.mxu0 %v1817
        %1909 = vmatpush.msra.mxu0 %v1816
        %1910 = vmatmul.f32.gmra.mxu0 %v1717
        %v1911 = vpop.f32.mrf.mxu0
        %v1912 = vadd.f32 %v1829, %v1911
        %1913 = vdwg.mxu0
        %s1914 = scalar_lea.vmem %s11, 128
        %v1915 = vld [vmem:[%s1914] sm:$0xff]
        %v1916 = vld [vmem:[%s1914 + $0x8] sm:$0xff]
        %v1917 = vld [vmem:[%s1914 + $0x10] sm:$0xff]
        %v1918 = vld [vmem:[%s1914 + $0x18] sm:$0xff]
        %v1919 = vld [vmem:[%s1914 + $0x20] sm:$0xff]
        %v1920 = vld [vmem:[%s1914 + $0x28] sm:$0xff]
        %v1921 = vld [vmem:[%s1914 + $0x30] sm:$0xff]
        %v1922 = vld [vmem:[%s1914 + $0x38] sm:$0xff]
        %v1923 = vld [vmem:[%s1914 + $0x40] sm:$0xff]
        %v1924 = vld [vmem:[%s1914 + $0x48] sm:$0xff]
        %v1925 = vld [vmem:[%s1914 + $0x50] sm:$0xff]
        %v1926 = vld [vmem:[%s1914 + $0x58] sm:$0xff]
        %v1927 = vld [vmem:[%s1914 + $0x60] sm:$0xff]
        %v1928 = vld [vmem:[%s1914 + $0x68] sm:$0xff]
        %v1929 = vld [vmem:[%s1914 + $0x70] sm:$0xff]
        %v1930 = vld [vmem:[%s1914 + $0x78] sm:$0xff]
        %s1931 = scalar_lea.vmem %s12, 4
        %v1932 = vld [vmem:[%s1931] sm:$0xf]
        %v1934 = vrot.slane %v1932, 1
        %v1935 = vrot.slane %v1932, 2
        %v1936 = vrot.slane %v1932, 3
        %v1937 = vperm.slane %v1932, 0
        %v1938 = vperm.slane %v1934, 0
        %v1939 = vperm.slane %v1935, 0
        %v1940 = vperm.slane %v1936, 0
        %1945 = vmatpush.msra.mxu0 0.0
        %1946 = vmatpush.msra.mxu0 0.0
        %1947 = vmatpush.msra.mxu0 0.0
        %1948 = vmatpush.msra.mxu0 0.0
        %1949 = vmatpush.msra.mxu0 0.0
        %1950 = vmatpush.msra.mxu0 0.0
        %1951 = vmatpush.msra.mxu0 0.0
        %1952 = vmatpush.msra.mxu0 0.0
        %1953 = vmatpush.msra.mxu0 0.0
        %1954 = vmatpush.msra.mxu0 0.0
        %1955 = vmatpush.msra.mxu0 0.0
        %1956 = vmatpush.msra.mxu0 0.0
        %1957 = vmatpush.msra.mxu0 %v1918
        %1958 = vmatpush.msra.mxu0 %v1917
        %1959 = vmatpush.msra.mxu0 %v1916
        %1960 = vmatpush.msra.mxu0 %v1915
        %1961 = vmatmul.f32.gmra.mxu0 %v1717
        %v1962 = vpop.f32.mrf.mxu0
        %v1963 = vadd.f32 %v1937, %v1962
        %1964 = vdwg.mxu0
        %1965 = vmatpush.msra.mxu0 0.0
        %1966 = vmatpush.msra.mxu0 0.0
        %1967 = vmatpush.msra.mxu0 0.0
        %1968 = vmatpush.msra.mxu0 0.0
        %1969 = vmatpush.msra.mxu0 0.0
        %1970 = vmatpush.msra.mxu0 0.0
        %1971 = vmatpush.msra.mxu0 0.0
        %1972 = vmatpush.msra.mxu0 0.0
        %1973 = vmatpush.msra.mxu0 0.0
        %1974 = vmatpush.msra.mxu0 0.0
        %1975 = vmatpush.msra.mxu0 0.0
        %1976 = vmatpush.msra.mxu0 0.0
        %1977 = vmatpush.msra.mxu0 %v1922
        %1978 = vmatpush.msra.mxu0 %v1921
        %1979 = vmatpush.msra.mxu0 %v1920
        %1980 = vmatpush.msra.mxu0 %v1919
        %1981 = vmatmul.f32.gmra.mxu0 %v1717
        %v1982 = vpop.f32.mrf.mxu0
        %v1983 = vadd.f32 %v1938, %v1982
        %1984 = vdwg.mxu0
        %1985 = vmatpush.msra.mxu0 0.0
        %1986 = vmatpush.msra.mxu0 0.0
        %1987 = vmatpush.msra.mxu0 0.0
        %1988 = vmatpush.msra.mxu0 0.0
        %1989 = vmatpush.msra.mxu0 0.0
        %1990 = vmatpush.msra.mxu0 0.0
        %1991 = vmatpush.msra.mxu0 0.0
        %1992 = vmatpush.msra.mxu0 0.0
        %1993 = vmatpush.msra.mxu0 0.0
        %1994 = vmatpush.msra.mxu0 0.0
        %1995 = vmatpush.msra.mxu0 0.0
        %1996 = vmatpush.msra.mxu0 0.0
        %1997 = vmatpush.msra.mxu0 %v1926
        %1998 = vmatpush.msra.mxu0 %v1925
        %1999 = vmatpush.msra.mxu0 %v1924
        %2000 = vmatpush.msra.mxu0 %v1923
        %2001 = vmatmul.f32.gmra.mxu0 %v1717
        %v2002 = vpop.f32.mrf.mxu0
        %v2003 = vadd.f32 %v1939, %v2002
        %2004 = vdwg.mxu0
        %2005 = vmatpush.msra.mxu0 0.0
        %2006 = vmatpush.msra.mxu0 0.0
        %2007 = vmatpush.msra.mxu0 0.0
        %2008 = vmatpush.msra.mxu0 0.0
        %2009 = vmatpush.msra.mxu0 0.0
        %2010 = vmatpush.msra.mxu0 0.0
        %2011 = vmatpush.msra.mxu0 0.0
        %2012 = vmatpush.msra.mxu0 0.0
        %2013 = vmatpush.msra.mxu0 0.0
        %2014 = vmatpush.msra.mxu0 0.0
        %2015 = vmatpush.msra.mxu0 0.0
        %2016 = vmatpush.msra.mxu0 0.0
        %2017 = vmatpush.msra.mxu0 %v1930
        %2018 = vmatpush.msra.mxu0 %v1929
        %2019 = vmatpush.msra.mxu0 %v1928
        %2020 = vmatpush.msra.mxu0 %v1927
        %2021 = vmatmul.f32.gmra.mxu0 %v1717
        %v2022 = vpop.f32.mrf.mxu0
        %v2023 = vadd.f32 %v1940, %v2022
        %2024 = vdwg.mxu0
        %v2026 = vsel %vm1198, %v1799, 0
        %v2029 = vsel %vm1198, %v1852, 0
        %2031 = vmatpush.xpose.msra.mxu0 0.0
        %2032 = vmatpush.xpose.msra.mxu0 0.0
        %2033 = vmatpush.xpose.msra.mxu0 0.0
        %2034 = vmatpush.xpose.msra.mxu0 0.0
        %2035 = vmatpush.xpose.msra.mxu0 0.0
        %2036 = vmatpush.xpose.msra.mxu0 0.0
        %2037 = vmatpush.xpose.msra.mxu0 0.0
        %2038 = vmatpush.xpose.msra.mxu0 0.0
        %2039 = vmatpush.xpose.msra.mxu0 0.0
        %2040 = vmatpush.xpose.msra.mxu0 0.0
        %2041 = vmatpush.xpose.msra.mxu0 0.0
        %2042 = vmatpush.xpose.msra.mxu0 0.0
        %2043 = vmatpush.xpose.msra.mxu0 0.0
        %2044 = vmatpush.xpose.msra.mxu0 0.0
        %2045 = vmatpush.xpose.msra.mxu0 0.0
        %2046 = vmatpush.xpose.msra.mxu0 %v2029
        %2047 = vmatmul.f32.gmra.mxu0 %v2026
        %v2048 = vpop.f32.mrf.mxu0
        %v2049 = vadd.f32 0.0, %v2048
        %2050 = vdwg.mxu0
        %v2052 = vsel %vm1198, %v1800, 0
        %v2055 = vsel %vm1198, %v1872, 0
        %2057 = vmatpush.xpose.msra.mxu0 0.0
        %2058 = vmatpush.xpose.msra.mxu0 0.0
        %2059 = vmatpush.xpose.msra.mxu0 0.0
        %2060 = vmatpush.xpose.msra.mxu0 0.0
        %2061 = vmatpush.xpose.msra.mxu0 0.0
        %2062 = vmatpush.xpose.msra.mxu0 0.0
        %2063 = vmatpush.xpose.msra.mxu0 0.0
        %2064 = vmatpush.xpose.msra.mxu0 0.0
        %2065 = vmatpush.xpose.msra.mxu0 0.0
        %2066 = vmatpush.xpose.msra.mxu0 0.0
        %2067 = vmatpush.xpose.msra.mxu0 0.0
        %2068 = vmatpush.xpose.msra.mxu0 0.0
        %2069 = vmatpush.xpose.msra.mxu0 0.0
        %2070 = vmatpush.xpose.msra.mxu0 0.0
        %2071 = vmatpush.xpose.msra.mxu0 0.0
        %2072 = vmatpush.xpose.msra.mxu0 %v2055
        %2073 = vmatmul.f32.gmra.mxu0 %v2052
        %v2074 = vpop.f32.mrf.mxu0
        %v2075 = vadd.f32 0.0, %v2074
        %2076 = vdwg.mxu0
        %v2078 = vsel %vm1198, %v1801, 0
        %v2081 = vsel %vm1198, %v1892, 0
        %2083 = vmatpush.xpose.msra.mxu0 0.0
        %2084 = vmatpush.xpose.msra.mxu0 0.0
        %2085 = vmatpush.xpose.msra.mxu0 0.0
        %2086 = vmatpush.xpose.msra.mxu0 0.0
        %2087 = vmatpush.xpose.msra.mxu0 0.0
        %2088 = vmatpush.xpose.msra.mxu0 0.0
        %2089 = vmatpush.xpose.msra.mxu0 0.0
        %2090 = vmatpush.xpose.msra.mxu0 0.0
        %2091 = vmatpush.xpose.msra.mxu0 0.0
        %2092 = vmatpush.xpose.msra.mxu0 0.0
        %2093 = vmatpush.xpose.msra.mxu0 0.0
        %2094 = vmatpush.xpose.msra.mxu0 0.0
        %2095 = vmatpush.xpose.msra.mxu0 0.0
        %2096 = vmatpush.xpose.msra.mxu0 0.0
        %2097 = vmatpush.xpose.msra.mxu0 0.0
        %2098 = vmatpush.xpose.msra.mxu0 %v2081
        %2099 = vmatmul.f32.gmra.mxu0 %v2078
        %v2100 = vpop.f32.mrf.mxu0
        %v2101 = vadd.f32 0.0, %v2100
        %2102 = vdwg.mxu0
        %v2104 = vsel %vm1198, %v1802, 0
        %v2107 = vsel %vm1198, %v1912, 0
        %2109 = vmatpush.xpose.msra.mxu0 0.0
        %2110 = vmatpush.xpose.msra.mxu0 0.0
        %2111 = vmatpush.xpose.msra.mxu0 0.0
        %2112 = vmatpush.xpose.msra.mxu0 0.0
        %2113 = vmatpush.xpose.msra.mxu0 0.0
        %2114 = vmatpush.xpose.msra.mxu0 0.0
        %2115 = vmatpush.xpose.msra.mxu0 0.0
        %2116 = vmatpush.xpose.msra.mxu0 0.0
        %2117 = vmatpush.xpose.msra.mxu0 0.0
        %2118 = vmatpush.xpose.msra.mxu0 0.0
        %2119 = vmatpush.xpose.msra.mxu0 0.0
        %2120 = vmatpush.xpose.msra.mxu0 0.0
        %2121 = vmatpush.xpose.msra.mxu0 0.0
        %2122 = vmatpush.xpose.msra.mxu0 0.0
        %2123 = vmatpush.xpose.msra.mxu0 0.0
        %2124 = vmatpush.xpose.msra.mxu0 %v2107
        %2125 = vmatmul.f32.gmra.mxu0 %v2104
        %v2126 = vpop.f32.mrf.mxu0
        %v2127 = vadd.f32 0.0, %v2126
        %2128 = vdwg.mxu0
        %v2129 = vsel %vm1198, %v2049, -inf
        %2130 = vmax.xlane.f32.xlu0 %v2129
        %v2131 = vpop.xlane.xlu0 %2130
        %v2132 = vsel %vm1198, %v2075, -inf
        %2133 = vmax.xlane.f32.xlu0 %v2132
        %v2134 = vpop.xlane.xlu0 %2133
        %v2135 = vsel %vm1198, %v2101, -inf
        %2136 = vmax.xlane.f32.xlu0 %v2135
        %v2137 = vpop.xlane.xlu0 %2136
        %v2138 = vsel %vm1198, %v2127, -inf
        %2139 = vmax.xlane.f32.xlu0 %v2138
        %v2140 = vpop.xlane.xlu0 %2139
        %v2141 = vsub.f32 %v2049, %v2131
        %v2142 = vsub.f32 %v2075, %v2134
        %v2143 = vsub.f32 %v2101, %v2137
        %v2144 = vsub.f32 %v2127, %v2140
        %v2145 = vmul.f32 %v2141, 1.442695
        %v2146 = vpow.pop %v2145
        %v2147 = vmul.f32 %v2142, 1.442695
        %v2148 = vpow.pop %v2147
        %v2149 = vmul.f32 %v2143, 1.442695
        %v2150 = vpow.pop %v2149
        %v2151 = vmul.f32 %v2144, 1.442695
        %v2152 = vpow.pop %v2151
        %v2153 = vsel %vm1198, %v2146, 0.0
        %2154 = vadd.xlane.f32.xlu0 %v2153
        %v2155 = vpop.xlane.xlu0 %2154
        %v2156 = vsel %vm1198, %v2148, 0.0
        %2157 = vadd.xlane.f32.xlu0 %v2156
        %v2158 = vpop.xlane.xlu0 %2157
        %v2159 = vsel %vm1198, %v2150, 0.0
        %2160 = vadd.xlane.f32.xlu0 %v2159
        %v2161 = vpop.xlane.xlu0 %2160
        %v2162 = vsel %vm1198, %v2152, 0.0
        %2163 = vadd.xlane.f32.xlu0 %v2162
        %v2164 = vpop.xlane.xlu0 %2163
        %v2165 = vrcp.pop %v2155
        %v2166 = vrcp.pop %v2158
        %v2167 = vrcp.pop %v2161
        %v2168 = vrcp.pop %v2164
        %v2169 = vmul.f32 %v2146, %v2165
        %v2170 = vmul.f32 %v2148, %v2166
        %v2171 = vmul.f32 %v2150, %v2167
        %v2172 = vmul.f32 %v2152, %v2168
        %v2173 = vmul.f32 %v2169, %v863
        %v2174 = vmul.f32 %v2170, %v863
        %v2175 = vmul.f32 %v2171, %v863
        %v2176 = vmul.f32 %v2172, %v863
        %v2178 = vsel %vm1198, %v2173, 0
        %2180 = vmatpush.msra.mxu0 0.0
        %2181 = vmatpush.msra.mxu0 0.0
        %2182 = vmatpush.msra.mxu0 0.0
        %2183 = vmatpush.msra.mxu0 0.0
        %2184 = vmatpush.msra.mxu0 0.0
        %2185 = vmatpush.msra.mxu0 0.0
        %2186 = vmatpush.msra.mxu0 0.0
        %2187 = vmatpush.msra.mxu0 0.0
        %2188 = vmatpush.msra.mxu0 0.0
        %2189 = vmatpush.msra.mxu0 0.0
        %2190 = vmatpush.msra.mxu0 0.0
        %2191 = vmatpush.msra.mxu0 0.0
        %2192 = vmatpush.msra.mxu0 0.0
        %2193 = vmatpush.msra.mxu0 0.0
        %2194 = vmatpush.msra.mxu0 0.0
        %2195 = vmatpush.msra.mxu0 %v1963
        %2196 = vmatmul.f32.gmra.mxu0 %v2178
        %v2197 = vpop.f32.mrf.mxu0
        %v2198 = vadd.f32 0.0, %v2197
        %2199 = vdwg.mxu0
        %v2201 = vsel %vm1198, %v2174, 0
        %2203 = vmatpush.msra.mxu0 0.0
        %2204 = vmatpush.msra.mxu0 0.0
        %2205 = vmatpush.msra.mxu0 0.0
        %2206 = vmatpush.msra.mxu0 0.0
        %2207 = vmatpush.msra.mxu0 0.0
        %2208 = vmatpush.msra.mxu0 0.0
        %2209 = vmatpush.msra.mxu0 0.0
        %2210 = vmatpush.msra.mxu0 0.0
        %2211 = vmatpush.msra.mxu0 0.0
        %2212 = vmatpush.msra.mxu0 0.0
        %2213 = vmatpush.msra.mxu0 0.0
        %2214 = vmatpush.msra.mxu0 0.0
        %2215 = vmatpush.msra.mxu0 0.0
        %2216 = vmatpush.msra.mxu0 0.0
        %2217 = vmatpush.msra.mxu0 0.0
        %2218 = vmatpush.msra.mxu0 %v1983
        %2219 = vmatmul.f32.gmra.mxu0 %v2201
        %v2220 = vpop.f32.mrf.mxu0
        %v2221 = vadd.f32 0.0, %v2220
        %2222 = vdwg.mxu0
        %v2224 = vsel %vm1198, %v2175, 0
        %2226 = vmatpush.msra.mxu0 0.0
        %2227 = vmatpush.msra.mxu0 0.0
        %2228 = vmatpush.msra.mxu0 0.0
        %2229 = vmatpush.msra.mxu0 0.0
        %2230 = vmatpush.msra.mxu0 0.0
        %2231 = vmatpush.msra.mxu0 0.0
        %2232 = vmatpush.msra.mxu0 0.0
        %2233 = vmatpush.msra.mxu0 0.0
        %2234 = vmatpush.msra.mxu0 0.0
        %2235 = vmatpush.msra.mxu0 0.0
        %2236 = vmatpush.msra.mxu0 0.0
        %2237 = vmatpush.msra.mxu0 0.0
        %2238 = vmatpush.msra.mxu0 0.0
        %2239 = vmatpush.msra.mxu0 0.0
        %2240 = vmatpush.msra.mxu0 0.0
        %2241 = vmatpush.msra.mxu0 %v2003
        %2242 = vmatmul.f32.gmra.mxu0 %v2224
        %v2243 = vpop.f32.mrf.mxu0
        %v2244 = vadd.f32 0.0, %v2243
        %2245 = vdwg.mxu0
        %v2247 = vsel %vm1198, %v2176, 0
        %2249 = vmatpush.msra.mxu0 0.0
        %2250 = vmatpush.msra.mxu0 0.0
        %2251 = vmatpush.msra.mxu0 0.0
        %2252 = vmatpush.msra.mxu0 0.0
        %2253 = vmatpush.msra.mxu0 0.0
        %2254 = vmatpush.msra.mxu0 0.0
        %2255 = vmatpush.msra.mxu0 0.0
        %2256 = vmatpush.msra.mxu0 0.0
        %2257 = vmatpush.msra.mxu0 0.0
        %2258 = vmatpush.msra.mxu0 0.0
        %2259 = vmatpush.msra.mxu0 0.0
        %2260 = vmatpush.msra.mxu0 0.0
        %2261 = vmatpush.msra.mxu0 0.0
        %2262 = vmatpush.msra.mxu0 0.0
        %2263 = vmatpush.msra.mxu0 0.0
        %2264 = vmatpush.msra.mxu0 %v2023
        %2265 = vmatmul.f32.gmra.mxu0 %v2247
        %v2266 = vpop.f32.mrf.mxu0
        %v2267 = vadd.f32 0.0, %v2266
        %2268 = vdwg.mxu0
        %s2269 = scalar_lea.vmem %s13, 32
        %v2270 = vld [vmem:[%s2269] sm:$0xff]
        %v2271 = vld [vmem:[%s2269 + $0x8] sm:$0xff]
        %v2272 = vld [vmem:[%s2269 + $0x10] sm:$0xff]
        %v2273 = vld [vmem:[%s2269 + $0x18] sm:$0xff]
        %v2275 = vsel %vm1198, %v2198, 0
        %2277 = vmatpush.msra.mxu0 0.0
        %2278 = vmatpush.msra.mxu0 0.0
        %2279 = vmatpush.msra.mxu0 0.0
        %2280 = vmatpush.msra.mxu0 0.0
        %2281 = vmatpush.msra.mxu0 0.0
        %2282 = vmatpush.msra.mxu0 0.0
        %2283 = vmatpush.msra.mxu0 0.0
        %2284 = vmatpush.msra.mxu0 0.0
        %2285 = vmatpush.msra.mxu0 0.0
        %2286 = vmatpush.msra.mxu0 0.0
        %2287 = vmatpush.msra.mxu0 0.0
        %2288 = vmatpush.msra.mxu0 0.0
        %2289 = vmatpush.msra.mxu0 0.0
        %2290 = vmatpush.msra.mxu0 0.0
        %2291 = vmatpush.msra.mxu0 0.0
        %2292 = vmatpush.msra.mxu0 %v2270
        %2293 = vmatmul.f32.gmra.mxu0 %v2275
        %v2294 = vpop.f32.mrf.mxu0
        %v2295 = vadd.f32 0.0, %v2294
        %2296 = vdwg.mxu0
        %v2298 = vsel %vm1198, %v2221, 0
        %2300 = vmatpush.msra.mxu0 0.0
        %2301 = vmatpush.msra.mxu0 0.0
        %2302 = vmatpush.msra.mxu0 0.0
        %2303 = vmatpush.msra.mxu0 0.0
        %2304 = vmatpush.msra.mxu0 0.0
        %2305 = vmatpush.msra.mxu0 0.0
        %2306 = vmatpush.msra.mxu0 0.0
        %2307 = vmatpush.msra.mxu0 0.0
        %2308 = vmatpush.msra.mxu0 0.0
        %2309 = vmatpush.msra.mxu0 0.0
        %2310 = vmatpush.msra.mxu0 0.0
        %2311 = vmatpush.msra.mxu0 0.0
        %2312 = vmatpush.msra.mxu0 0.0
        %2313 = vmatpush.msra.mxu0 0.0
        %2314 = vmatpush.msra.mxu0 0.0
        %2315 = vmatpush.msra.mxu0 %v2271
        %2316 = vmatmul.f32.gmra.mxu0 %v2298
        %v2317 = vpop.f32.mrf.mxu0
        %v2318 = vadd.f32 0.0, %v2317
        %2319 = vdwg.mxu0
        %v2321 = vsel %vm1198, %v2244, 0
        %2323 = vmatpush.msra.mxu0 0.0
        %2324 = vmatpush.msra.mxu0 0.0
        %2325 = vmatpush.msra.mxu0 0.0
        %2326 = vmatpush.msra.mxu0 0.0
        %2327 = vmatpush.msra.mxu0 0.0
        %2328 = vmatpush.msra.mxu0 0.0
        %2329 = vmatpush.msra.mxu0 0.0
        %2330 = vmatpush.msra.mxu0 0.0
        %2331 = vmatpush.msra.mxu0 0.0
        %2332 = vmatpush.msra.mxu0 0.0
        %2333 = vmatpush.msra.mxu0 0.0
        %2334 = vmatpush.msra.mxu0 0.0
        %2335 = vmatpush.msra.mxu0 0.0
        %2336 = vmatpush.msra.mxu0 0.0
        %2337 = vmatpush.msra.mxu0 0.0
        %2338 = vmatpush.msra.mxu0 %v2272
        %2339 = vmatmul.f32.gmra.mxu0 %v2321
        %v2340 = vpop.f32.mrf.mxu0
        %v2341 = vadd.f32 0.0, %v2340
        %2342 = vdwg.mxu0
        %v2344 = vsel %vm1198, %v2267, 0
        %2346 = vmatpush.msra.mxu0 0.0
        %2347 = vmatpush.msra.mxu0 0.0
        %2348 = vmatpush.msra.mxu0 0.0
        %2349 = vmatpush.msra.mxu0 0.0
        %2350 = vmatpush.msra.mxu0 0.0
        %2351 = vmatpush.msra.mxu0 0.0
        %2352 = vmatpush.msra.mxu0 0.0
        %2353 = vmatpush.msra.mxu0 0.0
        %2354 = vmatpush.msra.mxu0 0.0
        %2355 = vmatpush.msra.mxu0 0.0
        %2356 = vmatpush.msra.mxu0 0.0
        %2357 = vmatpush.msra.mxu0 0.0
        %2358 = vmatpush.msra.mxu0 0.0
        %2359 = vmatpush.msra.mxu0 0.0
        %2360 = vmatpush.msra.mxu0 0.0
        %2361 = vmatpush.msra.mxu0 %v2273
        %2362 = vmatmul.f32.gmra.mxu0 %v2344
        %v2363 = vpop.f32.mrf.mxu0
        %v2364 = vadd.f32 0.0, %v2363
        %2365 = vdwg.mxu0
        %v2366 = vsel %vm796, %v2295, 0.0
        %v2367 = vsel %vm796, %v2318, 0.0
        %v2368 = vadd.f32 %v2366, %v2367
        %v2369 = vsel %vm796, %v2341, 0.0
        %v2370 = vadd.f32 %v2368, %v2369
        %v2371 = vsel %vm796, %v2364, 0.0
        %v2372 = vadd.f32 %v2370, %v2371
        %s2373 = scalar_lea.vmem %s14, 1
        %v2374 = vld [vmem:[%s2373] sm:$0x1]
        %v2376 = vperm.slane %v2374, 0
        %v2378 = vadd.f32 %v2372, %v2376
        %v2379 = vadd.f32 %v1684, %v2378
        %s2380 = scalar_lea.vmem %s15, 1
        %v2381 = vld [vmem:[%s2380] sm:$0x1]
        %s2382 = scalar_lea.vmem %s16, 1
        %v2383 = vld [vmem:[%s2382] sm:$0x1]
        %v2384 = vsel %vm796, %v2379, 0.0
        %2385 = vadd.xlane.f32.xlu0 %v2384
        %v2386 = vpop.xlane.xlu0 %2385
        %v2387 = vmul.f32 %v2386, %v806
        %v2388 = vsub.f32 %v2379, %v2387
        %v2389 = vmul.f32 %v2388, %v2388
        %v2390 = vsel %vm796, %v2389, 0.0
        %2391 = vadd.xlane.f32.xlu0 %v2390
        %v2392 = vpop.xlane.xlu0 %2391
        %v2393 = vmul.f32 %v2392, %v806
        %v2394 = vadd.f32 %v2393, 1e-05
        %v2395 = vrsqrt.pop %v2394
        %v2396 = vmul.f32 %v2395, %v2394
        %v2397 = vmul.f32 %v2396, %v2395
        %v2398 = vmul.f32 0.5, %v2397
        %v2399 = vsub.f32 1.5, %v2398
        %v2400 = vmul.f32 %v2395, %v2399
        %vm2401 = vweird.f32 %v2394
        %vm2402 = vweird.f32 %v2395
        %vm2403 = vmor %vm2401, %vm2402
        %v2404 = vsel %vm2403, %v2395, %v2400
        %v2405 = vmul.f32 %v2388, %v2404
        %v2407 = vperm.slane %v2381, 0
        %v2409 = vmul.f32 %v2405, %v2407
        %v2411 = vperm.slane %v2383, 0
        %v2413 = vadd.f32 %v2409, %v2411
        %s2414 = scalar_lea.vmem %s17, 32
        %v2415 = vld [vmem:[%s2414] sm:$0xff]
        %v2416 = vld [vmem:[%s2414 + $0x8] sm:$0xff]
        %v2417 = vld [vmem:[%s2414 + $0x10] sm:$0xff]
        %v2418 = vld [vmem:[%s2414 + $0x18] sm:$0xff]
        %s2419 = scalar_lea.vmem %s18, 1
        %v2420 = vld [vmem:[%s2419] sm:$0x1]
        %v2422 = vperm.slane %v2420, 0
        %v2425 = vsel %vm796, %v2413, 0
        %2427 = vmatpush.msra.mxu0 0.0
        %2428 = vmatpush.msra.mxu0 0.0
        %2429 = vmatpush.msra.mxu0 0.0
        %2430 = vmatpush.msra.mxu0 0.0
        %2431 = vmatpush.msra.mxu0 0.0
        %2432 = vmatpush.msra.mxu0 0.0
        %2433 = vmatpush.msra.mxu0 0.0
        %2434 = vmatpush.msra.mxu0 0.0
        %2435 = vmatpush.msra.mxu0 0.0
        %2436 = vmatpush.msra.mxu0 0.0
        %2437 = vmatpush.msra.mxu0 0.0
        %2438 = vmatpush.msra.mxu0 0.0
        %2439 = vmatpush.msra.mxu0 %v2418
        %2440 = vmatpush.msra.mxu0 %v2417
        %2441 = vmatpush.msra.mxu0 %v2416
        %2442 = vmatpush.msra.mxu0 %v2415
        %2443 = vmatmul.f32.gmra.mxu0 %v2425
        %v2444 = vpop.f32.mrf.mxu0
        %v2445 = vadd.f32 %v2422, %v2444
        %2446 = vdwg.mxu0
        %v2447 = vmax.f32 %v2445, 0.0
        %s2448 = scalar_lea.vmem %s19, 64
        %v2449 = vld [vmem:[%s2448] sm:$0xff]
        %v2450 = vld [vmem:[%s2448 + $0x8] sm:$0xff]
        %v2451 = vld [vmem:[%s2448 + $0x10] sm:$0xff]
        %v2452 = vld [vmem:[%s2448 + $0x18] sm:$0xff]
        %v2453 = vld [vmem:[%s2448 + $0x20] sm:$0xff]
        %v2454 = vld [vmem:[%s2448 + $0x28] sm:$0xff]
        %v2455 = vld [vmem:[%s2448 + $0x30] sm:$0xff]
        %v2456 = vld [vmem:[%s2448 + $0x38] sm:$0xff]
        %s2457 = scalar_lea.vmem %s20, 1
        %v2458 = vld [vmem:[%s2457] sm:$0x1]
        %v2460 = vperm.slane %v2458, 0
        %v2463 = vsel %vm1628, %v2447, 0
        %2465 = vmatpush.msra.mxu0 0.0
        %2466 = vmatpush.msra.mxu0 0.0
        %2467 = vmatpush.msra.mxu0 0.0
        %2468 = vmatpush.msra.mxu0 0.0
        %2469 = vmatpush.msra.mxu0 0.0
        %2470 = vmatpush.msra.mxu0 0.0
        %2471 = vmatpush.msra.mxu0 0.0
        %2472 = vmatpush.msra.mxu0 0.0
        %2473 = vmatpush.msra.mxu0 %v2456
        %2474 = vmatpush.msra.mxu0 %v2455
        %2475 = vmatpush.msra.mxu0 %v2454
        %2476 = vmatpush.msra.mxu0 %v2453
        %2477 = vmatpush.msra.mxu0 %v2452
        %2478 = vmatpush.msra.mxu0 %v2451
        %2479 = vmatpush.msra.mxu0 %v2450
        %2480 = vmatpush.msra.mxu0 %v2449
        %2481 = vmatmul.f32.gmra.mxu0 %v2463
        %v2482 = vpop.f32.mrf.mxu0
        %v2483 = vadd.f32 %v2460, %v2482
        %2484 = vdwg.mxu0
        %v2485 = vadd.f32 %v2413, %v2483
        %s2486 = scalar_lea.vmem %s21, 1
        %v2487 = vld [vmem:[%s2486] sm:$0x1]
        %s2488 = scalar_lea.vmem %s22, 1
        %v2489 = vld [vmem:[%s2488] sm:$0x1]
        %v2490 = vsel %vm796, %v2485, 0.0
        %2491 = vadd.xlane.f32.xlu0 %v2490
        %v2492 = vpop.xlane.xlu0 %2491
        %v2493 = vmul.f32 %v2492, %v806
        %v2494 = vsub.f32 %v2485, %v2493
        %v2495 = vmul.f32 %v2494, %v2494
        %v2496 = vsel %vm796, %v2495, 0.0
        %2497 = vadd.xlane.f32.xlu0 %v2496
        %v2498 = vpop.xlane.xlu0 %2497
        %v2499 = vmul.f32 %v2498, %v806
        %v2500 = vadd.f32 %v2499, 1e-05
        %v2501 = vrsqrt.pop %v2500
        %v2502 = vmul.f32 %v2501, %v2500
        %v2503 = vmul.f32 %v2502, %v2501
        %v2504 = vmul.f32 0.5, %v2503
        %v2505 = vsub.f32 1.5, %v2504
        %v2506 = vmul.f32 %v2501, %v2505
        %vm2507 = vweird.f32 %v2500
        %vm2508 = vweird.f32 %v2501
        %vm2509 = vmor %vm2507, %vm2508
        %v2510 = vsel %vm2509, %v2501, %v2506
        %v2511 = vmul.f32 %v2494, %v2510
        %v2513 = vperm.slane %v2487, 0
        %v2515 = vmul.f32 %v2511, %v2513
        %v2517 = vperm.slane %v2489, 0
        %v2519 = vadd.f32 %v2515, %v2517
        %v2520 = vld [vmem:[%s23] sm:$0xff]
        %v2521 = vld [vmem:[%s23 + $0x8] sm:$0xff]
        %v2522 = vld [vmem:[%s23 + $0x10] sm:$0xff]
        %v2523 = vld [vmem:[%s23 + $0x18] sm:$0xff]
        %v2524 = vld [vmem:[%s24] sm:$0x1]
        %v2526 = vperm.slane %v2524, 0
        %v2529 = vsel %vm796, %v2519, 0
        %2531 = vmatpush.msra.mxu0 0.0
        %2532 = vmatpush.msra.mxu0 0.0
        %2533 = vmatpush.msra.mxu0 0.0
        %2534 = vmatpush.msra.mxu0 0.0
        %2535 = vmatpush.msra.mxu0 0.0
        %2536 = vmatpush.msra.mxu0 0.0
        %2537 = vmatpush.msra.mxu0 0.0
        %2538 = vmatpush.msra.mxu0 0.0
        %2539 = vmatpush.msra.mxu0 0.0
        %2540 = vmatpush.msra.mxu0 0.0
        %2541 = vmatpush.msra.mxu0 0.0
        %2542 = vmatpush.msra.mxu0 0.0
        %2543 = vmatpush.msra.mxu0 %v2523
        %2544 = vmatpush.msra.mxu0 %v2522
        %2545 = vmatpush.msra.mxu0 %v2521
        %2546 = vmatpush.msra.mxu0 %v2520
        %2547 = vmatmul.f32.gmra.mxu0 %v2529
        %v2548 = vpop.f32.mrf.mxu0
        %v2549 = vadd.f32 %v2526, %v2548
        %2550 = vdwg.mxu0
        %vm2551 = vcmask 125952
        %2552 = vst.msk [vmem:[%s755] sm:$0xf] %vm2551, %v2549
        %s2553 = sand.u32 %s577, 1
        %s2554 = scalar_lea.sflag [#allocation3], %s2553
        %s2555 = sand.u32 %s577, 1
        %s2556 = smul.addr %s2555, 4
        %s2557 = scalar_lea.vmem [#allocation2], %s2556
        // Predicated region
        $region121: #{maskformer_forward.1} parent=119 // pred_check
          %p2558 = pneg %p587
        $region122: #{maskformer_forward.1} parent=119 // pred_check_branch
          %2560 = sbr.rel (%p2558) target = $region124
        $region123: #{maskformer_forward.1} parent=119 // pred_region
          %2562 = vsyncadd %s2554, 0
          %s2563 = smul.addr %s39, 4
          %s2564 = scalar_lea.hbm %s25, %s2563
          %s2566 = sshll.u32 %s2557, 4
          %s2567 = int_to_ptr.vmem [resolvable:$true] %s2566
          %s2568 = sshll.u32 %s2564, 4
          %s2569 = int_to_ptr.hbm [resolvable:$true] %s2568
          %2571 = dma.vmem_to_hbm [thread:$0]  %s2567, 64, %s2569, %s2554
        $region124: #{maskformer_forward.1} parent=119 // pred_fallthru
          _
      $region120: #{maskformer_forward.1} parent=5 // pred_fallthru
        _
      %p2572 = scmp.le.s32.totalorder 2, %s34
      // Predicated region
      $region125: #{maskformer_forward.1} parent=5 // pred_check
        %p2573 = pneg %p2572
      $region126: #{maskformer_forward.1} parent=5 // pred_check_branch
        %2575 = sbr.rel (%p2573) target = $region128
      $region127: #{maskformer_forward.1} parent=5 // pred_region
        %s2576 = ssub.s32 %s34, 2
        // Predicated region
        $region129: #{maskformer_forward.1} parent=127 // pred_check
          %p2577 = pneg %p593
        $region130: #{maskformer_forward.1} parent=127 // pred_check_branch
          %2579 = sbr.rel (%p2577) target = $region132
        $region131: #{maskformer_forward.1} parent=127 // pred_region
          %s2580 = sand.u32 %s578, 1
          %s2581 = scalar_lea.sflag [#allocation3], %s2580
          %s2582 = sand.u32 %s578, 1
          %s2583 = smul.addr %s2582, 4
          %s2584 = scalar_lea.vmem [#allocation2], %s2583
          %2586 = dma.done %s2581, 64
        $region132: #{maskformer_forward.1} parent=127 // pred_fallthru
          _
      $region128: #{maskformer_forward.1} parent=5 // pred_fallthru
        _
    $region6: #{maskformer_forward.1} parent=1 // loop_footer
      %s38 = sadd.s32 1, %s34
    $region7: #{maskformer_forward.1} parent=1 // loop_footer_branch
      %33 = sbr.rel target = $region3
    $region8: #{maskformer_forward.1} parent=1 // loop_exit
      _
    %2587 = vsyncpa [#allocation3], 1
    %s2588 = scalar_lea.sflag [#allocation3], 1
    %2589 = vsyncpa %s2588, 1

</llo_original>
